<compile_context>
chip_gen: v5e
topology: v5e:2x2
jax: 0.10.0
libtpu: 0.0.40
codegen_flags: <defaults>
</compile_context>

<pallas_src>
import functools

import jax
import jax.numpy as jnp
from jax.experimental import pallas as pl
from jax.experimental.pallas import tpu as pltpu


# ------------------------------ fused kernel ---------------------------------

def _stgcn_block_kernel(xcat_ref, rhs0_ref, rhs1_ref, s2_ref, mode_ref, w2l_ref,
                        vecs_ref, g_ref, gt_ref, o_ref, *,
                        n_lanes, euler_scale, eps):
    f32 = jnp.float32
    bf16 = jnp.bfloat16
    dot = functools.partial(jnp.dot, preferred_element_type=f32)
    hpdot = functools.partial(jnp.dot, preferred_element_type=f32,
                              precision=jax.lax.Precision.HIGHEST)
    L = n_lanes

    b0 = vecs_ref[0:1, :]
    b1 = vecs_ref[1:2, :]
    bd = vecs_ref[2:3, :]
    gamma_l = vecs_ref[3:4, :]
    beta_l = vecs_ref[4:5, :]

    # ---- TemporalConvNet #1: two causal dilated (1,2) levels + 1x1 downsample ----
    # Level 0 + downsample in ONE wide bf16 matmul: the dilation-1 early tap is already
    # folded into the wrapper-built LHS [x | shift1(x)] (K=128); the 1x1 downsample
    # rides along as the second 256-lane half of the RHS.
    # TODO(synk): nn.Dropout(0.2) after each level is train-mode stochastic; modeled as
    # eval-mode identity.
    w0 = dot(xcat_ref[...].astype(bf16), rhs0_ref[...])              # (T, 2L) f32
    h = jnp.maximum(w0[:, :L] + b0, 0.0)                             # level-0 output
    ds = w0[:, L:]                                                   # x @ kds (residual)

    # Level 1: one wide matmul for both taps; the dilation-2 causal shift is applied
    # post-hoc to the early-tap lane half only (S2 (h@Ke) == (S2 h)@Ke), so the small
    # (T,T) matmul never sits in front of the wide one.
    w1 = dot(h.astype(bf16), rhs1_ref[...])                          # (T, 2L) f32
    early = dot(s2_ref[...], w1[:, L:].astype(bf16))                 # (T, L)
    h = jnp.maximum(w1[:, :L] + early + b1, 0.0)
    r = jnp.maximum(h + ds + bd, 0.0)                                # TCN residual+ReLU

    # ---- ODEG / ODEblock: one explicit-Euler step over t = [0, time], then ReLU ----
    #   z = (1 - 2*tau)*r + r @ [tau*(kron(A_scaled) + kron(W W^T))] + [tau*(W2 W2^T)^T] @ r
    # The large (1-2*tau) diagonal stays an exact f32 VPU op (not folded into the bf16
    # matmul) so BN's 1/std does not amplify its rounding.
    r16 = r.astype(bf16)
    z = jnp.maximum(euler_scale * r
                    + dot(r16, mode_ref[...])
                    + dot(w2l_ref[...], r16), 0.0)
    # The module's following F.relu and the identity TemporalConvNet (downsample is
    # None -> relu(identity)) are no-ops on z >= 0.

    # ---- BatchNorm2d(num_nodes), training-mode batch stats (per node over B,T,C) ----
    # Tiny M=1 grouping/broadcast dots kept at f32 HIGHEST precision; g_ref is already
    # pre-scaled by 1/(B*T*C) and gamma/beta are pre-broadcast to lane width.
    zsum = jnp.sum(z, axis=0, keepdims=True)                         # (1, L)
    mean_n = hpdot(zsum, g_ref[...])                                 # (1, N)
    cen = z - hpdot(mean_n, gt_ref[...])                             # (T, L)
    var_n = hpdot(jnp.sum(cen * cen, axis=0, keepdims=True), g_ref[...])
    scale_l = hpdot(jax.lax.rsqrt(var_n + eps), gt_ref[...]) * gamma_l
    o_ref[...] = cen * scale_l + beta_l


def _full_spec(shape):
    nd = len(shape)
    return pl.BlockSpec(shape, lambda *_, _nd=nd: (0,) * _nd)


# --------------- parameter folding (hoisted, once per param update) ----------

def fold_stgcn_params(params, *, batch, ode_time=1.0):
    """Folds conv/ODE/BN parameters into the lane-dense operand slabs (arrays only)."""
    f32, bf16 = jnp.float32, jnp.bfloat16
    t1 = params['temporal1']
    assert len(t1['levels']) == 2 and t1['downsample'] is not None
    assert params['temporal2']['downsample'] is None   # -> relu(identity) branch
    (w_l0, b_l0), (w_l1, b_l1) = t1['levels']
    wd, bd = t1['downsample']

    A_hat = params['A_hat'].astype(f32)
    N = A_hat.shape[0]
    Cin = w_l0.shape[1]
    C = wd.shape[0]
    T = params['ode_w2'].shape[0]
    B = batch
    BN, BNCin, BNC = B * N, B * N * Cin, B * N * C
    assert BNC % 128 == 0, "output slab must be 128-lane aligned for in-kernel slices"

    eye_bn = jnp.eye(BN, dtype=f32)
    kron_c = lambda w2d: jnp.kron(eye_bn, w2d.astype(f32))   # per-(b,n) channel mixer

    # conv taps: weight[..., 0] hits x[t - dilation], weight[..., 1] hits x[t]
    k0c, k0e = kron_c(w_l0[:, :, 0, 1].T), kron_c(w_l0[:, :, 0, 0].T)
    k1c, k1e = kron_c(w_l1[:, :, 0, 1].T), kron_c(w_l1[:, :, 0, 0].T)
    kds = kron_c(wd[:, :, 0, 0].T)

    # level-0 RHS acts on [x | shift1(x)]; downsample folded as extra 256 lanes
    rhs0 = jnp.concatenate(
        [jnp.concatenate([k0c, k0e], axis=0),
         jnp.concatenate([kds, jnp.zeros((BNCin, BNC), f32)], axis=0)],
        axis=1).astype(bf16)                                   # (2*BNCin, 2*BNC)
    rhs1 = jnp.concatenate([k1c, k1e], axis=1).astype(bf16)    # (BNC, 2*BNC)
    s2 = jnp.eye(T, k=-2, dtype=f32).astype(bf16)              # dilation-2 causal shift

    # ODEFunc folded with sigmoid(alpha)/2, clamp(d/d2) and the Euler step size; the
    # (1 - 2*tau) diagonal is NOT folded (kept exact f32 in-kernel).
    tau = float(ode_time)
    a_scaled = (jax.nn.sigmoid(params['ode_alpha']) * 0.5)[:, None] * A_hat
    w_eff = jnp.dot(params['ode_w'] * jnp.clip(params['ode_d'], 0.0, 1.0),
                    params['ode_w'].T)
    w2_eff = jnp.dot(params['ode_w2'] * jnp.clip(params['ode_d2'], 0.0, 1.0),
                     params['ode_w2'].T)
    m_ode = (tau * jnp.kron(jnp.eye(B, dtype=f32),
                            jnp.kron(a_scaled.T, jnp.eye(C, dtype=f32)))
             + tau * jnp.kron(eye_bn, w_eff)).astype(bf16)     # (BNC, BNC)
    w2l = (tau * w2_eff.T).astype(bf16)                        # (T, T)

    # biases + BN affine packed into one (8, BNC) slab: rows = b0,b1,bd,gamma,beta,pad
    gamma_l = jnp.tile(jnp.repeat(params['bn_gamma'].astype(f32), C), B)[None, :]
    beta_l = jnp.tile(jnp.repeat(params['bn_beta'].astype(f32), C), B)[None, :]
    vecs = jnp.concatenate(
        [jnp.tile(b_l0.astype(f32), BN)[None, :],
         jnp.tile(b_l1.astype(f32), BN)[None, :],
         jnp.tile(bd.astype(f32), BN)[None, :],
         gamma_l, beta_l,
         jnp.zeros((3, BNC), f32)], axis=0)                    # (8, BNC)

    # BatchNorm2d(num_nodes) grouping: lane (b, n, c) -> node n; 1/count pre-folded
    g01 = jnp.tile(jnp.kron(jnp.eye(N, dtype=f32), jnp.ones((C, 1), f32)), (B, 1))
    g_red = g01 / float(B * T * C)                             # (BNC, N)
    g_bcast = g01.T                                            # (N, BNC)

    return dict(rhs0=rhs0, rhs1=rhs1, s2=s2, m_ode=m_ode, w2l=w2l,
                vecs=vecs, g_red=g_red, g_bcast=g_bcast)


# ----------------------- fused forward (jit this) ----------------------------

def stgcn_block_forward(X, folded, *, ode_time=1.0, eps=1e-5):
    """Fused STGCNBlock forward: temporal1 -> ODEG(ODEblock) -> identity temporal2 -> BN."""
    B, N, T, Cin = X.shape
    BNC = folded['m_ode'].shape[0]
    C = BNC // (B * N)
    f32 = jnp.float32

    # lane-dense activation slab: rows = time, lanes = (batch, node, channel);
    # the dilation-1 causal shift of the INPUT is free layout plumbing here.
    x_t = jnp.transpose(X.astype(f32), (2, 0, 1, 3)).reshape(T, B * N * Cin)
    x_sh = jnp.concatenate([jnp.zeros_like(x_t[:1]), x_t[:-1]], axis=0)
    x_cat = jnp.concatenate([x_t, x_sh], axis=1)               # (T, 2*B*N*Cin)

    operands = (x_cat, folded['rhs0'], folded['rhs1'], folded['s2'],
                folded['m_ode'], folded['w2l'], folded['vecs'],
                folded['g_red'], folded['g_bcast'])

    kernel = functools.partial(_stgcn_block_kernel, n_lanes=BNC,
                               euler_scale=1.0 - 2.0 * float(ode_time),
                               eps=float(eps))

    # Single fused invocation: all operands + intermediates < 1 MiB -> VMEM-resident.
    # (At real STGCN sizes: factor the kron operators, tile rows on a parallel grid and
    #  switch BN to a 2-phase reduction — required on v7x's 64 MiB VMEM / 2 TCs.)
    out_t = pl.pallas_call(
        kernel,
        out_shape=jax.ShapeDtypeStruct((T, BNC), f32),
        grid=(1,),
        in_specs=[_full_spec(a.shape) for a in operands],
        out_specs=_full_spec((T, BNC)),
        compiler_params=pltpu.CompilerParams(dimension_semantics=("arbitrary",)),
    )(*operands)

    # free reshape + one tiny layout transpose back to (B, N, T, C)
    return jnp.transpose(out_t.reshape(T, B, N, C), (1, 2, 0, 3))


# --------------------- pure-JAX reference (PyTorch semantics) -----------------

def _ref_forward(X, params, *, ode_time=1.0, eps=1e-5):
    B, N, T, _ = X.shape

    def conv_level(x, w, b, dil):
        xs = jnp.concatenate(
            [jnp.zeros_like(x[:, :, :dil, :]), x[:, :, :T - dil, :]], axis=2)
        y = (jnp.einsum('bntc,oc->bnto', xs, w[:, :, 0, 0])
             + jnp.einsum('bntc,oc->bnto', x, w[:, :, 0, 1]) + b)
        return jax.nn.relu(y)

    def tcn(x, p):
        if p['downsample'] is None:
            return jax.nn.relu(x)
        y = x
        for i, (w, b) in enumerate(p['levels']):
            y = conv_level(y, w, b, 2 ** i)
        wd, bd = p['downsample']
        return jax.nn.relu(y + jnp.einsum('bntc,oc->bnto', x, wd[:, :, 0, 0]) + bd)

    t = tcn(X, params['temporal1'])
    # ODEG: set_x0(t); odeint(f, t, [0, time], 'euler') -> single Euler step; relu
    alpha = jax.nn.sigmoid(params['ode_alpha'])[None, :, None, None]
    w_eff = jnp.dot(params['ode_w'] * jnp.clip(params['ode_d'], 0.0, 1.0),
                    params['ode_w'].T)
    w2_eff = jnp.dot(params['ode_w2'] * jnp.clip(params['ode_d2'], 0.0, 1.0),
                     params['ode_w2'].T)
    xa = jnp.einsum('ij,bjtc->bitc', params['A_hat'], t)
    xw = jnp.einsum('bntc,cd->bntd', t, w_eff)
    xw2 = jnp.einsum('bntc,tm->bnmc', t, w2_eff)
    f = alpha / 2.0 * xa + xw + xw2 - 2.0 * t
    t = jax.nn.relu(t + ode_time * f)
    t = tcn(jax.nn.relu(t), params['temporal2'])
    mean = jnp.mean(t, axis=(0, 2, 3), keepdims=True)
    var = jnp.mean((t - mean) ** 2, axis=(0, 2, 3), keepdims=True)
    return ((t - mean) * jax.lax.rsqrt(var + eps)
            * params['bn_gamma'][None, :, None, None]
            + params['bn_beta'][None, :, None, None])


# --------------------------------- main ---------------------------------------

if __name__ == "__main__":
    B, num_nodes, in_channels = 2, 8, 4
    T = 60                               # ODEG temporal_dim, hard-coded in the module
    out_channels = [16, 16]
    C = out_channels[-1]
    ODE_TIME = 1.0                       # ODEblock default: t = torch.tensor([0, 1])

    key = jax.random.PRNGKey(0)
    ks = jax.random.split(key, 8)

    # deterministic normalized adjacency: D^-1/2 (A + I) D^-1/2
    raw = jax.random.uniform(ks[0], (num_nodes, num_nodes))
    adj = (((raw + raw.T) * 0.5 > 0.5).astype(jnp.float32)
           + jnp.eye(num_nodes, dtype=jnp.float32))
    dinv = 1.0 / jnp.sqrt(jnp.sum(adj, axis=1))
    A_hat = adj * dinv[:, None] * dinv[None, :]

    def conv_params(k, cout, cin, kw):
        kw_, kb_ = jax.random.split(k)
        w = 0.01 * jax.random.normal(kw_, (cout, cin, 1, kw), dtype=jnp.float32)
        bound = (cin * kw) ** -0.5
        b = jax.random.uniform(kb_, (cout,), minval=-bound, maxval=bound,
                               dtype=jnp.float32)
        return w, b

    # temporal1: levels with dilation 2**i; downsample exists (in_ch != out[-1])
    w_l0, b_l0 = conv_params(ks[1], out_channels[0], in_channels, 2)
    w_l1, b_l1 = conv_params(ks[2], out_channels[1], out_channels[0], 2)
    w_ds, b_ds = conv_params(ks[3], out_channels[-1], in_channels, 1)
    temporal1 = {'levels': [(w_l0, b_l0), (w_l1, b_l1)], 'downsample': (w_ds, b_ds)}
    # temporal2: num_inputs == num_channels[-1] -> downsample is None; its forward
    # short-circuits to relu(identity) (its conv params are never used).
    temporal2 = {'levels': [], 'downsample': None}

    params = {
        'temporal1': temporal1,
        'temporal2': temporal2,
        'A_hat': A_hat,
        'ode_alpha': 0.8 * jnp.ones((num_nodes,), jnp.float32),
        'ode_w': jnp.eye(C, dtype=jnp.float32),
        'ode_d': jnp.ones((C,), jnp.float32),
        'ode_w2': jnp.eye(T, dtype=jnp.float32),
        'ode_d2': jnp.ones((T,), jnp.float32),
        'bn_gamma': jnp.ones((num_nodes,), jnp.float32),
        'bn_beta': jnp.zeros((num_nodes,), jnp.float32),
    }

    X = jax.random.normal(ks[4], (B, num_nodes, T, in_channels), dtype=jnp.float32)

    # fold once (per parameter update), jit only the activation path
    folded = jax.tree.map(jax.block_until_ready,
                          fold_stgcn_params(params, batch=B, ode_time=ODE_TIME))
    fwd = jax.jit(functools.partial(stgcn_block_forward, ode_time=ODE_TIME))
    out = jax.block_until_ready(fwd(X, folded))
    assert out.shape == (B, num_nodes, T, C)
    assert bool(jnp.all(jnp.isfinite(out)))

    # bf16 single-pass MXU operands (f32 accumulate) vs. the f32 reference; 2e-2
    # absorbs the bf16-level deviation after BN's 1/std scaling.
    ref = _ref_forward(X, params, ode_time=ODE_TIME)
    assert jnp.allclose(out, ref, rtol=2e-2, atol=2e-2), \
        float(jnp.max(jnp.abs(out - ref)))
    print("KERNEL_OK")
</pallas_src>

<mosaic_0001>
module attributes {stable_mosaic.version = 11 : i64} {
  func.func @_stgcn_block_kernel(%arg0: i32, %arg1: memref<60x128xf32, #tpu.memory_space<vmem>>, %arg2: memref<128x512xbf16, #tpu.memory_space<vmem>>, %arg3: memref<256x512xbf16, #tpu.memory_space<vmem>>, %arg4: memref<60x60xbf16, #tpu.memory_space<vmem>>, %arg5: memref<256x256xbf16, #tpu.memory_space<vmem>>, %arg6: memref<60x60xbf16, #tpu.memory_space<vmem>>, %arg7: memref<8x256xf32, #tpu.memory_space<vmem>>, %arg8: memref<256x8xf32, #tpu.memory_space<vmem>>, %arg9: memref<8x256xf32, #tpu.memory_space<vmem>>, %arg10: memref<60x256xf32, #tpu.memory_space<vmem>>) attributes {dimension_semantics = [#tpu.dimension_semantics<arbitrary>], iteration_bounds = array<i64: 1>, scalar_prefetch = 0 : i64, scratch_operands = 0 : i64, tpu.core_type = #tpu.core_type<tc>, window_params = [{pipeline_mode = #tpu.pipeline_mode<synchronous>, transform_indices = @transform_0, window_bounds = array<i64: 60, 128>}, {pipeline_mode = #tpu.pipeline_mode<synchronous>, transform_indices = @transform_1, window_bounds = array<i64: 128, 512>}, {pipeline_mode = #tpu.pipeline_mode<synchronous>, transform_indices = @transform_2, window_bounds = array<i64: 256, 512>}, {pipeline_mode = #tpu.pipeline_mode<synchronous>, transform_indices = @transform_3, window_bounds = array<i64: 60, 60>}, {pipeline_mode = #tpu.pipeline_mode<synchronous>, transform_indices = @transform_4, window_bounds = array<i64: 256, 256>}, {pipeline_mode = #tpu.pipeline_mode<synchronous>, transform_indices = @transform_5, window_bounds = array<i64: 60, 60>}, {pipeline_mode = #tpu.pipeline_mode<synchronous>, transform_indices = @transform_6, window_bounds = array<i64: 8, 256>}, {pipeline_mode = #tpu.pipeline_mode<synchronous>, transform_indices = @transform_7, window_bounds = array<i64: 256, 8>}, {pipeline_mode = #tpu.pipeline_mode<synchronous>, transform_indices = @transform_8, window_bounds = array<i64: 8, 256>}, {pipeline_mode = #tpu.pipeline_mode<synchronous>, transform_indices = @transform_9, window_bounds = array<i64: 60, 256>}]} {
    %c0 = arith.constant 0 : index
    %c0_0 = arith.constant 0 : index
    %0 = vector.load %arg7[%c0, %c0_0] : memref<8x256xf32, #tpu.memory_space<vmem>>, vector<1x256xf32>
    %c1 = arith.constant 1 : index
    %c0_1 = arith.constant 0 : index
    %1 = vector.load %arg7[%c1, %c0_1] : memref<8x256xf32, #tpu.memory_space<vmem>>, vector<1x256xf32>
    %c2 = arith.constant 2 : index
    %c0_2 = arith.constant 0 : index
    %2 = vector.load %arg7[%c2, %c0_2] : memref<8x256xf32, #tpu.memory_space<vmem>>, vector<1x256xf32>
    %c3 = arith.constant 3 : index
    %c0_3 = arith.constant 0 : index
    %3 = vector.load %arg7[%c3, %c0_3] : memref<8x256xf32, #tpu.memory_space<vmem>>, vector<1x256xf32>
    %c4 = arith.constant 4 : index
    %c0_4 = arith.constant 0 : index
    %4 = vector.load %arg7[%c4, %c0_4] : memref<8x256xf32, #tpu.memory_space<vmem>>, vector<1x256xf32>
    %c0_5 = arith.constant 0 : index
    %c0_6 = arith.constant 0 : index
    %5 = vector.load %arg1[%c0_5, %c0_6] : memref<60x128xf32, #tpu.memory_space<vmem>>, vector<60x128xf32>
    %6 = arith.truncf %5 : vector<60x128xf32> to vector<60x128xbf16>
    %c0_7 = arith.constant 0 : index
    %c0_8 = arith.constant 0 : index
    %7 = vector.load %arg2[%c0_7, %c0_8] : memref<128x512xbf16, #tpu.memory_space<vmem>>, vector<128x512xbf16>
    %cst = arith.constant dense<0.000000e+00> : vector<60x512xf32>
    %8 = tpu.matmul %6, %7, %cst {dimension_numbers = #tpu.dot_dimension_numbers<[1], [0], [0], [1], [0, 0, 1, 1], [], []>} : vector<60x128xbf16>, vector<128x512xbf16>, vector<60x512xf32> -> vector<60x512xf32>
    %9 = vector.extract_strided_slice %8 {offsets = [0, 0], sizes = [60, 256], strides = [1, 1]} : vector<60x512xf32> to vector<60x256xf32>
    %10 = vector.broadcast %0 : vector<1x256xf32> to vector<60x256xf32>
    %11 = arith.addf %9, %10 : vector<60x256xf32>
    %cst_9 = arith.constant 0.000000e+00 : f32
    %12 = vector.broadcast %cst_9 : f32 to vector<60x256xf32>
    %13 = arith.maximumf %11, %12 : vector<60x256xf32>
    %14 = vector.extract_strided_slice %8 {offsets = [0, 256], sizes = [60, 256], strides = [1, 1]} : vector<60x512xf32> to vector<60x256xf32>
    %15 = arith.truncf %13 : vector<60x256xf32> to vector<60x256xbf16>
    %c0_10 = arith.constant 0 : index
    %c0_11 = arith.constant 0 : index
    %16 = vector.load %arg3[%c0_10, %c0_11] : memref<256x512xbf16, #tpu.memory_space<vmem>>, vector<256x512xbf16>
    %cst_12 = arith.constant dense<0.000000e+00> : vector<60x512xf32>
    %17 = tpu.matmul %15, %16, %cst_12 {dimension_numbers = #tpu.dot_dimension_numbers<[1], [0], [0], [1], [0, 0, 1, 1], [], []>} : vector<60x256xbf16>, vector<256x512xbf16>, vector<60x512xf32> -> vector<60x512xf32>
    %c0_13 = arith.constant 0 : index
    %c0_14 = arith.constant 0 : index
    %18 = vector.load %arg4[%c0_13, %c0_14] : memref<60x60xbf16, #tpu.memory_space<vmem>>, vector<60x60xbf16>
    %19 = vector.extract_strided_slice %17 {offsets = [0, 256], sizes = [60, 256], strides = [1, 1]} : vector<60x512xf32> to vector<60x256xf32>
    %20 = arith.truncf %19 : vector<60x256xf32> to vector<60x256xbf16>
    %cst_15 = arith.constant dense<0.000000e+00> : vector<60x256xf32>
    %21 = tpu.matmul %18, %20, %cst_15 {dimension_numbers = #tpu.dot_dimension_numbers<[1], [0], [0], [1], [0, 0, 1, 1], [], []>} : vector<60x60xbf16>, vector<60x256xbf16>, vector<60x256xf32> -> vector<60x256xf32>
    %22 = vector.extract_strided_slice %17 {offsets = [0, 0], sizes = [60, 256], strides = [1, 1]} : vector<60x512xf32> to vector<60x256xf32>
    %23 = arith.addf %22, %21 : vector<60x256xf32>
    %24 = vector.broadcast %1 : vector<1x256xf32> to vector<60x256xf32>
    %25 = arith.addf %23, %24 : vector<60x256xf32>
    %cst_16 = arith.constant 0.000000e+00 : f32
    %26 = vector.broadcast %cst_16 : f32 to vector<60x256xf32>
    %27 = arith.maximumf %25, %26 : vector<60x256xf32>
    %28 = arith.addf %27, %14 : vector<60x256xf32>
    %29 = vector.broadcast %2 : vector<1x256xf32> to vector<60x256xf32>
    %30 = arith.addf %28, %29 : vector<60x256xf32>
    %cst_17 = arith.constant 0.000000e+00 : f32
    %31 = vector.broadcast %cst_17 : f32 to vector<60x256xf32>
    %32 = arith.maximumf %30, %31 : vector<60x256xf32>
    %33 = arith.truncf %32 : vector<60x256xf32> to vector<60x256xbf16>
    %cst_18 = arith.constant -1.000000e+00 : f32
    %34 = vector.broadcast %cst_18 : f32 to vector<60x256xf32>
    %35 = arith.mulf %34, %32 : vector<60x256xf32>
    %c0_19 = arith.constant 0 : index
    %c0_20 = arith.constant 0 : index
    %36 = vector.load %arg5[%c0_19, %c0_20] : memref<256x256xbf16, #tpu.memory_space<vmem>>, vector<256x256xbf16>
    %cst_21 = arith.constant dense<0.000000e+00> : vector<60x256xf32>
    %37 = tpu.matmul %33, %36, %cst_21 {dimension_numbers = #tpu.dot_dimension_numbers<[1], [0], [0], [1], [0, 0, 1, 1], [], []>} : vector<60x256xbf16>, vector<256x256xbf16>, vector<60x256xf32> -> vector<60x256xf32>
    %38 = arith.addf %35, %37 : vector<60x256xf32>
    %c0_22 = arith.constant 0 : index
    %c0_23 = arith.constant 0 : index
    %39 = vector.load %arg6[%c0_22, %c0_23] : memref<60x60xbf16, #tpu.memory_space<vmem>>, vector<60x60xbf16>
    %cst_24 = arith.constant dense<0.000000e+00> : vector<60x256xf32>
    %40 = tpu.matmul %39, %33, %cst_24 {dimension_numbers = #tpu.dot_dimension_numbers<[1], [0], [0], [1], [0, 0, 1, 1], [], []>} : vector<60x60xbf16>, vector<60x256xbf16>, vector<60x256xf32> -> vector<60x256xf32>
    %41 = arith.addf %38, %40 : vector<60x256xf32>
    %cst_25 = arith.constant 0.000000e+00 : f32
    %42 = vector.broadcast %cst_25 : f32 to vector<60x256xf32>
    %43 = arith.maximumf %41, %42 : vector<60x256xf32>
    %cst_26 = arith.constant dense<0.000000e+00> : vector<256xf32>
    %44 = vector.multi_reduction <add>, %43, %cst_26 [0] : vector<60x256xf32> to vector<256xf32>
    %45 = vector.shape_cast %44 : vector<256xf32> to vector<1x256xf32>
    %c0_27 = arith.constant 0 : index
    %c0_28 = arith.constant 0 : index
    %46 = vector.load %arg8[%c0_27, %c0_28] : memref<256x8xf32, #tpu.memory_space<vmem>>, vector<256x8xf32>
    %cst_29 = arith.constant dense<0.000000e+00> : vector<1x8xf32>
    %47 = tpu.matmul %45, %46, %cst_29 {dimension_numbers = #tpu.dot_dimension_numbers<[1], [0], [0], [1], [0, 0, 1, 1], [], []>, precision = #tpu.contract_precision<fp32>} : vector<1x256xf32>, vector<256x8xf32>, vector<1x8xf32> -> vector<1x8xf32>
    %c0_30 = arith.constant 0 : index
    %c0_31 = arith.constant 0 : index
    %48 = vector.load %arg9[%c0_30, %c0_31] : memref<8x256xf32, #tpu.memory_space<vmem>>, vector<8x256xf32>
    %cst_32 = arith.constant dense<0.000000e+00> : vector<1x256xf32>
    %49 = tpu.matmul %47, %48, %cst_32 {dimension_numbers = #tpu.dot_dimension_numbers<[1], [0], [0], [1], [0, 0, 1, 1], [], []>, precision = #tpu.contract_precision<fp32>} : vector<1x8xf32>, vector<8x256xf32>, vector<1x256xf32> -> vector<1x256xf32>
    %50 = vector.broadcast %49 : vector<1x256xf32> to vector<60x256xf32>
    %51 = arith.subf %43, %50 : vector<60x256xf32>
    %52 = arith.mulf %51, %51 : vector<60x256xf32>
    %cst_33 = arith.constant dense<0.000000e+00> : vector<256xf32>
    %53 = vector.multi_reduction <add>, %52, %cst_33 [0] : vector<60x256xf32> to vector<256xf32>
    %54 = vector.shape_cast %53 : vector<256xf32> to vector<1x256xf32>
    %c0_34 = arith.constant 0 : index
    %c0_35 = arith.constant 0 : index
    %55 = vector.load %arg8[%c0_34, %c0_35] : memref<256x8xf32, #tpu.memory_space<vmem>>, vector<256x8xf32>
    %cst_36 = arith.constant dense<0.000000e+00> : vector<1x8xf32>
    %56 = tpu.matmul %54, %55, %cst_36 {dimension_numbers = #tpu.dot_dimension_numbers<[1], [0], [0], [1], [0, 0, 1, 1], [], []>, precision = #tpu.contract_precision<fp32>} : vector<1x256xf32>, vector<256x8xf32>, vector<1x8xf32> -> vector<1x8xf32>
    %cst_37 = arith.constant 9.99999974E-6 : f32
    %57 = vector.broadcast %cst_37 : f32 to vector<1x8xf32>
    %58 = arith.addf %56, %57 : vector<1x8xf32>
    %59 = math.rsqrt %58 : vector<1x8xf32>
    %c0_38 = arith.constant 0 : index
    %c0_39 = arith.constant 0 : index
    %60 = vector.load %arg9[%c0_38, %c0_39] : memref<8x256xf32, #tpu.memory_space<vmem>>, vector<8x256xf32>
    %cst_40 = arith.constant dense<0.000000e+00> : vector<1x256xf32>
    %61 = tpu.matmul %59, %60, %cst_40 {dimension_numbers = #tpu.dot_dimension_numbers<[1], [0], [0], [1], [0, 0, 1, 1], [], []>, precision = #tpu.contract_precision<fp32>} : vector<1x8xf32>, vector<8x256xf32>, vector<1x256xf32> -> vector<1x256xf32>
    %62 = arith.mulf %61, %3 : vector<1x256xf32>
    %63 = vector.broadcast %62 : vector<1x256xf32> to vector<60x256xf32>
    %64 = arith.mulf %51, %63 : vector<60x256xf32>
    %65 = vector.broadcast %4 : vector<1x256xf32> to vector<60x256xf32>
    %66 = arith.addf %64, %65 : vector<60x256xf32>
    %c0_41 = arith.constant 0 : index
    %c0_42 = arith.constant 0 : index
    %67 = vector.load %arg10[%c0_41, %c0_42] : memref<60x256xf32, #tpu.memory_space<vmem>>, vector<60x256xf32>
    tpu.vector_store %arg10[%c0_41, %c0_42], %66 {strides = array<i32>} : memref<60x256xf32, #tpu.memory_space<vmem>>, vector<60x256xf32>,
    return
  }
  func.func @transform_0(%arg0: i32) -> (i32, i32) {
    %c0_i32 = arith.constant 0 : i32
    %c0_i32_0 = arith.constant 0 : i32
    %c0_i32_1 = arith.constant 0 : i32
    return %c0_i32, %c0_i32_0 : i32, i32
  }
  func.func @transform_1(%arg0: i32) -> (i32, i32) {
    %c0_i32 = arith.constant 0 : i32
    %c0_i32_0 = arith.constant 0 : i32
    %c0_i32_1 = arith.constant 0 : i32
    return %c0_i32, %c0_i32_0 : i32, i32
  }
  func.func @transform_2(%arg0: i32) -> (i32, i32) {
    %c0_i32 = arith.constant 0 : i32
    %c0_i32_0 = arith.constant 0 : i32
    %c0_i32_1 = arith.constant 0 : i32
    return %c0_i32, %c0_i32_0 : i32, i32
  }
  func.func @transform_3(%arg0: i32) -> (i32, i32) {
    %c0_i32 = arith.constant 0 : i32
    %c0_i32_0 = arith.constant 0 : i32
    %c0_i32_1 = arith.constant 0 : i32
    return %c0_i32, %c0_i32_0 : i32, i32
  }
  func.func @transform_4(%arg0: i32) -> (i32, i32) {
    %c0_i32 = arith.constant 0 : i32
    %c0_i32_0 = arith.constant 0 : i32
    %c0_i32_1 = arith.constant 0 : i32
    return %c0_i32, %c0_i32_0 : i32, i32
  }
  func.func @transform_5(%arg0: i32) -> (i32, i32) {
    %c0_i32 = arith.constant 0 : i32
    %c0_i32_0 = arith.constant 0 : i32
    %c0_i32_1 = arith.constant 0 : i32
    return %c0_i32, %c0_i32_0 : i32, i32
  }
  func.func @transform_6(%arg0: i32) -> (i32, i32) {
    %c0_i32 = arith.constant 0 : i32
    %c0_i32_0 = arith.constant 0 : i32
    %c0_i32_1 = arith.constant 0 : i32
    return %c0_i32, %c0_i32_0 : i32, i32
  }
  func.func @transform_7(%arg0: i32) -> (i32, i32) {
    %c0_i32 = arith.constant 0 : i32
    %c0_i32_0 = arith.constant 0 : i32
    %c0_i32_1 = arith.constant 0 : i32
    return %c0_i32, %c0_i32_0 : i32, i32
  }
  func.func @transform_8(%arg0: i32) -> (i32, i32) {
    %c0_i32 = arith.constant 0 : i32
    %c0_i32_0 = arith.constant 0 : i32
    %c0_i32_1 = arith.constant 0 : i32
    return %c0_i32, %c0_i32_0 : i32, i32
  }
  func.func @transform_9(%arg0: i32) -> (i32, i32) {
    %c0_i32 = arith.constant 0 : i32
    %c0_i32_0 = arith.constant 0 : i32
    %c0_i32_1 = arith.constant 0 : i32
    return %c0_i32, %c0_i32_0 : i32, i32
  }
}

</mosaic_0001>

<llo_original>
// kernel: stgcn_block_forward.1
$region0: #{stgcn_block_forward.1}
  #allocation0 [shape = 'u32[]', space=smem, size = 0x4, offset = 0x4, fixed_abs, tag = 'smem constant byte address 0x4 - core index']
  #allocation1 [shape = 'u32[72,128]{1,0:T(1,128)}', space=vmem, size = 0x9000, scoped, tag = 'internal scratch']
  %s0 = inlined_call_operand.vmem [shape: f32[60,128], index: 0, kind: input, shape index: {}]
  %s1 = inlined_call_operand.vmem [shape: bf16[128,512], index: 1, kind: input, shape index: {}]
  %s2 = inlined_call_operand.hbm [shape: bf16[256,512], index: 2, kind: input, shape index: {}]
  %s3 = inlined_call_operand.vmem [shape: bf16[60,60], index: 3, kind: input, shape index: {}]
  %s4 = inlined_call_operand.vmem [shape: bf16[256,256], index: 4, kind: input, shape index: {}]
  %s5 = inlined_call_operand.vmem [shape: bf16[60,60], index: 5, kind: input, shape index: {}]
  %s6 = inlined_call_operand.vmem [shape: f32[8,256], index: 6, kind: input, shape index: {}]
  %s7 = inlined_call_operand.vmem [shape: f32[256,8], index: 7, kind: input, shape index: {}]
  %s8 = inlined_call_operand.vmem [shape: f32[8,256], index: 8, kind: input, shape index: {}]
  %s9 = inlined_call_operand.vmem [shape: f32[60,256], index: 9, kind: output, shape index: {}]
  %s10 = sld [smem:[#allocation0]]
  $region50: #{stgcn_block_forward.1} parent=0
    _
  %s12 = ssub.s32 1, %s10
  %s13 = scalar_select 0, %s12, %s10
  $region1: #{stgcn_block_forward.1} parent=0
    #allocation2 [shape = 'u8[262144]{0}', space=vmem, size = 0x40000, scoped, tag = 'input window, operand 2, single buffered']
    #allocation3 [shape = 's32[1]{0}', space=sflag, size = 0x4, scoped, tag = 'scoped memory for stgcn_block_forward.1']
    %14 = vsyncpa [#allocation3], 0
    // Predicated region
    $region2: #{stgcn_block_forward.1} parent=1 // pred_check
      _
    $region3: #{stgcn_block_forward.1} parent=1 // pred_check_branch
      %16 = sbr.rel (0) target = $region5
    $region4: #{stgcn_block_forward.1} parent=1 // pred_region
      _
    $region5: #{stgcn_block_forward.1} parent=1 // pred_fallthru
      _
    // Predicated region
    $region6: #{stgcn_block_forward.1} parent=1 // pred_check
      _
    $region7: #{stgcn_block_forward.1} parent=1 // pred_check_branch
      %18 = sbr.rel (0) target = $region9
    $region8: #{stgcn_block_forward.1} parent=1 // pred_region
      _
    $region9: #{stgcn_block_forward.1} parent=1 // pred_fallthru
      _
    // Predicated region
    $region10: #{stgcn_block_forward.1} parent=1 // pred_check
      _
    $region11: #{stgcn_block_forward.1} parent=1 // pred_check_branch
      %20 = sbr.rel (0) target = $region13
    $region12: #{stgcn_block_forward.1} parent=1 // pred_region
      %22 = vsyncadd [#allocation3], 0
      %s23 = sshll.u32 %s2, 4
      %s24 = int_to_ptr.hbm [resolvable:$true] %s23
      %s25 = sshll.u32 [#allocation2], 4
      %s26 = int_to_ptr.vmem [resolvable:$true] %s25
      %31 = dma.hbm_to_vmem [thread:$0]  %s24, 8192, %s26, [#allocation3], 256, 256, 16
    $region13: #{stgcn_block_forward.1} parent=1 // pred_fallthru
      _
    // Predicated region
    $region14: #{stgcn_block_forward.1} parent=1 // pred_check
      _
    $region15: #{stgcn_block_forward.1} parent=1 // pred_check_branch
      %33 = sbr.rel (0) target = $region17
    $region16: #{stgcn_block_forward.1} parent=1 // pred_region
      _
    $region17: #{stgcn_block_forward.1} parent=1 // pred_fallthru
      _
    // Predicated region
    $region18: #{stgcn_block_forward.1} parent=1 // pred_check
      _
    $region19: #{stgcn_block_forward.1} parent=1 // pred_check_branch
      %35 = sbr.rel (0) target = $region21
    $region20: #{stgcn_block_forward.1} parent=1 // pred_region
      _
    $region21: #{stgcn_block_forward.1} parent=1 // pred_fallthru
      _
    // Predicated region
    $region22: #{stgcn_block_forward.1} parent=1 // pred_check
      _
    $region23: #{stgcn_block_forward.1} parent=1 // pred_check_branch
      %37 = sbr.rel (0) target = $region25
    $region24: #{stgcn_block_forward.1} parent=1 // pred_region
      _
    $region25: #{stgcn_block_forward.1} parent=1 // pred_fallthru
      _
    // Predicated region
    $region26: #{stgcn_block_forward.1} parent=1 // pred_check
      _
    $region27: #{stgcn_block_forward.1} parent=1 // pred_check_branch
      %39 = sbr.rel (0) target = $region29
    $region28: #{stgcn_block_forward.1} parent=1 // pred_region
      _
    $region29: #{stgcn_block_forward.1} parent=1 // pred_fallthru
      _
    // Predicated region
    $region30: #{stgcn_block_forward.1} parent=1 // pred_check
      _
    $region31: #{stgcn_block_forward.1} parent=1 // pred_check_branch
      %41 = sbr.rel (0) target = $region33
    $region32: #{stgcn_block_forward.1} parent=1 // pred_region
      _
    $region33: #{stgcn_block_forward.1} parent=1 // pred_fallthru
      _
    // Predicated region
    $region34: #{stgcn_block_forward.1} parent=1 // pred_check
      _
    $region35: #{stgcn_block_forward.1} parent=1 // pred_check_branch
      %43 = sbr.rel (0) target = $region37
    $region36: #{stgcn_block_forward.1} parent=1 // pred_region
      _
    $region37: #{stgcn_block_forward.1} parent=1 // pred_fallthru
      _
    // Predicated region
    $region38: #{stgcn_block_forward.1} parent=1 // pred_check
      _
    $region39: #{stgcn_block_forward.1} parent=1 // pred_check_branch
      %45 = sbr.rel (0) target = $region41
    $region40: #{stgcn_block_forward.1} parent=1 // pred_region
      %47 = dma.done [#allocation3], 8192
    $region41: #{stgcn_block_forward.1} parent=1 // pred_fallthru
      _
    %v49 = vld [vmem:[%s6] ss:$8 sm:$0x3]
    %s50 = scalar_lea.vmem %s6, 1
    %v51 = vld [vmem:[%s50] ss:$8 sm:$0x3]
    %s52 = scalar_lea.vmem %s6, 2
    %v53 = vld [vmem:[%s52] ss:$8 sm:$0x3]
    %s54 = scalar_lea.vmem %s6, 3
    %v55 = vld [vmem:[%s54] ss:$8 sm:$0x3]
    %s56 = scalar_lea.vmem %s6, 4
    %v57 = vld [vmem:[%s56] ss:$8 sm:$0x3]
    %v58 = vld [vmem:[%s0] sm:$0xff]
    %v59 = vld [vmem:[%s0 + $0x8] sm:$0xff]
    %v60 = vld [vmem:[%s0 + $0x10] sm:$0xff]
    %v61 = vld [vmem:[%s0 + $0x18] sm:$0xff]
    %v62 = vld [vmem:[%s0 + $0x20] sm:$0xff]
    %v63 = vld [vmem:[%s0 + $0x28] sm:$0xff]
    %v64 = vld [vmem:[%s0 + $0x30] sm:$0xff]
    %v65 = vld [vmem:[%s0 + $0x38] sm:$0xf]
    %v66 = vpack.c.bf16 %v59, %v58
    %v67 = vpack.c.bf16 %v61, %v60
    %v68 = vpack.c.bf16 %v63, %v62
    %v69 = vpack.c.bf16 %v65, %v64
    %v70 = vld [vmem:[%s1] sm:$0xff]
    %v71 = vld [vmem:[%s1 + $0x8] sm:$0xff]
    %v72 = vld [vmem:[%s1 + $0x10] sm:$0xff]
    %v73 = vld [vmem:[%s1 + $0x18] sm:$0xff]
    %v74 = vld [vmem:[%s1 + $0x20] sm:$0xff]
    %v75 = vld [vmem:[%s1 + $0x28] sm:$0xff]
    %v76 = vld [vmem:[%s1 + $0x30] sm:$0xff]
    %v77 = vld [vmem:[%s1 + $0x38] sm:$0xff]
    %v78 = vld [vmem:[%s1 + $0x40] sm:$0xff]
    %v79 = vld [vmem:[%s1 + $0x48] sm:$0xff]
    %v80 = vld [vmem:[%s1 + $0x50] sm:$0xff]
    %v81 = vld [vmem:[%s1 + $0x58] sm:$0xff]
    %v82 = vld [vmem:[%s1 + $0x60] sm:$0xff]
    %v83 = vld [vmem:[%s1 + $0x68] sm:$0xff]
    %v84 = vld [vmem:[%s1 + $0x70] sm:$0xff]
    %v85 = vld [vmem:[%s1 + $0x78] sm:$0xff]
    %v86 = vld [vmem:[%s1 + $0x80] sm:$0xff]
    %v87 = vld [vmem:[%s1 + $0x88] sm:$0xff]
    %v88 = vld [vmem:[%s1 + $0x90] sm:$0xff]
    %v89 = vld [vmem:[%s1 + $0x98] sm:$0xff]
    %v90 = vld [vmem:[%s1 + $0xa0] sm:$0xff]
    %v91 = vld [vmem:[%s1 + $0xa8] sm:$0xff]
    %v92 = vld [vmem:[%s1 + $0xb0] sm:$0xff]
    %v93 = vld [vmem:[%s1 + $0xb8] sm:$0xff]
    %v94 = vld [vmem:[%s1 + $0xc0] sm:$0xff]
    %v95 = vld [vmem:[%s1 + $0xc8] sm:$0xff]
    %v96 = vld [vmem:[%s1 + $0xd0] sm:$0xff]
    %v97 = vld [vmem:[%s1 + $0xd8] sm:$0xff]
    %v98 = vld [vmem:[%s1 + $0xe0] sm:$0xff]
    %v99 = vld [vmem:[%s1 + $0xe8] sm:$0xff]
    %v100 = vld [vmem:[%s1 + $0xf0] sm:$0xff]
    %v101 = vld [vmem:[%s1 + $0xf8] sm:$0xff]
    %v134 = vunpack.c.l.b16 %v70
    %v135 = vunpack.c.h.b16 %v70
    %v136 = vunpack.c.l.b16 %v71
    %v137 = vunpack.c.h.b16 %v71
    %v138 = vunpack.c.l.b16 %v72
    %v139 = vunpack.c.h.b16 %v72
    %v140 = vunpack.c.l.b16 %v73
    %v141 = vunpack.c.h.b16 %v73
    %v142 = vunpack.c.l.b16 %v74
    %v143 = vunpack.c.h.b16 %v74
    %v144 = vunpack.c.l.b16 %v75
    %v145 = vunpack.c.h.b16 %v75
    %v146 = vunpack.c.l.b16 %v76
    %v147 = vunpack.c.h.b16 %v76
    %v148 = vunpack.c.l.b16 %v77
    %v149 = vunpack.c.h.b16 %v77
    %v150 = vunpack.c.l.b16 %v78
    %v151 = vunpack.c.h.b16 %v78
    %v152 = vunpack.c.l.b16 %v79
    %v153 = vunpack.c.h.b16 %v79
    %v154 = vunpack.c.l.b16 %v80
    %v155 = vunpack.c.h.b16 %v80
    %v156 = vunpack.c.l.b16 %v81
    %v157 = vunpack.c.h.b16 %v81
    %v158 = vunpack.c.l.b16 %v82
    %v159 = vunpack.c.h.b16 %v82
    %v160 = vunpack.c.l.b16 %v83
    %v161 = vunpack.c.h.b16 %v83
    %v162 = vunpack.c.l.b16 %v84
    %v163 = vunpack.c.h.b16 %v84
    %v164 = vunpack.c.l.b16 %v85
    %v165 = vunpack.c.h.b16 %v85
    %v166 = vunpack.c.l.b16 %v86
    %v167 = vunpack.c.h.b16 %v86
    %v168 = vunpack.c.l.b16 %v87
    %v169 = vunpack.c.h.b16 %v87
    %v170 = vunpack.c.l.b16 %v88
    %v171 = vunpack.c.h.b16 %v88
    %v172 = vunpack.c.l.b16 %v89
    %v173 = vunpack.c.h.b16 %v89
    %v174 = vunpack.c.l.b16 %v90
    %v175 = vunpack.c.h.b16 %v90
    %v176 = vunpack.c.l.b16 %v91
    %v177 = vunpack.c.h.b16 %v91
    %v178 = vunpack.c.l.b16 %v92
    %v179 = vunpack.c.h.b16 %v92
    %v180 = vunpack.c.l.b16 %v93
    %v181 = vunpack.c.h.b16 %v93
    %v182 = vunpack.c.l.b16 %v94
    %v183 = vunpack.c.h.b16 %v94
    %v184 = vunpack.c.l.b16 %v95
    %v185 = vunpack.c.h.b16 %v95
    %v186 = vunpack.c.l.b16 %v96
    %v187 = vunpack.c.h.b16 %v96
    %v188 = vunpack.c.l.b16 %v97
    %v189 = vunpack.c.h.b16 %v97
    %v190 = vunpack.c.l.b16 %v98
    %v191 = vunpack.c.h.b16 %v98
    %v192 = vunpack.c.l.b16 %v99
    %v193 = vunpack.c.h.b16 %v99
    %v194 = vunpack.c.l.b16 %v100
    %v195 = vunpack.c.h.b16 %v100
    %v196 = vunpack.c.l.b16 %v101
    %v197 = vunpack.c.h.b16 %v101
    %v198 = vpack.c.b16 %v138, %v134
    %v199 = vpack.c.b16 %v139, %v135
    %v200 = vpack.c.b16 %v140, %v136
    %v201 = vpack.c.b16 %v141, %v137
    %v202 = vpack.c.b16 %v146, %v142
    %v203 = vpack.c.b16 %v147, %v143
    %v204 = vpack.c.b16 %v148, %v144
    %v205 = vpack.c.b16 %v149, %v145
    %v206 = vpack.c.b16 %v154, %v150
    %v207 = vpack.c.b16 %v155, %v151
    %v208 = vpack.c.b16 %v156, %v152
    %v209 = vpack.c.b16 %v157, %v153
    %v210 = vpack.c.b16 %v162, %v158
    %v211 = vpack.c.b16 %v163, %v159
    %v212 = vpack.c.b16 %v164, %v160
    %v213 = vpack.c.b16 %v165, %v161
    %v214 = vpack.c.b16 %v170, %v166
    %v215 = vpack.c.b16 %v171, %v167
    %v216 = vpack.c.b16 %v172, %v168
    %v217 = vpack.c.b16 %v173, %v169
    %v218 = vpack.c.b16 %v178, %v174
    %v219 = vpack.c.b16 %v179, %v175
    %v220 = vpack.c.b16 %v180, %v176
    %v221 = vpack.c.b16 %v181, %v177
    %v222 = vpack.c.b16 %v186, %v182
    %v223 = vpack.c.b16 %v187, %v183
    %v224 = vpack.c.b16 %v188, %v184
    %v225 = vpack.c.b16 %v189, %v185
    %v226 = vpack.c.b16 %v194, %v190
    %v227 = vpack.c.b16 %v195, %v191
    %v228 = vpack.c.b16 %v196, %v192
    %v229 = vpack.c.b16 %v197, %v193
    %262 = vmatpush.bf16.msra.mxu0 %v226
    %263 = vmatpush.bf16.msra.mxu0 %v222
    %264 = vmatpush.bf16.msra.mxu0 %v218
    %265 = vmatpush.bf16.msra.mxu0 %v214
    %266 = vmatpush.bf16.msra.mxu0 %v210
    %267 = vmatpush.bf16.msra.mxu0 %v206
    %268 = vmatpush.bf16.msra.mxu0 %v202
    %269 = vmatpush.bf16.msra.mxu0 %v198
    %270 = vmatmul.bf16.gmra.mxu0 %v66
    %v271 = vpop.f32.mrf.mxu0
    %v272 = vadd.f32 0.0, %v271
    %v273 = vpop.f32.mrf.mxu0
    %v274 = vadd.f32 0.0, %v273
    %275 = vmatmul.bf16.gmra.mxu0 %v67
    %v276 = vpop.f32.mrf.mxu0
    %v277 = vadd.f32 0.0, %v276
    %v278 = vpop.f32.mrf.mxu0
    %v279 = vadd.f32 0.0, %v278
    %280 = vmatmul.bf16.gmra.mxu0 %v68
    %v281 = vpop.f32.mrf.mxu0
    %v282 = vadd.f32 0.0, %v281
    %v283 = vpop.f32.mrf.mxu0
    %v284 = vadd.f32 0.0, %v283
    %285 = vmatmul.bf16.gmra.mxu0 %v69
    %v286 = vpop.f32.mrf.mxu0
    %v287 = vadd.f32 0.0, %v286
    %v288 = vpop.f32.mrf.mxu0
    %v289 = vadd.f32 0.0, %v288
    %290 = vdwg.mxu0
    %291 = vmatpush.bf16.msra.mxu0 %v227
    %292 = vmatpush.bf16.msra.mxu0 %v223
    %293 = vmatpush.bf16.msra.mxu0 %v219
    %294 = vmatpush.bf16.msra.mxu0 %v215
    %295 = vmatpush.bf16.msra.mxu0 %v211
    %296 = vmatpush.bf16.msra.mxu0 %v207
    %297 = vmatpush.bf16.msra.mxu0 %v203
    %298 = vmatpush.bf16.msra.mxu0 %v199
    %299 = vmatmul.bf16.gmra.mxu0 %v66
    %v300 = vpop.f32.mrf.mxu0
    %v301 = vadd.f32 0.0, %v300
    %v302 = vpop.f32.mrf.mxu0
    %v303 = vadd.f32 0.0, %v302
    %304 = vmatmul.bf16.gmra.mxu0 %v67
    %v305 = vpop.f32.mrf.mxu0
    %v306 = vadd.f32 0.0, %v305
    %v307 = vpop.f32.mrf.mxu0
    %v308 = vadd.f32 0.0, %v307
    %309 = vmatmul.bf16.gmra.mxu0 %v68
    %v310 = vpop.f32.mrf.mxu0
    %v311 = vadd.f32 0.0, %v310
    %v312 = vpop.f32.mrf.mxu0
    %v313 = vadd.f32 0.0, %v312
    %314 = vmatmul.bf16.gmra.mxu0 %v69
    %v315 = vpop.f32.mrf.mxu0
    %v316 = vadd.f32 0.0, %v315
    %v317 = vpop.f32.mrf.mxu0
    %v318 = vadd.f32 0.0, %v317
    %319 = vdwg.mxu0
    %320 = vmatpush.bf16.msra.mxu0 %v228
    %321 = vmatpush.bf16.msra.mxu0 %v224
    %322 = vmatpush.bf16.msra.mxu0 %v220
    %323 = vmatpush.bf16.msra.mxu0 %v216
    %324 = vmatpush.bf16.msra.mxu0 %v212
    %325 = vmatpush.bf16.msra.mxu0 %v208
    %326 = vmatpush.bf16.msra.mxu0 %v204
    %327 = vmatpush.bf16.msra.mxu0 %v200
    %328 = vmatmul.bf16.gmra.mxu0 %v66
    %v329 = vpop.f32.mrf.mxu0
    %v330 = vadd.f32 0.0, %v329
    %v331 = vpop.f32.mrf.mxu0
    %v332 = vadd.f32 0.0, %v331
    %333 = vmatmul.bf16.gmra.mxu0 %v67
    %v334 = vpop.f32.mrf.mxu0
    %v335 = vadd.f32 0.0, %v334
    %v336 = vpop.f32.mrf.mxu0
    %v337 = vadd.f32 0.0, %v336
    %338 = vmatmul.bf16.gmra.mxu0 %v68
    %v339 = vpop.f32.mrf.mxu0
    %v340 = vadd.f32 0.0, %v339
    %v341 = vpop.f32.mrf.mxu0
    %v342 = vadd.f32 0.0, %v341
    %343 = vmatmul.bf16.gmra.mxu0 %v69
    %v344 = vpop.f32.mrf.mxu0
    %v345 = vadd.f32 0.0, %v344
    %v346 = vpop.f32.mrf.mxu0
    %v347 = vadd.f32 0.0, %v346
    %348 = vdwg.mxu0
    %349 = vmatpush.bf16.msra.mxu0 %v229
    %350 = vmatpush.bf16.msra.mxu0 %v225
    %351 = vmatpush.bf16.msra.mxu0 %v221
    %352 = vmatpush.bf16.msra.mxu0 %v217
    %353 = vmatpush.bf16.msra.mxu0 %v213
    %354 = vmatpush.bf16.msra.mxu0 %v209
    %355 = vmatpush.bf16.msra.mxu0 %v205
    %356 = vmatpush.bf16.msra.mxu0 %v201
    %357 = vmatmul.bf16.gmra.mxu0 %v66
    %v358 = vpop.f32.mrf.mxu0
    %v359 = vadd.f32 0.0, %v358
    %v360 = vpop.f32.mrf.mxu0
    %v361 = vadd.f32 0.0, %v360
    %362 = vmatmul.bf16.gmra.mxu0 %v67
    %v363 = vpop.f32.mrf.mxu0
    %v364 = vadd.f32 0.0, %v363
    %v365 = vpop.f32.mrf.mxu0
    %v366 = vadd.f32 0.0, %v365
    %367 = vmatmul.bf16.gmra.mxu0 %v68
    %v368 = vpop.f32.mrf.mxu0
    %v369 = vadd.f32 0.0, %v368
    %v370 = vpop.f32.mrf.mxu0
    %v371 = vadd.f32 0.0, %v370
    %372 = vmatmul.bf16.gmra.mxu0 %v69
    %v373 = vpop.f32.mrf.mxu0
    %v374 = vadd.f32 0.0, %v373
    %v375 = vpop.f32.mrf.mxu0
    %v376 = vadd.f32 0.0, %v375
    %377 = vdwg.mxu0
    %v379 = vperm.slane %v49, 0
    %v380 = vperm.slane %v49, 1
    %v383 = vadd.f32 %v272, %v379
    %v384 = vadd.f32 %v301, %v380
    %v385 = vadd.f32 %v274, %v379
    %v386 = vadd.f32 %v303, %v380
    %v387 = vadd.f32 %v277, %v379
    %v388 = vadd.f32 %v306, %v380
    %v389 = vadd.f32 %v279, %v379
    %v390 = vadd.f32 %v308, %v380
    %v391 = vadd.f32 %v282, %v379
    %v392 = vadd.f32 %v311, %v380
    %v393 = vadd.f32 %v284, %v379
    %v394 = vadd.f32 %v313, %v380
    %v395 = vadd.f32 %v287, %v379
    %v396 = vadd.f32 %v316, %v380
    %v397 = vadd.f32 %v289, %v379
    %v398 = vadd.f32 %v318, %v380
    %v399 = vmax.f32 %v383, 0.0
    %v400 = vmax.f32 %v384, 0.0
    %v401 = vmax.f32 %v385, 0.0
    %v402 = vmax.f32 %v386, 0.0
    %v403 = vmax.f32 %v387, 0.0
    %v404 = vmax.f32 %v388, 0.0
    %v405 = vmax.f32 %v389, 0.0
    %v406 = vmax.f32 %v390, 0.0
    %v407 = vmax.f32 %v391, 0.0
    %v408 = vmax.f32 %v392, 0.0
    %v409 = vmax.f32 %v393, 0.0
    %v410 = vmax.f32 %v394, 0.0
    %v411 = vmax.f32 %v395, 0.0
    %v412 = vmax.f32 %v396, 0.0
    %v413 = vmax.f32 %v397, 0.0
    %v414 = vmax.f32 %v398, 0.0
    %v415 = vpack.c.bf16 %v401, %v399
    %v416 = vpack.c.bf16 %v402, %v400
    %v417 = vpack.c.bf16 %v405, %v403
    %v418 = vpack.c.bf16 %v406, %v404
    %v419 = vpack.c.bf16 %v409, %v407
    %v420 = vpack.c.bf16 %v410, %v408
    %v421 = vpack.c.bf16 %v413, %v411
    %v422 = vpack.c.bf16 %v414, %v412
    %v423 = vld [vmem:[#allocation2] sm:$0xff]
    %v424 = vld [vmem:[#allocation2 + $0x8] sm:$0xff]
    %v425 = vld [vmem:[#allocation2 + $0x10] sm:$0xff]
    %v426 = vld [vmem:[#allocation2 + $0x18] sm:$0xff]
    %v427 = vld [vmem:[#allocation2 + $0x20] sm:$0xff]
    %v428 = vld [vmem:[#allocation2 + $0x28] sm:$0xff]
    %v429 = vld [vmem:[#allocation2 + $0x30] sm:$0xff]
    %v430 = vld [vmem:[#allocation2 + $0x38] sm:$0xff]
    %v431 = vld [vmem:[#allocation2 + $0x40] sm:$0xff]
    %v432 = vld [vmem:[#allocation2 + $0x48] sm:$0xff]
    %v433 = vld [vmem:[#allocation2 + $0x50] sm:$0xff]
    %v434 = vld [vmem:[#allocation2 + $0x58] sm:$0xff]
    %v435 = vld [vmem:[#allocation2 + $0x60] sm:$0xff]
    %v436 = vld [vmem:[#allocation2 + $0x68] sm:$0xff]
    %v437 = vld [vmem:[#allocation2 + $0x70] sm:$0xff]
    %v438 = vld [vmem:[#allocation2 + $0x78] sm:$0xff]
    %v439 = vld [vmem:[#allocation2 + $0x80] sm:$0xff]
    %v440 = vld [vmem:[#allocation2 + $0x88] sm:$0xff]
    %v441 = vld [vmem:[#allocation2 + $0x90] sm:$0xff]
    %v442 = vld [vmem:[#allocation2 + $0x98] sm:$0xff]
    %v443 = vld [vmem:[#allocation2 + $0xa0] sm:$0xff]
    %v444 = vld [vmem:[#allocation2 + $0xa8] sm:$0xff]
    %v445 = vld [vmem:[#allocation2 + $0xb0] sm:$0xff]
    %v446 = vld [vmem:[#allocation2 + $0xb8] sm:$0xff]
    %v447 = vld [vmem:[#allocation2 + $0xc0] sm:$0xff]
    %v448 = vld [vmem:[#allocation2 + $0xc8] sm:$0xff]
    %v449 = vld [vmem:[#allocation2 + $0xd0] sm:$0xff]
    %v450 = vld [vmem:[#allocation2 + $0xd8] sm:$0xff]
    %v451 = vld [vmem:[#allocation2 + $0xe0] sm:$0xff]
    %v452 = vld [vmem:[#allocation2 + $0xe8] sm:$0xff]
    %v453 = vld [vmem:[#allocation2 + $0xf0] sm:$0xff]
    %v454 = vld [vmem:[#allocation2 + $0xf8] sm:$0xff]
    %v455 = vld [vmem:[#allocation2 + $0x100] sm:$0xff]
    %v456 = vld [vmem:[#allocation2 + $0x108] sm:$0xff]
    %v457 = vld [vmem:[#allocation2 + $0x110] sm:$0xff]
    %v458 = vld [vmem:[#allocation2 + $0x118] sm:$0xff]
    %v459 = vld [vmem:[#allocation2 + $0x120] sm:$0xff]
    %v460 = vld [vmem:[#allocation2 + $0x128] sm:$0xff]
    %v461 = vld [vmem:[#allocation2 + $0x130] sm:$0xff]
    %v462 = vld [vmem:[#allocation2 + $0x138] sm:$0xff]
    %v463 = vld [vmem:[#allocation2 + $0x140] sm:$0xff]
    %v464 = vld [vmem:[#allocation2 + $0x148] sm:$0xff]
    %v465 = vld [vmem:[#allocation2 + $0x150] sm:$0xff]
    %v466 = vld [vmem:[#allocation2 + $0x158] sm:$0xff]
    %v467 = vld [vmem:[#allocation2 + $0x160] sm:$0xff]
    %v468 = vld [vmem:[#allocation2 + $0x168] sm:$0xff]
    %v469 = vld [vmem:[#allocation2 + $0x170] sm:$0xff]
    %v470 = vld [vmem:[#allocation2 + $0x178] sm:$0xff]
    %v471 = vld [vmem:[#allocation2 + $0x180] sm:$0xff]
    %v472 = vld [vmem:[#allocation2 + $0x188] sm:$0xff]
    %v473 = vld [vmem:[#allocation2 + $0x190] sm:$0xff]
    %v474 = vld [vmem:[#allocation2 + $0x198] sm:$0xff]
    %v475 = vld [vmem:[#allocation2 + $0x1a0] sm:$0xff]
    %v476 = vld [vmem:[#allocation2 + $0x1a8] sm:$0xff]
    %v477 = vld [vmem:[#allocation2 + $0x1b0] sm:$0xff]
    %v478 = vld [vmem:[#allocation2 + $0x1b8] sm:$0xff]
    %v479 = vld [vmem:[#allocation2 + $0x1c0] sm:$0xff]
    %v480 = vld [vmem:[#allocation2 + $0x1c8] sm:$0xff]
    %v481 = vld [vmem:[#allocation2 + $0x1d0] sm:$0xff]
    %v482 = vld [vmem:[#allocation2 + $0x1d8] sm:$0xff]
    %v483 = vld [vmem:[#allocation2 + $0x1e0] sm:$0xff]
    %v484 = vld [vmem:[#allocation2 + $0x1e8] sm:$0xff]
    %v485 = vld [vmem:[#allocation2 + $0x1f0] sm:$0xff]
    %v486 = vld [vmem:[#allocation2 + $0x1f8] sm:$0xff]
    %v551 = vunpack.c.l.b16 %v423
    %v552 = vunpack.c.h.b16 %v423
    %v553 = vunpack.c.l.b16 %v424
    %v554 = vunpack.c.h.b16 %v424
    %v555 = vunpack.c.l.b16 %v425
    %v556 = vunpack.c.h.b16 %v425
    %v557 = vunpack.c.l.b16 %v426
    %v558 = vunpack.c.h.b16 %v426
    %v559 = vunpack.c.l.b16 %v427
    %v560 = vunpack.c.h.b16 %v427
    %v561 = vunpack.c.l.b16 %v428
    %v562 = vunpack.c.h.b16 %v428
    %v563 = vunpack.c.l.b16 %v429
    %v564 = vunpack.c.h.b16 %v429
    %v565 = vunpack.c.l.b16 %v430
    %v566 = vunpack.c.h.b16 %v430
    %v567 = vunpack.c.l.b16 %v431
    %v568 = vunpack.c.h.b16 %v431
    %v569 = vunpack.c.l.b16 %v432
    %v570 = vunpack.c.h.b16 %v432
    %v571 = vunpack.c.l.b16 %v433
    %v572 = vunpack.c.h.b16 %v433
    %v573 = vunpack.c.l.b16 %v434
    %v574 = vunpack.c.h.b16 %v434
    %v575 = vunpack.c.l.b16 %v435
    %v576 = vunpack.c.h.b16 %v435
    %v577 = vunpack.c.l.b16 %v436
    %v578 = vunpack.c.h.b16 %v436
    %v579 = vunpack.c.l.b16 %v437
    %v580 = vunpack.c.h.b16 %v437
    %v581 = vunpack.c.l.b16 %v438
    %v582 = vunpack.c.h.b16 %v438
    %v583 = vunpack.c.l.b16 %v439
    %v584 = vunpack.c.h.b16 %v439
    %v585 = vunpack.c.l.b16 %v440
    %v586 = vunpack.c.h.b16 %v440
    %v587 = vunpack.c.l.b16 %v441
    %v588 = vunpack.c.h.b16 %v441
    %v589 = vunpack.c.l.b16 %v442
    %v590 = vunpack.c.h.b16 %v442
    %v591 = vunpack.c.l.b16 %v443
    %v592 = vunpack.c.h.b16 %v443
    %v593 = vunpack.c.l.b16 %v444
    %v594 = vunpack.c.h.b16 %v444
    %v595 = vunpack.c.l.b16 %v445
    %v596 = vunpack.c.h.b16 %v445
    %v597 = vunpack.c.l.b16 %v446
    %v598 = vunpack.c.h.b16 %v446
    %v599 = vunpack.c.l.b16 %v447
    %v600 = vunpack.c.h.b16 %v447
    %v601 = vunpack.c.l.b16 %v448
    %v602 = vunpack.c.h.b16 %v448
    %v603 = vunpack.c.l.b16 %v449
    %v604 = vunpack.c.h.b16 %v449
    %v605 = vunpack.c.l.b16 %v450
    %v606 = vunpack.c.h.b16 %v450
    %v607 = vunpack.c.l.b16 %v451
    %v608 = vunpack.c.h.b16 %v451
    %v609 = vunpack.c.l.b16 %v452
    %v610 = vunpack.c.h.b16 %v452
    %v611 = vunpack.c.l.b16 %v453
    %v612 = vunpack.c.h.b16 %v453
    %v613 = vunpack.c.l.b16 %v454
    %v614 = vunpack.c.h.b16 %v454
    %v615 = vunpack.c.l.b16 %v455
    %v616 = vunpack.c.h.b16 %v455
    %v617 = vunpack.c.l.b16 %v456
    %v618 = vunpack.c.h.b16 %v456
    %v619 = vunpack.c.l.b16 %v457
    %v620 = vunpack.c.h.b16 %v457
    %v621 = vunpack.c.l.b16 %v458
    %v622 = vunpack.c.h.b16 %v458
    %v623 = vunpack.c.l.b16 %v459
    %v624 = vunpack.c.h.b16 %v459
    %v625 = vunpack.c.l.b16 %v460
    %v626 = vunpack.c.h.b16 %v460
    %v627 = vunpack.c.l.b16 %v461
    %v628 = vunpack.c.h.b16 %v461
    %v629 = vunpack.c.l.b16 %v462
    %v630 = vunpack.c.h.b16 %v462
    %v631 = vunpack.c.l.b16 %v463
    %v632 = vunpack.c.h.b16 %v463
    %v633 = vunpack.c.l.b16 %v464
    %v634 = vunpack.c.h.b16 %v464
    %v635 = vunpack.c.l.b16 %v465
    %v636 = vunpack.c.h.b16 %v465
    %v637 = vunpack.c.l.b16 %v466
    %v638 = vunpack.c.h.b16 %v466
    %v639 = vunpack.c.l.b16 %v467
    %v640 = vunpack.c.h.b16 %v467
    %v641 = vunpack.c.l.b16 %v468
    %v642 = vunpack.c.h.b16 %v468
    %v643 = vunpack.c.l.b16 %v469
    %v644 = vunpack.c.h.b16 %v469
    %v645 = vunpack.c.l.b16 %v470
    %v646 = vunpack.c.h.b16 %v470
    %v647 = vunpack.c.l.b16 %v471
    %v648 = vunpack.c.h.b16 %v471
    %v649 = vunpack.c.l.b16 %v472
    %v650 = vunpack.c.h.b16 %v472
    %v651 = vunpack.c.l.b16 %v473
    %v652 = vunpack.c.h.b16 %v473
    %v653 = vunpack.c.l.b16 %v474
    %v654 = vunpack.c.h.b16 %v474
    %v655 = vunpack.c.l.b16 %v475
    %v656 = vunpack.c.h.b16 %v475
    %v657 = vunpack.c.l.b16 %v476
    %v658 = vunpack.c.h.b16 %v476
    %v659 = vunpack.c.l.b16 %v477
    %v660 = vunpack.c.h.b16 %v477
    %v661 = vunpack.c.l.b16 %v478
    %v662 = vunpack.c.h.b16 %v478
    %v663 = vunpack.c.l.b16 %v479
    %v664 = vunpack.c.h.b16 %v479
    %v665 = vunpack.c.l.b16 %v480
    %v666 = vunpack.c.h.b16 %v480
    %v667 = vunpack.c.l.b16 %v481
    %v668 = vunpack.c.h.b16 %v481
    %v669 = vunpack.c.l.b16 %v482
    %v670 = vunpack.c.h.b16 %v482
    %v671 = vunpack.c.l.b16 %v483
    %v672 = vunpack.c.h.b16 %v483
    %v673 = vunpack.c.l.b16 %v484
    %v674 = vunpack.c.h.b16 %v484
    %v675 = vunpack.c.l.b16 %v485
    %v676 = vunpack.c.h.b16 %v485
    %v677 = vunpack.c.l.b16 %v486
    %v678 = vunpack.c.h.b16 %v486
    %v679 = vpack.c.b16 %v555, %v551
    %v680 = vpack.c.b16 %v556, %v552
    %v681 = vpack.c.b16 %v557, %v553
    %v682 = vpack.c.b16 %v558, %v554
    %v683 = vpack.c.b16 %v563, %v559
    %v684 = vpack.c.b16 %v564, %v560
    %v685 = vpack.c.b16 %v565, %v561
    %v686 = vpack.c.b16 %v566, %v562
    %v687 = vpack.c.b16 %v571, %v567
    %v688 = vpack.c.b16 %v572, %v568
    %v689 = vpack.c.b16 %v573, %v569
    %v690 = vpack.c.b16 %v574, %v570
    %v691 = vpack.c.b16 %v579, %v575
    %v692 = vpack.c.b16 %v580, %v576
    %v693 = vpack.c.b16 %v581, %v577
    %v694 = vpack.c.b16 %v582, %v578
    %v695 = vpack.c.b16 %v587, %v583
    %v696 = vpack.c.b16 %v588, %v584
    %v697 = vpack.c.b16 %v589, %v585
    %v698 = vpack.c.b16 %v590, %v586
    %v699 = vpack.c.b16 %v595, %v591
    %v700 = vpack.c.b16 %v596, %v592
    %v701 = vpack.c.b16 %v597, %v593
    %v702 = vpack.c.b16 %v598, %v594
    %v703 = vpack.c.b16 %v603, %v599
    %v704 = vpack.c.b16 %v604, %v600
    %v705 = vpack.c.b16 %v605, %v601
    %v706 = vpack.c.b16 %v606, %v602
    %v707 = vpack.c.b16 %v611, %v607
    %v708 = vpack.c.b16 %v612, %v608
    %v709 = vpack.c.b16 %v613, %v609
    %v710 = vpack.c.b16 %v614, %v610
    %v711 = vpack.c.b16 %v619, %v615
    %v712 = vpack.c.b16 %v620, %v616
    %v713 = vpack.c.b16 %v621, %v617
    %v714 = vpack.c.b16 %v622, %v618
    %v715 = vpack.c.b16 %v627, %v623
    %v716 = vpack.c.b16 %v628, %v624
    %v717 = vpack.c.b16 %v629, %v625
    %v718 = vpack.c.b16 %v630, %v626
    %v719 = vpack.c.b16 %v635, %v631
    %v720 = vpack.c.b16 %v636, %v632
    %v721 = vpack.c.b16 %v637, %v633
    %v722 = vpack.c.b16 %v638, %v634
    %v723 = vpack.c.b16 %v643, %v639
    %v724 = vpack.c.b16 %v644, %v640
    %v725 = vpack.c.b16 %v645, %v641
    %v726 = vpack.c.b16 %v646, %v642
    %v727 = vpack.c.b16 %v651, %v647
    %v728 = vpack.c.b16 %v652, %v648
    %v729 = vpack.c.b16 %v653, %v649
    %v730 = vpack.c.b16 %v654, %v650
    %v731 = vpack.c.b16 %v659, %v655
    %v732 = vpack.c.b16 %v660, %v656
    %v733 = vpack.c.b16 %v661, %v657
    %v734 = vpack.c.b16 %v662, %v658
    %v735 = vpack.c.b16 %v667, %v663
    %v736 = vpack.c.b16 %v668, %v664
    %v737 = vpack.c.b16 %v669, %v665
    %v738 = vpack.c.b16 %v670, %v666
    %v739 = vpack.c.b16 %v675, %v671
    %v740 = vpack.c.b16 %v676, %v672
    %v741 = vpack.c.b16 %v677, %v673
    %v742 = vpack.c.b16 %v678, %v674
    %807 = vmatpush.bf16.msra.mxu0 %v707
    %808 = vmatpush.bf16.msra.mxu0 %v703
    %809 = vmatpush.bf16.msra.mxu0 %v699
    %810 = vmatpush.bf16.msra.mxu0 %v695
    %811 = vmatpush.bf16.msra.mxu0 %v691
    %812 = vmatpush.bf16.msra.mxu0 %v687
    %813 = vmatpush.bf16.msra.mxu0 %v683
    %814 = vmatpush.bf16.msra.mxu0 %v679
    %815 = vmatmul.bf16.gmra.mxu0 %v415
    %v816 = vpop.f32.mrf.mxu0
    %v817 = vadd.f32 0.0, %v816
    %v818 = vpop.f32.mrf.mxu0
    %v819 = vadd.f32 0.0, %v818
    %820 = vmatmul.bf16.gmra.mxu0 %v417
    %v821 = vpop.f32.mrf.mxu0
    %v822 = vadd.f32 0.0, %v821
    %v823 = vpop.f32.mrf.mxu0
    %v824 = vadd.f32 0.0, %v823
    %825 = vmatmul.bf16.gmra.mxu0 %v419
    %v826 = vpop.f32.mrf.mxu0
    %v827 = vadd.f32 0.0, %v826
    %v828 = vpop.f32.mrf.mxu0
    %v829 = vadd.f32 0.0, %v828
    %830 = vmatmul.bf16.gmra.mxu0 %v421
    %v831 = vpop.f32.mrf.mxu0
    %v832 = vadd.f32 0.0, %v831
    %v833 = vpop.f32.mrf.mxu0
    %v834 = vadd.f32 0.0, %v833
    %835 = vdwg.mxu0
    %836 = vmatpush.bf16.msra.mxu0 %v739
    %837 = vmatpush.bf16.msra.mxu0 %v735
    %838 = vmatpush.bf16.msra.mxu0 %v731
    %839 = vmatpush.bf16.msra.mxu0 %v727
    %840 = vmatpush.bf16.msra.mxu0 %v723
    %841 = vmatpush.bf16.msra.mxu0 %v719
    %842 = vmatpush.bf16.msra.mxu0 %v715
    %843 = vmatpush.bf16.msra.mxu0 %v711
    %844 = vmatmul.bf16.gmra.mxu0 %v416
    %v845 = vpop.f32.mrf.mxu0
    %v846 = vadd.f32 %v817, %v845
    %v847 = vpop.f32.mrf.mxu0
    %v848 = vadd.f32 %v819, %v847
    %849 = vmatmul.bf16.gmra.mxu0 %v418
    %v850 = vpop.f32.mrf.mxu0
    %v851 = vadd.f32 %v822, %v850
    %v852 = vpop.f32.mrf.mxu0
    %v853 = vadd.f32 %v824, %v852
    %854 = vmatmul.bf16.gmra.mxu0 %v420
    %v855 = vpop.f32.mrf.mxu0
    %v856 = vadd.f32 %v827, %v855
    %v857 = vpop.f32.mrf.mxu0
    %v858 = vadd.f32 %v829, %v857
    %859 = vmatmul.bf16.gmra.mxu0 %v422
    %v860 = vpop.f32.mrf.mxu0
    %v861 = vadd.f32 %v832, %v860
    %v862 = vpop.f32.mrf.mxu0
    %v863 = vadd.f32 %v834, %v862
    %864 = vdwg.mxu0
    %865 = vmatpush.bf16.msra.mxu0 %v708
    %866 = vmatpush.bf16.msra.mxu0 %v704
    %867 = vmatpush.bf16.msra.mxu0 %v700
    %868 = vmatpush.bf16.msra.mxu0 %v696
    %869 = vmatpush.bf16.msra.mxu0 %v692
    %870 = vmatpush.bf16.msra.mxu0 %v688
    %871 = vmatpush.bf16.msra.mxu0 %v684
    %872 = vmatpush.bf16.msra.mxu0 %v680
    %873 = vmatmul.bf16.gmra.mxu0 %v415
    %v874 = vpop.f32.mrf.mxu0
    %v875 = vadd.f32 0.0, %v874
    %v876 = vpop.f32.mrf.mxu0
    %v877 = vadd.f32 0.0, %v876
    %878 = vmatmul.bf16.gmra.mxu0 %v417
    %v879 = vpop.f32.mrf.mxu0
    %v880 = vadd.f32 0.0, %v879
    %v881 = vpop.f32.mrf.mxu0
    %v882 = vadd.f32 0.0, %v881
    %883 = vmatmul.bf16.gmra.mxu0 %v419
    %v884 = vpop.f32.mrf.mxu0
    %v885 = vadd.f32 0.0, %v884
    %v886 = vpop.f32.mrf.mxu0
    %v887 = vadd.f32 0.0, %v886
    %888 = vmatmul.bf16.gmra.mxu0 %v421
    %v889 = vpop.f32.mrf.mxu0
    %v890 = vadd.f32 0.0, %v889
    %v891 = vpop.f32.mrf.mxu0
    %v892 = vadd.f32 0.0, %v891
    %893 = vdwg.mxu0
    %894 = vmatpush.bf16.msra.mxu0 %v740
    %895 = vmatpush.bf16.msra.mxu0 %v736
    %896 = vmatpush.bf16.msra.mxu0 %v732
    %897 = vmatpush.bf16.msra.mxu0 %v728
    %898 = vmatpush.bf16.msra.mxu0 %v724
    %899 = vmatpush.bf16.msra.mxu0 %v720
    %900 = vmatpush.bf16.msra.mxu0 %v716
    %901 = vmatpush.bf16.msra.mxu0 %v712
    %902 = vmatmul.bf16.gmra.mxu0 %v416
    %v903 = vpop.f32.mrf.mxu0
    %v904 = vadd.f32 %v875, %v903
    %v905 = vpop.f32.mrf.mxu0
    %v906 = vadd.f32 %v877, %v905
    %907 = vmatmul.bf16.gmra.mxu0 %v418
    %v908 = vpop.f32.mrf.mxu0
    %v909 = vadd.f32 %v880, %v908
    %v910 = vpop.f32.mrf.mxu0
    %v911 = vadd.f32 %v882, %v910
    %912 = vmatmul.bf16.gmra.mxu0 %v420
    %v913 = vpop.f32.mrf.mxu0
    %v914 = vadd.f32 %v885, %v913
    %v915 = vpop.f32.mrf.mxu0
    %v916 = vadd.f32 %v887, %v915
    %917 = vmatmul.bf16.gmra.mxu0 %v422
    %v918 = vpop.f32.mrf.mxu0
    %v919 = vadd.f32 %v890, %v918
    %v920 = vpop.f32.mrf.mxu0
    %v921 = vadd.f32 %v892, %v920
    %922 = vdwg.mxu0
    %923 = vmatpush.bf16.msra.mxu0 %v709
    %924 = vmatpush.bf16.msra.mxu0 %v705
    %925 = vmatpush.bf16.msra.mxu0 %v701
    %926 = vmatpush.bf16.msra.mxu0 %v697
    %927 = vmatpush.bf16.msra.mxu0 %v693
    %928 = vmatpush.bf16.msra.mxu0 %v689
    %929 = vmatpush.bf16.msra.mxu0 %v685
    %930 = vmatpush.bf16.msra.mxu0 %v681
    %931 = vmatmul.bf16.gmra.mxu0 %v415
    %v932 = vpop.f32.mrf.mxu0
    %v933 = vadd.f32 0.0, %v932
    %v934 = vpop.f32.mrf.mxu0
    %v935 = vadd.f32 0.0, %v934
    %936 = vmatmul.bf16.gmra.mxu0 %v417
    %v937 = vpop.f32.mrf.mxu0
    %v938 = vadd.f32 0.0, %v937
    %v939 = vpop.f32.mrf.mxu0
    %v940 = vadd.f32 0.0, %v939
    %941 = vmatmul.bf16.gmra.mxu0 %v419
    %v942 = vpop.f32.mrf.mxu0
    %v943 = vadd.f32 0.0, %v942
    %v944 = vpop.f32.mrf.mxu0
    %v945 = vadd.f32 0.0, %v944
    %946 = vmatmul.bf16.gmra.mxu0 %v421
    %v947 = vpop.f32.mrf.mxu0
    %v948 = vadd.f32 0.0, %v947
    %v949 = vpop.f32.mrf.mxu0
    %v950 = vadd.f32 0.0, %v949
    %951 = vdwg.mxu0
    %952 = vmatpush.bf16.msra.mxu0 %v741
    %953 = vmatpush.bf16.msra.mxu0 %v737
    %954 = vmatpush.bf16.msra.mxu0 %v733
    %955 = vmatpush.bf16.msra.mxu0 %v729
    %956 = vmatpush.bf16.msra.mxu0 %v725
    %957 = vmatpush.bf16.msra.mxu0 %v721
    %958 = vmatpush.bf16.msra.mxu0 %v717
    %959 = vmatpush.bf16.msra.mxu0 %v713
    %960 = vmatmul.bf16.gmra.mxu0 %v416
    %v961 = vpop.f32.mrf.mxu0
    %v962 = vadd.f32 %v933, %v961
    %v963 = vpop.f32.mrf.mxu0
    %v964 = vadd.f32 %v935, %v963
    %965 = vmatmul.bf16.gmra.mxu0 %v418
    %v966 = vpop.f32.mrf.mxu0
    %v967 = vadd.f32 %v938, %v966
    %v968 = vpop.f32.mrf.mxu0
    %v969 = vadd.f32 %v940, %v968
    %970 = vmatmul.bf16.gmra.mxu0 %v420
    %v971 = vpop.f32.mrf.mxu0
    %v972 = vadd.f32 %v943, %v971
    %v973 = vpop.f32.mrf.mxu0
    %v974 = vadd.f32 %v945, %v973
    %975 = vmatmul.bf16.gmra.mxu0 %v422
    %v976 = vpop.f32.mrf.mxu0
    %v977 = vadd.f32 %v948, %v976
    %v978 = vpop.f32.mrf.mxu0
    %v979 = vadd.f32 %v950, %v978
    %980 = vdwg.mxu0
    %981 = vmatpush.bf16.msra.mxu0 %v710
    %982 = vmatpush.bf16.msra.mxu0 %v706
    %983 = vmatpush.bf16.msra.mxu0 %v702
    %984 = vmatpush.bf16.msra.mxu0 %v698
    %985 = vmatpush.bf16.msra.mxu0 %v694
    %986 = vmatpush.bf16.msra.mxu0 %v690
    %987 = vmatpush.bf16.msra.mxu0 %v686
    %988 = vmatpush.bf16.msra.mxu0 %v682
    %989 = vmatmul.bf16.gmra.mxu0 %v415
    %v990 = vpop.f32.mrf.mxu0
    %v991 = vadd.f32 0.0, %v990
    %v992 = vpop.f32.mrf.mxu0
    %v993 = vadd.f32 0.0, %v992
    %994 = vmatmul.bf16.gmra.mxu0 %v417
    %v995 = vpop.f32.mrf.mxu0
    %v996 = vadd.f32 0.0, %v995
    %v997 = vpop.f32.mrf.mxu0
    %v998 = vadd.f32 0.0, %v997
    %999 = vmatmul.bf16.gmra.mxu0 %v419
    %v1000 = vpop.f32.mrf.mxu0
    %v1001 = vadd.f32 0.0, %v1000
    %v1002 = vpop.f32.mrf.mxu0
    %v1003 = vadd.f32 0.0, %v1002
    %1004 = vmatmul.bf16.gmra.mxu0 %v421
    %v1005 = vpop.f32.mrf.mxu0
    %v1006 = vadd.f32 0.0, %v1005
    %v1007 = vpop.f32.mrf.mxu0
    %v1008 = vadd.f32 0.0, %v1007
    %1009 = vdwg.mxu0
    %1010 = vmatpush.bf16.msra.mxu0 %v742
    %1011 = vmatpush.bf16.msra.mxu0 %v738
    %1012 = vmatpush.bf16.msra.mxu0 %v734
    %1013 = vmatpush.bf16.msra.mxu0 %v730
    %1014 = vmatpush.bf16.msra.mxu0 %v726
    %1015 = vmatpush.bf16.msra.mxu0 %v722
    %1016 = vmatpush.bf16.msra.mxu0 %v718
    %1017 = vmatpush.bf16.msra.mxu0 %v714
    %1018 = vmatmul.bf16.gmra.mxu0 %v416
    %v1019 = vpop.f32.mrf.mxu0
    %v1020 = vadd.f32 %v991, %v1019
    %v1021 = vpop.f32.mrf.mxu0
    %v1022 = vadd.f32 %v993, %v1021
    %1023 = vmatmul.bf16.gmra.mxu0 %v418
    %v1024 = vpop.f32.mrf.mxu0
    %v1025 = vadd.f32 %v996, %v1024
    %v1026 = vpop.f32.mrf.mxu0
    %v1027 = vadd.f32 %v998, %v1026
    %1028 = vmatmul.bf16.gmra.mxu0 %v420
    %v1029 = vpop.f32.mrf.mxu0
    %v1030 = vadd.f32 %v1001, %v1029
    %v1031 = vpop.f32.mrf.mxu0
    %v1032 = vadd.f32 %v1003, %v1031
    %1033 = vmatmul.bf16.gmra.mxu0 %v422
    %v1034 = vpop.f32.mrf.mxu0
    %v1035 = vadd.f32 %v1006, %v1034
    %v1036 = vpop.f32.mrf.mxu0
    %v1037 = vadd.f32 %v1008, %v1036
    %1038 = vdwg.mxu0
    %v1039 = vld [vmem:[%s3] sm:$0xf]
    %v1040 = vld [vmem:[%s3 + $0x4] sm:$0xf]
    %v1041 = vld [vmem:[%s3 + $0x8] sm:$0xf]
    %v1042 = vld [vmem:[%s3 + $0xc] sm:$0xf]
    %v1043 = vld [vmem:[%s3 + $0x10] sm:$0xf]
    %v1044 = vld [vmem:[%s3 + $0x14] sm:$0xf]
    %v1045 = vld [vmem:[%s3 + $0x18] sm:$0xf]
    %v1046 = vld [vmem:[%s3 + $0x1c] sm:$0x3]
    %v1047 = vpack.c.bf16 %v964, %v962
    %v1048 = vpack.c.bf16 %v1022, %v1020
    %v1049 = vpack.c.bf16 %v969, %v967
    %v1050 = vpack.c.bf16 %v1027, %v1025
    %v1051 = vpack.c.bf16 %v974, %v972
    %v1052 = vpack.c.bf16 %v1032, %v1030
    %v1053 = vpack.c.bf16 %v979, %v977
    %v1054 = vpack.c.bf16 %v1037, %v1035
    %v1063 = vunpack.c.l.b16 %v1039
    %v1064 = vunpack.c.l.b16 %v1040
    %v1065 = vunpack.c.l.b16 %v1041
    %v1066 = vunpack.c.l.b16 %v1042
    %v1067 = vunpack.c.l.b16 %v1043
    %v1068 = vunpack.c.l.b16 %v1044
    %v1069 = vunpack.c.l.b16 %v1045
    %v1070 = vunpack.c.l.b16 %v1046
    %v1071 = vpack.c.b16 %v1064, %v1063
    %v1072 = vpack.c.b16 %v1066, %v1065
    %v1073 = vpack.c.b16 %v1068, %v1067
    %v1074 = vpack.c.b16 %v1070, %v1069
    %vm1075 = vcmask 490496
    %v1077 = vsel %vm1075, %v1071, 0
    %v1080 = vsel %vm1075, %v1072, 0
    %v1083 = vsel %vm1075, %v1073, 0
    %v1086 = vsel %vm1075, %v1074, 0
    %vm1088 = vcmask 1045504
    %v1090 = vsel %vm1088, %v1053, 0
    %v1093 = vsel %vm1088, %v1054, 0
    %1095 = vmatpush.bf16.msra.mxu0 0
    %1096 = vmatpush.bf16.msra.mxu0 0
    %1097 = vmatpush.bf16.msra.mxu0 0
    %1098 = vmatpush.bf16.msra.mxu0 0
    %1099 = vmatpush.bf16.msra.mxu0 %v1090
    %1100 = vmatpush.bf16.msra.mxu0 %v1051
    %1101 = vmatpush.bf16.msra.mxu0 %v1049
    %1102 = vmatpush.bf16.msra.mxu0 %v1047
    %1103 = vmatmul.bf16.gmra.mxu0 %v1077
    %v1104 = vpop.f32.mrf.mxu0
    %v1105 = vadd.f32 0.0, %v1104
    %v1106 = vpop.f32.mrf.mxu0
    %v1107 = vadd.f32 0.0, %v1106
    %1108 = vmatmul.bf16.gmra.mxu0 %v1080
    %v1109 = vpop.f32.mrf.mxu0
    %v1110 = vadd.f32 0.0, %v1109
    %v1111 = vpop.f32.mrf.mxu0
    %v1112 = vadd.f32 0.0, %v1111
    %1113 = vmatmul.bf16.gmra.mxu0 %v1083
    %v1114 = vpop.f32.mrf.mxu0
    %v1115 = vadd.f32 0.0, %v1114
    %v1116 = vpop.f32.mrf.mxu0
    %v1117 = vadd.f32 0.0, %v1116
    %1118 = vmatmul.bf16.gmra.mxu0 %v1086
    %v1119 = vpop.f32.mrf.mxu0
    %v1120 = vadd.f32 0.0, %v1119
    %v1121 = vpop.f32.mrf.mxu0
    %v1122 = vadd.f32 0.0, %v1121
    %1123 = vdwg.mxu0
    %1124 = vmatpush.bf16.msra.mxu0 0
    %1125 = vmatpush.bf16.msra.mxu0 0
    %1126 = vmatpush.bf16.msra.mxu0 0
    %1127 = vmatpush.bf16.msra.mxu0 0
    %1128 = vmatpush.bf16.msra.mxu0 %v1093
    %1129 = vmatpush.bf16.msra.mxu0 %v1052
    %1130 = vmatpush.bf16.msra.mxu0 %v1050
    %1131 = vmatpush.bf16.msra.mxu0 %v1048
    %1132 = vmatmul.bf16.gmra.mxu0 %v1077
    %v1133 = vpop.f32.mrf.mxu0
    %v1134 = vadd.f32 0.0, %v1133
    %v1135 = vpop.f32.mrf.mxu0
    %v1136 = vadd.f32 0.0, %v1135
    %1137 = vmatmul.bf16.gmra.mxu0 %v1080
    %v1138 = vpop.f32.mrf.mxu0
    %v1139 = vadd.f32 0.0, %v1138
    %v1140 = vpop.f32.mrf.mxu0
    %v1141 = vadd.f32 0.0, %v1140
    %1142 = vmatmul.bf16.gmra.mxu0 %v1083
    %v1143 = vpop.f32.mrf.mxu0
    %v1144 = vadd.f32 0.0, %v1143
    %v1145 = vpop.f32.mrf.mxu0
    %v1146 = vadd.f32 0.0, %v1145
    %1147 = vmatmul.bf16.gmra.mxu0 %v1086
    %v1148 = vpop.f32.mrf.mxu0
    %v1149 = vadd.f32 0.0, %v1148
    %v1150 = vpop.f32.mrf.mxu0
    %v1151 = vadd.f32 0.0, %v1150
    %1152 = vdwg.mxu0
    %v1153 = vadd.f32 %v846, %v1105
    %v1154 = vadd.f32 %v904, %v1134
    %v1155 = vadd.f32 %v848, %v1107
    %v1156 = vadd.f32 %v906, %v1136
    %v1157 = vadd.f32 %v851, %v1110
    %v1158 = vadd.f32 %v909, %v1139
    %v1159 = vadd.f32 %v853, %v1112
    %v1160 = vadd.f32 %v911, %v1141
    %v1161 = vadd.f32 %v856, %v1115
    %v1162 = vadd.f32 %v914, %v1144
    %v1163 = vadd.f32 %v858, %v1117
    %v1164 = vadd.f32 %v916, %v1146
    %v1165 = vadd.f32 %v861, %v1120
    %v1166 = vadd.f32 %v919, %v1149
    %v1167 = vadd.f32 %v863, %v1122
    %v1168 = vadd.f32 %v921, %v1151
    %v1170 = vperm.slane %v51, 0
    %v1171 = vperm.slane %v51, 1
    %v1174 = vadd.f32 %v1153, %v1170
    %v1175 = vadd.f32 %v1154, %v1171
    %v1176 = vadd.f32 %v1155, %v1170
    %v1177 = vadd.f32 %v1156, %v1171
    %v1178 = vadd.f32 %v1157, %v1170
    %v1179 = vadd.f32 %v1158, %v1171
    %v1180 = vadd.f32 %v1159, %v1170
    %v1181 = vadd.f32 %v1160, %v1171
    %v1182 = vadd.f32 %v1161, %v1170
    %v1183 = vadd.f32 %v1162, %v1171
    %v1184 = vadd.f32 %v1163, %v1170
    %v1185 = vadd.f32 %v1164, %v1171
    %v1186 = vadd.f32 %v1165, %v1170
    %v1187 = vadd.f32 %v1166, %v1171
    %v1188 = vadd.f32 %v1167, %v1170
    %v1189 = vadd.f32 %v1168, %v1171
    %v1190 = vmax.f32 %v1174, 0.0
    %v1191 = vmax.f32 %v1175, 0.0
    %v1192 = vmax.f32 %v1176, 0.0
    %v1193 = vmax.f32 %v1177, 0.0
    %v1194 = vmax.f32 %v1178, 0.0
    %v1195 = vmax.f32 %v1179, 0.0
    %v1196 = vmax.f32 %v1180, 0.0
    %v1197 = vmax.f32 %v1181, 0.0
    %v1198 = vmax.f32 %v1182, 0.0
    %v1199 = vmax.f32 %v1183, 0.0
    %v1200 = vmax.f32 %v1184, 0.0
    %v1201 = vmax.f32 %v1185, 0.0
    %v1202 = vmax.f32 %v1186, 0.0
    %v1203 = vmax.f32 %v1187, 0.0
    %v1204 = vmax.f32 %v1188, 0.0
    %v1205 = vmax.f32 %v1189, 0.0
    %v1206 = vadd.f32 %v1190, %v330
    %v1207 = vadd.f32 %v1191, %v359
    %v1208 = vadd.f32 %v1192, %v332
    %v1209 = vadd.f32 %v1193, %v361
    %v1210 = vadd.f32 %v1194, %v335
    %v1211 = vadd.f32 %v1195, %v364
    %v1212 = vadd.f32 %v1196, %v337
    %v1213 = vadd.f32 %v1197, %v366
    %v1214 = vadd.f32 %v1198, %v340
    %v1215 = vadd.f32 %v1199, %v369
    %v1216 = vadd.f32 %v1200, %v342
    %v1217 = vadd.f32 %v1201, %v371
    %v1218 = vadd.f32 %v1202, %v345
    %v1219 = vadd.f32 %v1203, %v374
    %v1220 = vadd.f32 %v1204, %v347
    %v1221 = vadd.f32 %v1205, %v376
    %v1223 = vperm.slane %v53, 0
    %v1224 = vperm.slane %v53, 1
    %v1227 = vadd.f32 %v1206, %v1223
    %v1228 = vadd.f32 %v1207, %v1224
    %v1229 = vadd.f32 %v1208, %v1223
    %v1230 = vadd.f32 %v1209, %v1224
    %v1231 = vadd.f32 %v1210, %v1223
    %v1232 = vadd.f32 %v1211, %v1224
    %v1233 = vadd.f32 %v1212, %v1223
    %v1234 = vadd.f32 %v1213, %v1224
    %v1235 = vadd.f32 %v1214, %v1223
    %v1236 = vadd.f32 %v1215, %v1224
    %v1237 = vadd.f32 %v1216, %v1223
    %v1238 = vadd.f32 %v1217, %v1224
    %v1239 = vadd.f32 %v1218, %v1223
    %v1240 = vadd.f32 %v1219, %v1224
    %v1241 = vadd.f32 %v1220, %v1223
    %v1242 = vadd.f32 %v1221, %v1224
    %v1243 = vmax.f32 %v1227, 0.0
    %v1244 = vmax.f32 %v1228, 0.0
    %v1245 = vmax.f32 %v1229, 0.0
    %v1246 = vmax.f32 %v1230, 0.0
    %v1247 = vmax.f32 %v1231, 0.0
    %v1248 = vmax.f32 %v1232, 0.0
    %v1249 = vmax.f32 %v1233, 0.0
    %v1250 = vmax.f32 %v1234, 0.0
    %v1251 = vmax.f32 %v1235, 0.0
    %v1252 = vmax.f32 %v1236, 0.0
    %v1253 = vmax.f32 %v1237, 0.0
    %v1254 = vmax.f32 %v1238, 0.0
    %v1255 = vmax.f32 %v1239, 0.0
    %v1256 = vmax.f32 %v1240, 0.0
    %v1257 = vmax.f32 %v1241, 0.0
    %v1258 = vmax.f32 %v1242, 0.0
    %v1259 = vpack.c.bf16 %v1245, %v1243
    %v1260 = vpack.c.bf16 %v1246, %v1244
    %v1261 = vpack.c.bf16 %v1249, %v1247
    %v1262 = vpack.c.bf16 %v1250, %v1248
    %v1263 = vpack.c.bf16 %v1253, %v1251
    %v1264 = vpack.c.bf16 %v1254, %v1252
    %v1265 = vpack.c.bf16 %v1257, %v1255
    %v1266 = vpack.c.bf16 %v1258, %v1256
    %v1267 = vmul.f32 %v1243, -1.0
    %v1268 = vmul.f32 %v1244, -1.0
    %v1269 = vmul.f32 %v1245, -1.0
    %v1270 = vmul.f32 %v1246, -1.0
    %v1271 = vmul.f32 %v1247, -1.0
    %v1272 = vmul.f32 %v1248, -1.0
    %v1273 = vmul.f32 %v1249, -1.0
    %v1274 = vmul.f32 %v1250, -1.0
    %v1275 = vmul.f32 %v1251, -1.0
    %v1276 = vmul.f32 %v1252, -1.0
    %v1277 = vmul.f32 %v1253, -1.0
    %v1278 = vmul.f32 %v1254, -1.0
    %v1279 = vmul.f32 %v1255, -1.0
    %v1280 = vmul.f32 %v1256, -1.0
    %v1281 = vmul.f32 %v1257, -1.0
    %v1282 = vmul.f32 %v1258, -1.0
    %v1283 = vld [vmem:[%s4] sm:$0xff]
    %v1284 = vld [vmem:[%s4 + $0x8] sm:$0xff]
    %v1285 = vld [vmem:[%s4 + $0x10] sm:$0xff]
    %v1286 = vld [vmem:[%s4 + $0x18] sm:$0xff]
    %v1287 = vld [vmem:[%s4 + $0x20] sm:$0xff]
    %v1288 = vld [vmem:[%s4 + $0x28] sm:$0xff]
    %v1289 = vld [vmem:[%s4 + $0x30] sm:$0xff]
    %v1290 = vld [vmem:[%s4 + $0x38] sm:$0xff]
    %v1291 = vld [vmem:[%s4 + $0x40] sm:$0xff]
    %v1292 = vld [vmem:[%s4 + $0x48] sm:$0xff]
    %v1293 = vld [vmem:[%s4 + $0x50] sm:$0xff]
    %v1294 = vld [vmem:[%s4 + $0x58] sm:$0xff]
    %v1295 = vld [vmem:[%s4 + $0x60] sm:$0xff]
    %v1296 = vld [vmem:[%s4 + $0x68] sm:$0xff]
    %v1297 = vld [vmem:[%s4 + $0x70] sm:$0xff]
    %v1298 = vld [vmem:[%s4 + $0x78] sm:$0xff]
    %v1299 = vld [vmem:[%s4 + $0x80] sm:$0xff]
    %v1300 = vld [vmem:[%s4 + $0x88] sm:$0xff]
    %v1301 = vld [vmem:[%s4 + $0x90] sm:$0xff]
    %v1302 = vld [vmem:[%s4 + $0x98] sm:$0xff]
    %v1303 = vld [vmem:[%s4 + $0xa0] sm:$0xff]
    %v1304 = vld [vmem:[%s4 + $0xa8] sm:$0xff]
    %v1305 = vld [vmem:[%s4 + $0xb0] sm:$0xff]
    %v1306 = vld [vmem:[%s4 + $0xb8] sm:$0xff]
    %v1307 = vld [vmem:[%s4 + $0xc0] sm:$0xff]
    %v1308 = vld [vmem:[%s4 + $0xc8] sm:$0xff]
    %v1309 = vld [vmem:[%s4 + $0xd0] sm:$0xff]
    %v1310 = vld [vmem:[%s4 + $0xd8] sm:$0xff]
    %v1311 = vld [vmem:[%s4 + $0xe0] sm:$0xff]
    %v1312 = vld [vmem:[%s4 + $0xe8] sm:$0xff]
    %v1313 = vld [vmem:[%s4 + $0xf0] sm:$0xff]
    %v1314 = vld [vmem:[%s4 + $0xf8] sm:$0xff]
    %v1347 = vunpack.c.l.b16 %v1283
    %v1348 = vunpack.c.h.b16 %v1283
    %v1349 = vunpack.c.l.b16 %v1284
    %v1350 = vunpack.c.h.b16 %v1284
    %v1351 = vunpack.c.l.b16 %v1285
    %v1352 = vunpack.c.h.b16 %v1285
    %v1353 = vunpack.c.l.b16 %v1286
    %v1354 = vunpack.c.h.b16 %v1286
    %v1355 = vunpack.c.l.b16 %v1287
    %v1356 = vunpack.c.h.b16 %v1287
    %v1357 = vunpack.c.l.b16 %v1288
    %v1358 = vunpack.c.h.b16 %v1288
    %v1359 = vunpack.c.l.b16 %v1289
    %v1360 = vunpack.c.h.b16 %v1289
    %v1361 = vunpack.c.l.b16 %v1290
    %v1362 = vunpack.c.h.b16 %v1290
    %v1363 = vunpack.c.l.b16 %v1291
    %v1364 = vunpack.c.h.b16 %v1291
    %v1365 = vunpack.c.l.b16 %v1292
    %v1366 = vunpack.c.h.b16 %v1292
    %v1367 = vunpack.c.l.b16 %v1293
    %v1368 = vunpack.c.h.b16 %v1293
    %v1369 = vunpack.c.l.b16 %v1294
    %v1370 = vunpack.c.h.b16 %v1294
    %v1371 = vunpack.c.l.b16 %v1295
    %v1372 = vunpack.c.h.b16 %v1295
    %v1373 = vunpack.c.l.b16 %v1296
    %v1374 = vunpack.c.h.b16 %v1296
    %v1375 = vunpack.c.l.b16 %v1297
    %v1376 = vunpack.c.h.b16 %v1297
    %v1377 = vunpack.c.l.b16 %v1298
    %v1378 = vunpack.c.h.b16 %v1298
    %v1379 = vunpack.c.l.b16 %v1299
    %v1380 = vunpack.c.h.b16 %v1299
    %v1381 = vunpack.c.l.b16 %v1300
    %v1382 = vunpack.c.h.b16 %v1300
    %v1383 = vunpack.c.l.b16 %v1301
    %v1384 = vunpack.c.h.b16 %v1301
    %v1385 = vunpack.c.l.b16 %v1302
    %v1386 = vunpack.c.h.b16 %v1302
    %v1387 = vunpack.c.l.b16 %v1303
    %v1388 = vunpack.c.h.b16 %v1303
    %v1389 = vunpack.c.l.b16 %v1304
    %v1390 = vunpack.c.h.b16 %v1304
    %v1391 = vunpack.c.l.b16 %v1305
    %v1392 = vunpack.c.h.b16 %v1305
    %v1393 = vunpack.c.l.b16 %v1306
    %v1394 = vunpack.c.h.b16 %v1306
    %v1395 = vunpack.c.l.b16 %v1307
    %v1396 = vunpack.c.h.b16 %v1307
    %v1397 = vunpack.c.l.b16 %v1308
    %v1398 = vunpack.c.h.b16 %v1308
    %v1399 = vunpack.c.l.b16 %v1309
    %v1400 = vunpack.c.h.b16 %v1309
    %v1401 = vunpack.c.l.b16 %v1310
    %v1402 = vunpack.c.h.b16 %v1310
    %v1403 = vunpack.c.l.b16 %v1311
    %v1404 = vunpack.c.h.b16 %v1311
    %v1405 = vunpack.c.l.b16 %v1312
    %v1406 = vunpack.c.h.b16 %v1312
    %v1407 = vunpack.c.l.b16 %v1313
    %v1408 = vunpack.c.h.b16 %v1313
    %v1409 = vunpack.c.l.b16 %v1314
    %v1410 = vunpack.c.h.b16 %v1314
    %v1411 = vpack.c.b16 %v1349, %v1347
    %v1412 = vpack.c.b16 %v1350, %v1348
    %v1413 = vpack.c.b16 %v1353, %v1351
    %v1414 = vpack.c.b16 %v1354, %v1352
    %v1415 = vpack.c.b16 %v1357, %v1355
    %v1416 = vpack.c.b16 %v1358, %v1356
    %v1417 = vpack.c.b16 %v1361, %v1359
    %v1418 = vpack.c.b16 %v1362, %v1360
    %v1419 = vpack.c.b16 %v1365, %v1363
    %v1420 = vpack.c.b16 %v1366, %v1364
    %v1421 = vpack.c.b16 %v1369, %v1367
    %v1422 = vpack.c.b16 %v1370, %v1368
    %v1423 = vpack.c.b16 %v1373, %v1371
    %v1424 = vpack.c.b16 %v1374, %v1372
    %v1425 = vpack.c.b16 %v1377, %v1375
    %v1426 = vpack.c.b16 %v1378, %v1376
    %v1427 = vpack.c.b16 %v1381, %v1379
    %v1428 = vpack.c.b16 %v1382, %v1380
    %v1429 = vpack.c.b16 %v1385, %v1383
    %v1430 = vpack.c.b16 %v1386, %v1384
    %v1431 = vpack.c.b16 %v1389, %v1387
    %v1432 = vpack.c.b16 %v1390, %v1388
    %v1433 = vpack.c.b16 %v1393, %v1391
    %v1434 = vpack.c.b16 %v1394, %v1392
    %v1435 = vpack.c.b16 %v1397, %v1395
    %v1436 = vpack.c.b16 %v1398, %v1396
    %v1437 = vpack.c.b16 %v1401, %v1399
    %v1438 = vpack.c.b16 %v1402, %v1400
    %v1439 = vpack.c.b16 %v1405, %v1403
    %v1440 = vpack.c.b16 %v1406, %v1404
    %v1441 = vpack.c.b16 %v1409, %v1407
    %v1442 = vpack.c.b16 %v1410, %v1408
    %1475 = vmatpush.bf16.msra.mxu0 %v1425
    %1476 = vmatpush.bf16.msra.mxu0 %v1423
    %1477 = vmatpush.bf16.msra.mxu0 %v1421
    %1478 = vmatpush.bf16.msra.mxu0 %v1419
    %1479 = vmatpush.bf16.msra.mxu0 %v1417
    %1480 = vmatpush.bf16.msra.mxu0 %v1415
    %1481 = vmatpush.bf16.msra.mxu0 %v1413
    %1482 = vmatpush.bf16.msra.mxu0 %v1411
    %1483 = vmatmul.bf16.gmra.mxu0 %v1259
    %v1484 = vpop.f32.mrf.mxu0
    %v1485 = vadd.f32 0.0, %v1484
    %v1486 = vpop.f32.mrf.mxu0
    %v1487 = vadd.f32 0.0, %v1486
    %1488 = vmatmul.bf16.gmra.mxu0 %v1261
    %v1489 = vpop.f32.mrf.mxu0
    %v1490 = vadd.f32 0.0, %v1489
    %v1491 = vpop.f32.mrf.mxu0
    %v1492 = vadd.f32 0.0, %v1491
    %1493 = vmatmul.bf16.gmra.mxu0 %v1263
    %v1494 = vpop.f32.mrf.mxu0
    %v1495 = vadd.f32 0.0, %v1494
    %v1496 = vpop.f32.mrf.mxu0
    %v1497 = vadd.f32 0.0, %v1496
    %1498 = vmatmul.bf16.gmra.mxu0 %v1265
    %v1499 = vpop.f32.mrf.mxu0
    %v1500 = vadd.f32 0.0, %v1499
    %v1501 = vpop.f32.mrf.mxu0
    %v1502 = vadd.f32 0.0, %v1501
    %1503 = vdwg.mxu0
    %1504 = vmatpush.bf16.msra.mxu0 %v1441
    %1505 = vmatpush.bf16.msra.mxu0 %v1439
    %1506 = vmatpush.bf16.msra.mxu0 %v1437
    %1507 = vmatpush.bf16.msra.mxu0 %v1435
    %1508 = vmatpush.bf16.msra.mxu0 %v1433
    %1509 = vmatpush.bf16.msra.mxu0 %v1431
    %1510 = vmatpush.bf16.msra.mxu0 %v1429
    %1511 = vmatpush.bf16.msra.mxu0 %v1427
    %1512 = vmatmul.bf16.gmra.mxu0 %v1260
    %v1513 = vpop.f32.mrf.mxu0
    %v1514 = vadd.f32 %v1485, %v1513
    %v1515 = vpop.f32.mrf.mxu0
    %v1516 = vadd.f32 %v1487, %v1515
    %1517 = vmatmul.bf16.gmra.mxu0 %v1262
    %v1518 = vpop.f32.mrf.mxu0
    %v1519 = vadd.f32 %v1490, %v1518
    %v1520 = vpop.f32.mrf.mxu0
    %v1521 = vadd.f32 %v1492, %v1520
    %1522 = vmatmul.bf16.gmra.mxu0 %v1264
    %v1523 = vpop.f32.mrf.mxu0
    %v1524 = vadd.f32 %v1495, %v1523
    %v1525 = vpop.f32.mrf.mxu0
    %v1526 = vadd.f32 %v1497, %v1525
    %1527 = vmatmul.bf16.gmra.mxu0 %v1266
    %v1528 = vpop.f32.mrf.mxu0
    %v1529 = vadd.f32 %v1500, %v1528
    %v1530 = vpop.f32.mrf.mxu0
    %v1531 = vadd.f32 %v1502, %v1530
    %1532 = vdwg.mxu0
    %1533 = vmatpush.bf16.msra.mxu0 %v1426
    %1534 = vmatpush.bf16.msra.mxu0 %v1424
    %1535 = vmatpush.bf16.msra.mxu0 %v1422
    %1536 = vmatpush.bf16.msra.mxu0 %v1420
    %1537 = vmatpush.bf16.msra.mxu0 %v1418
    %1538 = vmatpush.bf16.msra.mxu0 %v1416
    %1539 = vmatpush.bf16.msra.mxu0 %v1414
    %1540 = vmatpush.bf16.msra.mxu0 %v1412
    %1541 = vmatmul.bf16.gmra.mxu0 %v1259
    %v1542 = vpop.f32.mrf.mxu0
    %v1543 = vadd.f32 0.0, %v1542
    %v1544 = vpop.f32.mrf.mxu0
    %v1545 = vadd.f32 0.0, %v1544
    %1546 = vmatmul.bf16.gmra.mxu0 %v1261
    %v1547 = vpop.f32.mrf.mxu0
    %v1548 = vadd.f32 0.0, %v1547
    %v1549 = vpop.f32.mrf.mxu0
    %v1550 = vadd.f32 0.0, %v1549
    %1551 = vmatmul.bf16.gmra.mxu0 %v1263
    %v1552 = vpop.f32.mrf.mxu0
    %v1553 = vadd.f32 0.0, %v1552
    %v1554 = vpop.f32.mrf.mxu0
    %v1555 = vadd.f32 0.0, %v1554
    %1556 = vmatmul.bf16.gmra.mxu0 %v1265
    %v1557 = vpop.f32.mrf.mxu0
    %v1558 = vadd.f32 0.0, %v1557
    %v1559 = vpop.f32.mrf.mxu0
    %v1560 = vadd.f32 0.0, %v1559
    %1561 = vdwg.mxu0
    %1562 = vmatpush.bf16.msra.mxu0 %v1442
    %1563 = vmatpush.bf16.msra.mxu0 %v1440
    %1564 = vmatpush.bf16.msra.mxu0 %v1438
    %1565 = vmatpush.bf16.msra.mxu0 %v1436
    %1566 = vmatpush.bf16.msra.mxu0 %v1434
    %1567 = vmatpush.bf16.msra.mxu0 %v1432
    %1568 = vmatpush.bf16.msra.mxu0 %v1430
    %1569 = vmatpush.bf16.msra.mxu0 %v1428
    %1570 = vmatmul.bf16.gmra.mxu0 %v1260
    %v1571 = vpop.f32.mrf.mxu0
    %v1572 = vadd.f32 %v1543, %v1571
    %v1573 = vpop.f32.mrf.mxu0
    %v1574 = vadd.f32 %v1545, %v1573
    %1575 = vmatmul.bf16.gmra.mxu0 %v1262
    %v1576 = vpop.f32.mrf.mxu0
    %v1577 = vadd.f32 %v1548, %v1576
    %v1578 = vpop.f32.mrf.mxu0
    %v1579 = vadd.f32 %v1550, %v1578
    %1580 = vmatmul.bf16.gmra.mxu0 %v1264
    %v1581 = vpop.f32.mrf.mxu0
    %v1582 = vadd.f32 %v1553, %v1581
    %v1583 = vpop.f32.mrf.mxu0
    %v1584 = vadd.f32 %v1555, %v1583
    %1585 = vmatmul.bf16.gmra.mxu0 %v1266
    %v1586 = vpop.f32.mrf.mxu0
    %v1587 = vadd.f32 %v1558, %v1586
    %v1588 = vpop.f32.mrf.mxu0
    %v1589 = vadd.f32 %v1560, %v1588
    %1590 = vdwg.mxu0
    %v1591 = vadd.f32 %v1267, %v1514
    %v1592 = vadd.f32 %v1268, %v1572
    %v1593 = vadd.f32 %v1269, %v1516
    %v1594 = vadd.f32 %v1270, %v1574
    %v1595 = vadd.f32 %v1271, %v1519
    %v1596 = vadd.f32 %v1272, %v1577
    %v1597 = vadd.f32 %v1273, %v1521
    %v1598 = vadd.f32 %v1274, %v1579
    %v1599 = vadd.f32 %v1275, %v1524
    %v1600 = vadd.f32 %v1276, %v1582
    %v1601 = vadd.f32 %v1277, %v1526
    %v1602 = vadd.f32 %v1278, %v1584
    %v1603 = vadd.f32 %v1279, %v1529
    %v1604 = vadd.f32 %v1280, %v1587
    %v1605 = vadd.f32 %v1281, %v1531
    %v1606 = vadd.f32 %v1282, %v1589
    %v1607 = vld [vmem:[%s5] sm:$0xf]
    %v1608 = vld [vmem:[%s5 + $0x4] sm:$0xf]
    %v1609 = vld [vmem:[%s5 + $0x8] sm:$0xf]
    %v1610 = vld [vmem:[%s5 + $0xc] sm:$0xf]
    %v1611 = vld [vmem:[%s5 + $0x10] sm:$0xf]
    %v1612 = vld [vmem:[%s5 + $0x14] sm:$0xf]
    %v1613 = vld [vmem:[%s5 + $0x18] sm:$0xf]
    %v1614 = vld [vmem:[%s5 + $0x1c] sm:$0x3]
    %v1623 = vunpack.c.l.b16 %v1607
    %v1624 = vunpack.c.l.b16 %v1608
    %v1625 = vunpack.c.l.b16 %v1609
    %v1626 = vunpack.c.l.b16 %v1610
    %v1627 = vunpack.c.l.b16 %v1611
    %v1628 = vunpack.c.l.b16 %v1612
    %v1629 = vunpack.c.l.b16 %v1613
    %v1630 = vunpack.c.l.b16 %v1614
    %v1631 = vpack.c.b16 %v1624, %v1623
    %v1632 = vpack.c.b16 %v1626, %v1625
    %v1633 = vpack.c.b16 %v1628, %v1627
    %v1634 = vpack.c.b16 %v1630, %v1629
    %v1636 = vsel %vm1075, %v1631, 0
    %v1639 = vsel %vm1075, %v1632, 0
    %v1642 = vsel %vm1075, %v1633, 0
    %v1645 = vsel %vm1075, %v1634, 0
    %v1648 = vsel %vm1088, %v1265, 0
    %v1651 = vsel %vm1088, %v1266, 0
    %1653 = vmatpush.bf16.msra.mxu0 0
    %1654 = vmatpush.bf16.msra.mxu0 0
    %1655 = vmatpush.bf16.msra.mxu0 0
    %1656 = vmatpush.bf16.msra.mxu0 0
    %1657 = vmatpush.bf16.msra.mxu0 %v1648
    %1658 = vmatpush.bf16.msra.mxu0 %v1263
    %1659 = vmatpush.bf16.msra.mxu0 %v1261
    %1660 = vmatpush.bf16.msra.mxu0 %v1259
    %1661 = vmatmul.bf16.gmra.mxu0 %v1636
    %v1662 = vpop.f32.mrf.mxu0
    %v1663 = vadd.f32 0.0, %v1662
    %v1664 = vpop.f32.mrf.mxu0
    %v1665 = vadd.f32 0.0, %v1664
    %1666 = vmatmul.bf16.gmra.mxu0 %v1639
    %v1667 = vpop.f32.mrf.mxu0
    %v1668 = vadd.f32 0.0, %v1667
    %v1669 = vpop.f32.mrf.mxu0
    %v1670 = vadd.f32 0.0, %v1669
    %1671 = vmatmul.bf16.gmra.mxu0 %v1642
    %v1672 = vpop.f32.mrf.mxu0
    %v1673 = vadd.f32 0.0, %v1672
    %v1674 = vpop.f32.mrf.mxu0
    %v1675 = vadd.f32 0.0, %v1674
    %1676 = vmatmul.bf16.gmra.mxu0 %v1645
    %v1677 = vpop.f32.mrf.mxu0
    %v1678 = vadd.f32 0.0, %v1677
    %v1679 = vpop.f32.mrf.mxu0
    %v1680 = vadd.f32 0.0, %v1679
    %1681 = vdwg.mxu0
    %1682 = vmatpush.bf16.msra.mxu0 0
    %1683 = vmatpush.bf16.msra.mxu0 0
    %1684 = vmatpush.bf16.msra.mxu0 0
    %1685 = vmatpush.bf16.msra.mxu0 0
    %1686 = vmatpush.bf16.msra.mxu0 %v1651
    %1687 = vmatpush.bf16.msra.mxu0 %v1264
    %1688 = vmatpush.bf16.msra.mxu0 %v1262
    %1689 = vmatpush.bf16.msra.mxu0 %v1260
    %1690 = vmatmul.bf16.gmra.mxu0 %v1636
    %v1691 = vpop.f32.mrf.mxu0
    %v1692 = vadd.f32 0.0, %v1691
    %v1693 = vpop.f32.mrf.mxu0
    %v1694 = vadd.f32 0.0, %v1693
    %1695 = vmatmul.bf16.gmra.mxu0 %v1639
    %v1696 = vpop.f32.mrf.mxu0
    %v1697 = vadd.f32 0.0, %v1696
    %v1698 = vpop.f32.mrf.mxu0
    %v1699 = vadd.f32 0.0, %v1698
    %1700 = vmatmul.bf16.gmra.mxu0 %v1642
    %v1701 = vpop.f32.mrf.mxu0
    %v1702 = vadd.f32 0.0, %v1701
    %v1703 = vpop.f32.mrf.mxu0
    %v1704 = vadd.f32 0.0, %v1703
    %1705 = vmatmul.bf16.gmra.mxu0 %v1645
    %v1706 = vpop.f32.mrf.mxu0
    %v1707 = vadd.f32 0.0, %v1706
    %v1708 = vpop.f32.mrf.mxu0
    %v1709 = vadd.f32 0.0, %v1708
    %1710 = vdwg.mxu0
    %v1711 = vadd.f32 %v1591, %v1663
    %v1712 = vadd.f32 %v1592, %v1692
    %v1713 = vadd.f32 %v1593, %v1665
    %v1714 = vadd.f32 %v1594, %v1694
    %v1715 = vadd.f32 %v1595, %v1668
    %v1716 = vadd.f32 %v1596, %v1697
    %v1717 = vadd.f32 %v1597, %v1670
    %v1718 = vadd.f32 %v1598, %v1699
    %v1719 = vadd.f32 %v1599, %v1673
    %v1720 = vadd.f32 %v1600, %v1702
    %v1721 = vadd.f32 %v1601, %v1675
    %v1722 = vadd.f32 %v1602, %v1704
    %v1723 = vadd.f32 %v1603, %v1678
    %v1724 = vadd.f32 %v1604, %v1707
    %v1725 = vadd.f32 %v1605, %v1680
    %v1726 = vadd.f32 %v1606, %v1709
    %v1727 = vmax.f32 %v1711, 0.0
    %v1728 = vmax.f32 %v1712, 0.0
    %v1729 = vmax.f32 %v1713, 0.0
    %v1730 = vmax.f32 %v1714, 0.0
    %v1731 = vmax.f32 %v1715, 0.0
    %v1732 = vmax.f32 %v1716, 0.0
    %v1733 = vmax.f32 %v1717, 0.0
    %v1734 = vmax.f32 %v1718, 0.0
    %v1735 = vmax.f32 %v1719, 0.0
    %v1736 = vmax.f32 %v1720, 0.0
    %v1737 = vmax.f32 %v1721, 0.0
    %v1738 = vmax.f32 %v1722, 0.0
    %v1739 = vmax.f32 %v1723, 0.0
    %v1740 = vmax.f32 %v1724, 0.0
    %v1741 = vmax.f32 %v1725, 0.0
    %v1742 = vmax.f32 %v1726, 0.0
    %v1743 = vadd.f32 %v1727, %v1729
    %v1744 = vadd.f32 %v1743, %v1731
    %v1745 = vadd.f32 %v1744, %v1733
    %v1746 = vadd.f32 %v1745, %v1735
    %v1747 = vadd.f32 %v1746, %v1737
    %v1748 = vadd.f32 %v1747, %v1739
    %vm1749 = vcmask 1043456
    %v1750 = vsel %vm1749, %v1741, 0.0
    %v1751 = vadd.f32 %v1748, %v1750
    %v1752 = vrot.slane %v1751, 4
    %v1753 = vadd.f32 %v1751, %v1752
    %v1754 = vrot.slane %v1753, 2
    %v1755 = vadd.f32 %v1753, %v1754
    %v1756 = vrot.slane %v1755, 1
    %v1757 = vadd.f32 %v1755, %v1756
    %v1758 = vadd.f32 %v1728, %v1730
    %v1759 = vadd.f32 %v1758, %v1732
    %v1760 = vadd.f32 %v1759, %v1734
    %v1761 = vadd.f32 %v1760, %v1736
    %v1762 = vadd.f32 %v1761, %v1738
    %v1763 = vadd.f32 %v1762, %v1740
    %v1764 = vsel %vm1749, %v1742, 0.0
    %v1765 = vadd.f32 %v1763, %v1764
    %v1766 = vrot.slane %v1765, 4
    %v1767 = vadd.f32 %v1765, %v1766
    %v1768 = vrot.slane %v1767, 2
    %v1769 = vadd.f32 %v1767, %v1768
    %v1770 = vrot.slane %v1769, 1
    %v1771 = vadd.f32 %v1769, %v1770
    %v1772 = vld [vmem:[%s7] sm:$0xff]
    %v1773 = vld [vmem:[%s7 + $0x8] sm:$0xff]
    %v1774 = vld [vmem:[%s7 + $0x10] sm:$0xff]
    %v1775 = vld [vmem:[%s7 + $0x18] sm:$0xff]
    %v1776 = vld [vmem:[%s7 + $0x20] sm:$0xff]
    %v1777 = vld [vmem:[%s7 + $0x28] sm:$0xff]
    %v1778 = vld [vmem:[%s7 + $0x30] sm:$0xff]
    %v1779 = vld [vmem:[%s7 + $0x38] sm:$0xff]
    %v1780 = vld [vmem:[%s7 + $0x40] sm:$0xff]
    %v1781 = vld [vmem:[%s7 + $0x48] sm:$0xff]
    %v1782 = vld [vmem:[%s7 + $0x50] sm:$0xff]
    %v1783 = vld [vmem:[%s7 + $0x58] sm:$0xff]
    %v1784 = vld [vmem:[%s7 + $0x60] sm:$0xff]
    %v1785 = vld [vmem:[%s7 + $0x68] sm:$0xff]
    %v1786 = vld [vmem:[%s7 + $0x70] sm:$0xff]
    %v1787 = vld [vmem:[%s7 + $0x78] sm:$0xff]
    %v1788 = vld [vmem:[%s7 + $0x80] sm:$0xff]
    %v1789 = vld [vmem:[%s7 + $0x88] sm:$0xff]
    %v1790 = vld [vmem:[%s7 + $0x90] sm:$0xff]
    %v1791 = vld [vmem:[%s7 + $0x98] sm:$0xff]
    %v1792 = vld [vmem:[%s7 + $0xa0] sm:$0xff]
    %v1793 = vld [vmem:[%s7 + $0xa8] sm:$0xff]
    %v1794 = vld [vmem:[%s7 + $0xb0] sm:$0xff]
    %v1795 = vld [vmem:[%s7 + $0xb8] sm:$0xff]
    %v1796 = vld [vmem:[%s7 + $0xc0] sm:$0xff]
    %v1797 = vld [vmem:[%s7 + $0xc8] sm:$0xff]
    %v1798 = vld [vmem:[%s7 + $0xd0] sm:$0xff]
    %v1799 = vld [vmem:[%s7 + $0xd8] sm:$0xff]
    %v1800 = vld [vmem:[%s7 + $0xe0] sm:$0xff]
    %v1801 = vld [vmem:[%s7 + $0xe8] sm:$0xff]
    %v1802 = vld [vmem:[%s7 + $0xf0] sm:$0xff]
    %v1803 = vld [vmem:[%s7 + $0xf8] sm:$0xff]
    %v1804 = vand.u32 %v1787, 4294901760
    %1805 = vmatpush.msra.mxu0 %v1804
    %v1806 = vand.u32 %v1786, 4294901760
    %1807 = vmatpush.msra.mxu0 %v1806
    %v1808 = vand.u32 %v1785, 4294901760
    %1809 = vmatpush.msra.mxu0 %v1808
    %v1810 = vand.u32 %v1784, 4294901760
    %1811 = vmatpush.msra.mxu0 %v1810
    %v1812 = vand.u32 %v1783, 4294901760
    %1813 = vmatpush.msra.mxu0 %v1812
    %v1814 = vand.u32 %v1782, 4294901760
    %1815 = vmatpush.msra.mxu0 %v1814
    %v1816 = vand.u32 %v1781, 4294901760
    %1817 = vmatpush.msra.mxu0 %v1816
    %v1818 = vand.u32 %v1780, 4294901760
    %1819 = vmatpush.msra.mxu0 %v1818
    %v1820 = vand.u32 %v1779, 4294901760
    %1821 = vmatpush.msra.mxu0 %v1820
    %v1822 = vand.u32 %v1778, 4294901760
    %1823 = vmatpush.msra.mxu0 %v1822
    %v1824 = vand.u32 %v1777, 4294901760
    %1825 = vmatpush.msra.mxu0 %v1824
    %v1826 = vand.u32 %v1776, 4294901760
    %1827 = vmatpush.msra.mxu0 %v1826
    %v1828 = vand.u32 %v1775, 4294901760
    %1829 = vmatpush.msra.mxu0 %v1828
    %v1830 = vand.u32 %v1774, 4294901760
    %1831 = vmatpush.msra.mxu0 %v1830
    %v1832 = vand.u32 %v1773, 4294901760
    %1833 = vmatpush.msra.mxu0 %v1832
    %v1834 = vand.u32 %v1772, 4294901760
    %1835 = vmatpush.msra.mxu0 %v1834
    %v1836 = vand.u32 %v1757, 4294901760
    %v1837 = vsub.f32 %v1757, %v1836
    %v1838 = vand.u32 %v1837, 4294901760
    %v1839 = vsub.f32 %v1837, %v1838
    %v1840 = vand.u32 %v1839, 4294901760
    %1841 = vmatmul.f32.gmra.mxu0 %v1840
    %v1842 = vpop.f32.mrf.mxu0
    %v1843 = vadd.f32 0.0, %v1842
    %1844 = vdwg.mxu0
    %v1845 = vand.u32 %v1787, 4294901760
    %v1846 = vsub.f32 %v1787, %v1845
    %v1847 = vand.u32 %v1846, 4294901760
    %v1848 = vsub.f32 %v1846, %v1847
    %v1849 = vand.u32 %v1848, 4294901760
    %1850 = vmatpush.msra.mxu0 %v1849
    %v1851 = vand.u32 %v1786, 4294901760
    %v1852 = vsub.f32 %v1786, %v1851
    %v1853 = vand.u32 %v1852, 4294901760
    %v1854 = vsub.f32 %v1852, %v1853
    %v1855 = vand.u32 %v1854, 4294901760
    %1856 = vmatpush.msra.mxu0 %v1855
    %v1857 = vand.u32 %v1785, 4294901760
    %v1858 = vsub.f32 %v1785, %v1857
    %v1859 = vand.u32 %v1858, 4294901760
    %v1860 = vsub.f32 %v1858, %v1859
    %v1861 = vand.u32 %v1860, 4294901760
    %1862 = vmatpush.msra.mxu0 %v1861
    %v1863 = vand.u32 %v1784, 4294901760
    %v1864 = vsub.f32 %v1784, %v1863
    %v1865 = vand.u32 %v1864, 4294901760
    %v1866 = vsub.f32 %v1864, %v1865
    %v1867 = vand.u32 %v1866, 4294901760
    %1868 = vmatpush.msra.mxu0 %v1867
    %v1869 = vand.u32 %v1783, 4294901760
    %v1870 = vsub.f32 %v1783, %v1869
    %v1871 = vand.u32 %v1870, 4294901760
    %v1872 = vsub.f32 %v1870, %v1871
    %v1873 = vand.u32 %v1872, 4294901760
    %1874 = vmatpush.msra.mxu0 %v1873
    %v1875 = vand.u32 %v1782, 4294901760
    %v1876 = vsub.f32 %v1782, %v1875
    %v1877 = vand.u32 %v1876, 4294901760
    %v1878 = vsub.f32 %v1876, %v1877
    %v1879 = vand.u32 %v1878, 4294901760
    %1880 = vmatpush.msra.mxu0 %v1879
    %v1881 = vand.u32 %v1781, 4294901760
    %v1882 = vsub.f32 %v1781, %v1881
    %v1883 = vand.u32 %v1882, 4294901760
    %v1884 = vsub.f32 %v1882, %v1883
    %v1885 = vand.u32 %v1884, 4294901760
    %1886 = vmatpush.msra.mxu0 %v1885
    %v1887 = vand.u32 %v1780, 4294901760
    %v1888 = vsub.f32 %v1780, %v1887
    %v1889 = vand.u32 %v1888, 4294901760
    %v1890 = vsub.f32 %v1888, %v1889
    %v1891 = vand.u32 %v1890, 4294901760
    %1892 = vmatpush.msra.mxu0 %v1891
    %v1893 = vand.u32 %v1779, 4294901760
    %v1894 = vsub.f32 %v1779, %v1893
    %v1895 = vand.u32 %v1894, 4294901760
    %v1896 = vsub.f32 %v1894, %v1895
    %v1897 = vand.u32 %v1896, 4294901760
    %1898 = vmatpush.msra.mxu0 %v1897
    %v1899 = vand.u32 %v1778, 4294901760
    %v1900 = vsub.f32 %v1778, %v1899
    %v1901 = vand.u32 %v1900, 4294901760
    %v1902 = vsub.f32 %v1900, %v1901
    %v1903 = vand.u32 %v1902, 4294901760
    %1904 = vmatpush.msra.mxu0 %v1903
    %v1905 = vand.u32 %v1777, 4294901760
    %v1906 = vsub.f32 %v1777, %v1905
    %v1907 = vand.u32 %v1906, 4294901760
    %v1908 = vsub.f32 %v1906, %v1907
    %v1909 = vand.u32 %v1908, 4294901760
    %1910 = vmatpush.msra.mxu0 %v1909
    %v1911 = vand.u32 %v1776, 4294901760
    %v1912 = vsub.f32 %v1776, %v1911
    %v1913 = vand.u32 %v1912, 4294901760
    %v1914 = vsub.f32 %v1912, %v1913
    %v1915 = vand.u32 %v1914, 4294901760
    %1916 = vmatpush.msra.mxu0 %v1915
    %v1917 = vand.u32 %v1775, 4294901760
    %v1918 = vsub.f32 %v1775, %v1917
    %v1919 = vand.u32 %v1918, 4294901760
    %v1920 = vsub.f32 %v1918, %v1919
    %v1921 = vand.u32 %v1920, 4294901760
    %1922 = vmatpush.msra.mxu0 %v1921
    %v1923 = vand.u32 %v1774, 4294901760
    %v1924 = vsub.f32 %v1774, %v1923
    %v1925 = vand.u32 %v1924, 4294901760
    %v1926 = vsub.f32 %v1924, %v1925
    %v1927 = vand.u32 %v1926, 4294901760
    %1928 = vmatpush.msra.mxu0 %v1927
    %v1929 = vand.u32 %v1773, 4294901760
    %v1930 = vsub.f32 %v1773, %v1929
    %v1931 = vand.u32 %v1930, 4294901760
    %v1932 = vsub.f32 %v1930, %v1931
    %v1933 = vand.u32 %v1932, 4294901760
    %1934 = vmatpush.msra.mxu0 %v1933
    %v1935 = vand.u32 %v1772, 4294901760
    %v1936 = vsub.f32 %v1772, %v1935
    %v1937 = vand.u32 %v1936, 4294901760
    %v1938 = vsub.f32 %v1936, %v1937
    %v1939 = vand.u32 %v1938, 4294901760
    %1940 = vmatpush.msra.mxu0 %v1939
    %v1941 = vand.u32 %v1757, 4294901760
    %1942 = vmatmul.f32.gmra.mxu0 %v1941
    %v1943 = vpop.f32.mrf.mxu0
    %v1944 = vadd.f32 %v1843, %v1943
    %1945 = vdwg.mxu0
    %v1946 = vand.u32 %v1787, 4294901760
    %v1947 = vsub.f32 %v1787, %v1946
    %1948 = vmatpush.msra.mxu0 %v1947
    %v1949 = vand.u32 %v1786, 4294901760
    %v1950 = vsub.f32 %v1786, %v1949
    %1951 = vmatpush.msra.mxu0 %v1950
    %v1952 = vand.u32 %v1785, 4294901760
    %v1953 = vsub.f32 %v1785, %v1952
    %1954 = vmatpush.msra.mxu0 %v1953
    %v1955 = vand.u32 %v1784, 4294901760
    %v1956 = vsub.f32 %v1784, %v1955
    %1957 = vmatpush.msra.mxu0 %v1956
    %v1958 = vand.u32 %v1783, 4294901760
    %v1959 = vsub.f32 %v1783, %v1958
    %1960 = vmatpush.msra.mxu0 %v1959
    %v1961 = vand.u32 %v1782, 4294901760
    %v1962 = vsub.f32 %v1782, %v1961
    %1963 = vmatpush.msra.mxu0 %v1962
    %v1964 = vand.u32 %v1781, 4294901760
    %v1965 = vsub.f32 %v1781, %v1964
    %1966 = vmatpush.msra.mxu0 %v1965
    %v1967 = vand.u32 %v1780, 4294901760
    %v1968 = vsub.f32 %v1780, %v1967
    %1969 = vmatpush.msra.mxu0 %v1968
    %v1970 = vand.u32 %v1779, 4294901760
    %v1971 = vsub.f32 %v1779, %v1970
    %1972 = vmatpush.msra.mxu0 %v1971
    %v1973 = vand.u32 %v1778, 4294901760
    %v1974 = vsub.f32 %v1778, %v1973
    %1975 = vmatpush.msra.mxu0 %v1974
    %v1976 = vand.u32 %v1777, 4294901760
    %v1977 = vsub.f32 %v1777, %v1976
    %1978 = vmatpush.msra.mxu0 %v1977
    %v1979 = vand.u32 %v1776, 4294901760
    %v1980 = vsub.f32 %v1776, %v1979
    %1981 = vmatpush.msra.mxu0 %v1980
    %v1982 = vand.u32 %v1775, 4294901760
    %v1983 = vsub.f32 %v1775, %v1982
    %1984 = vmatpush.msra.mxu0 %v1983
    %v1985 = vand.u32 %v1774, 4294901760
    %v1986 = vsub.f32 %v1774, %v1985
    %1987 = vmatpush.msra.mxu0 %v1986
    %v1988 = vand.u32 %v1773, 4294901760
    %v1989 = vsub.f32 %v1773, %v1988
    %1990 = vmatpush.msra.mxu0 %v1989
    %v1991 = vand.u32 %v1772, 4294901760
    %v1992 = vsub.f32 %v1772, %v1991
    %1993 = vmatpush.msra.mxu0 %v1992
    %v1994 = vand.u32 %v1757, 4294901760
    %v1995 = vsub.f32 %v1757, %v1994
    %1996 = vmatmul.f32.gmra.mxu0 %v1995
    %v1997 = vpop.f32.mrf.mxu0
    %v1998 = vadd.f32 %v1944, %v1997
    %1999 = vdwg.mxu0
    %v2000 = vand.u32 %v1787, 4294901760
    %2001 = vmatpush.msra.mxu0 %v2000
    %v2002 = vand.u32 %v1786, 4294901760
    %2003 = vmatpush.msra.mxu0 %v2002
    %v2004 = vand.u32 %v1785, 4294901760
    %2005 = vmatpush.msra.mxu0 %v2004
    %v2006 = vand.u32 %v1784, 4294901760
    %2007 = vmatpush.msra.mxu0 %v2006
    %v2008 = vand.u32 %v1783, 4294901760
    %2009 = vmatpush.msra.mxu0 %v2008
    %v2010 = vand.u32 %v1782, 4294901760
    %2011 = vmatpush.msra.mxu0 %v2010
    %v2012 = vand.u32 %v1781, 4294901760
    %2013 = vmatpush.msra.mxu0 %v2012
    %v2014 = vand.u32 %v1780, 4294901760
    %2015 = vmatpush.msra.mxu0 %v2014
    %v2016 = vand.u32 %v1779, 4294901760
    %2017 = vmatpush.msra.mxu0 %v2016
    %v2018 = vand.u32 %v1778, 4294901760
    %2019 = vmatpush.msra.mxu0 %v2018
    %v2020 = vand.u32 %v1777, 4294901760
    %2021 = vmatpush.msra.mxu0 %v2020
    %v2022 = vand.u32 %v1776, 4294901760
    %2023 = vmatpush.msra.mxu0 %v2022
    %v2024 = vand.u32 %v1775, 4294901760
    %2025 = vmatpush.msra.mxu0 %v2024
    %v2026 = vand.u32 %v1774, 4294901760
    %2027 = vmatpush.msra.mxu0 %v2026
    %v2028 = vand.u32 %v1773, 4294901760
    %2029 = vmatpush.msra.mxu0 %v2028
    %v2030 = vand.u32 %v1772, 4294901760
    %2031 = vmatpush.msra.mxu0 %v2030
    %v2032 = vand.u32 %v1757, 4294901760
    %v2033 = vsub.f32 %v1757, %v2032
    %v2034 = vand.u32 %v2033, 4294901760
    %2035 = vmatmul.f32.gmra.mxu0 %v2034
    %v2036 = vpop.f32.mrf.mxu0
    %v2037 = vadd.f32 %v1998, %v2036
    %2038 = vdwg.mxu0
    %v2039 = vand.u32 %v1787, 4294901760
    %v2040 = vsub.f32 %v1787, %v2039
    %v2041 = vand.u32 %v2040, 4294901760
    %2042 = vmatpush.msra.mxu0 %v2041
    %v2043 = vand.u32 %v1786, 4294901760
    %v2044 = vsub.f32 %v1786, %v2043
    %v2045 = vand.u32 %v2044, 4294901760
    %2046 = vmatpush.msra.mxu0 %v2045
    %v2047 = vand.u32 %v1785, 4294901760
    %v2048 = vsub.f32 %v1785, %v2047
    %v2049 = vand.u32 %v2048, 4294901760
    %2050 = vmatpush.msra.mxu0 %v2049
    %v2051 = vand.u32 %v1784, 4294901760
    %v2052 = vsub.f32 %v1784, %v2051
    %v2053 = vand.u32 %v2052, 4294901760
    %2054 = vmatpush.msra.mxu0 %v2053
    %v2055 = vand.u32 %v1783, 4294901760
    %v2056 = vsub.f32 %v1783, %v2055
    %v2057 = vand.u32 %v2056, 4294901760
    %2058 = vmatpush.msra.mxu0 %v2057
    %v2059 = vand.u32 %v1782, 4294901760
    %v2060 = vsub.f32 %v1782, %v2059
    %v2061 = vand.u32 %v2060, 4294901760
    %2062 = vmatpush.msra.mxu0 %v2061
    %v2063 = vand.u32 %v1781, 4294901760
    %v2064 = vsub.f32 %v1781, %v2063
    %v2065 = vand.u32 %v2064, 4294901760
    %2066 = vmatpush.msra.mxu0 %v2065
    %v2067 = vand.u32 %v1780, 4294901760
    %v2068 = vsub.f32 %v1780, %v2067
    %v2069 = vand.u32 %v2068, 4294901760
    %2070 = vmatpush.msra.mxu0 %v2069
    %v2071 = vand.u32 %v1779, 4294901760
    %v2072 = vsub.f32 %v1779, %v2071
    %v2073 = vand.u32 %v2072, 4294901760
    %2074 = vmatpush.msra.mxu0 %v2073
    %v2075 = vand.u32 %v1778, 4294901760
    %v2076 = vsub.f32 %v1778, %v2075
    %v2077 = vand.u32 %v2076, 4294901760
    %2078 = vmatpush.msra.mxu0 %v2077
    %v2079 = vand.u32 %v1777, 4294901760
    %v2080 = vsub.f32 %v1777, %v2079
    %v2081 = vand.u32 %v2080, 4294901760
    %2082 = vmatpush.msra.mxu0 %v2081
    %v2083 = vand.u32 %v1776, 4294901760
    %v2084 = vsub.f32 %v1776, %v2083
    %v2085 = vand.u32 %v2084, 4294901760
    %2086 = vmatpush.msra.mxu0 %v2085
    %v2087 = vand.u32 %v1775, 4294901760
    %v2088 = vsub.f32 %v1775, %v2087
    %v2089 = vand.u32 %v2088, 4294901760
    %2090 = vmatpush.msra.mxu0 %v2089
    %v2091 = vand.u32 %v1774, 4294901760
    %v2092 = vsub.f32 %v1774, %v2091
    %v2093 = vand.u32 %v2092, 4294901760
    %2094 = vmatpush.msra.mxu0 %v2093
    %v2095 = vand.u32 %v1773, 4294901760
    %v2096 = vsub.f32 %v1773, %v2095
    %v2097 = vand.u32 %v2096, 4294901760
    %2098 = vmatpush.msra.mxu0 %v2097
    %v2099 = vand.u32 %v1772, 4294901760
    %v2100 = vsub.f32 %v1772, %v2099
    %v2101 = vand.u32 %v2100, 4294901760
    %2102 = vmatpush.msra.mxu0 %v2101
    %v2103 = vand.u32 %v1757, 4294901760
    %2104 = vmatmul.f32.gmra.mxu0 %v2103
    %v2105 = vpop.f32.mrf.mxu0
    %v2106 = vadd.f32 %v2037, %v2105
    %2107 = vdwg.mxu0
    %v2108 = vand.u32 %v1787, 4294901760
    %2109 = vmatpush.msra.mxu0 %v2108
    %v2110 = vand.u32 %v1786, 4294901760
    %2111 = vmatpush.msra.mxu0 %v2110
    %v2112 = vand.u32 %v1785, 4294901760
    %2113 = vmatpush.msra.mxu0 %v2112
    %v2114 = vand.u32 %v1784, 4294901760
    %2115 = vmatpush.msra.mxu0 %v2114
    %v2116 = vand.u32 %v1783, 4294901760
    %2117 = vmatpush.msra.mxu0 %v2116
    %v2118 = vand.u32 %v1782, 4294901760
    %2119 = vmatpush.msra.mxu0 %v2118
    %v2120 = vand.u32 %v1781, 4294901760
    %2121 = vmatpush.msra.mxu0 %v2120
    %v2122 = vand.u32 %v1780, 4294901760
    %2123 = vmatpush.msra.mxu0 %v2122
    %v2124 = vand.u32 %v1779, 4294901760
    %2125 = vmatpush.msra.mxu0 %v2124
    %v2126 = vand.u32 %v1778, 4294901760
    %2127 = vmatpush.msra.mxu0 %v2126
    %v2128 = vand.u32 %v1777, 4294901760
    %2129 = vmatpush.msra.mxu0 %v2128
    %v2130 = vand.u32 %v1776, 4294901760
    %2131 = vmatpush.msra.mxu0 %v2130
    %v2132 = vand.u32 %v1775, 4294901760
    %2133 = vmatpush.msra.mxu0 %v2132
    %v2134 = vand.u32 %v1774, 4294901760
    %2135 = vmatpush.msra.mxu0 %v2134
    %v2136 = vand.u32 %v1773, 4294901760
    %2137 = vmatpush.msra.mxu0 %v2136
    %v2138 = vand.u32 %v1772, 4294901760
    %2139 = vmatpush.msra.mxu0 %v2138
    %v2140 = vand.u32 %v1757, 4294901760
    %2141 = vmatmul.f32.gmra.mxu0 %v2140
    %v2142 = vpop.f32.mrf.mxu0
    %v2143 = vadd.f32 %v2106, %v2142
    %2144 = vdwg.mxu0
    %v2145 = vand.u32 %v1803, 4294901760
    %2146 = vmatpush.msra.mxu0 %v2145
    %v2147 = vand.u32 %v1802, 4294901760
    %2148 = vmatpush.msra.mxu0 %v2147
    %v2149 = vand.u32 %v1801, 4294901760
    %2150 = vmatpush.msra.mxu0 %v2149
    %v2151 = vand.u32 %v1800, 4294901760
    %2152 = vmatpush.msra.mxu0 %v2151
    %v2153 = vand.u32 %v1799, 4294901760
    %2154 = vmatpush.msra.mxu0 %v2153
    %v2155 = vand.u32 %v1798, 4294901760
    %2156 = vmatpush.msra.mxu0 %v2155
    %v2157 = vand.u32 %v1797, 4294901760
    %2158 = vmatpush.msra.mxu0 %v2157
    %v2159 = vand.u32 %v1796, 4294901760
    %2160 = vmatpush.msra.mxu0 %v2159
    %v2161 = vand.u32 %v1795, 4294901760
    %2162 = vmatpush.msra.mxu0 %v2161
    %v2163 = vand.u32 %v1794, 4294901760
    %2164 = vmatpush.msra.mxu0 %v2163
    %v2165 = vand.u32 %v1793, 4294901760
    %2166 = vmatpush.msra.mxu0 %v2165
    %v2167 = vand.u32 %v1792, 4294901760
    %2168 = vmatpush.msra.mxu0 %v2167
    %v2169 = vand.u32 %v1791, 4294901760
    %2170 = vmatpush.msra.mxu0 %v2169
    %v2171 = vand.u32 %v1790, 4294901760
    %2172 = vmatpush.msra.mxu0 %v2171
    %v2173 = vand.u32 %v1789, 4294901760
    %2174 = vmatpush.msra.mxu0 %v2173
    %v2175 = vand.u32 %v1788, 4294901760
    %2176 = vmatpush.msra.mxu0 %v2175
    %v2177 = vand.u32 %v1771, 4294901760
    %v2178 = vsub.f32 %v1771, %v2177
    %v2179 = vand.u32 %v2178, 4294901760
    %v2180 = vsub.f32 %v2178, %v2179
    %v2181 = vand.u32 %v2180, 4294901760
    %2182 = vmatmul.f32.gmra.mxu0 %v2181
    %v2183 = vpop.f32.mrf.mxu0
    %v2184 = vadd.f32 %v2143, %v2183
    %2185 = vdwg.mxu0
    %v2186 = vand.u32 %v1803, 4294901760
    %v2187 = vsub.f32 %v1803, %v2186
    %v2188 = vand.u32 %v2187, 4294901760
    %v2189 = vsub.f32 %v2187, %v2188
    %v2190 = vand.u32 %v2189, 4294901760
    %2191 = vmatpush.msra.mxu0 %v2190
    %v2192 = vand.u32 %v1802, 4294901760
    %v2193 = vsub.f32 %v1802, %v2192
    %v2194 = vand.u32 %v2193, 4294901760
    %v2195 = vsub.f32 %v2193, %v2194
    %v2196 = vand.u32 %v2195, 4294901760
    %2197 = vmatpush.msra.mxu0 %v2196
    %v2198 = vand.u32 %v1801, 4294901760
    %v2199 = vsub.f32 %v1801, %v2198
    %v2200 = vand.u32 %v2199, 4294901760
    %v2201 = vsub.f32 %v2199, %v2200
    %v2202 = vand.u32 %v2201, 4294901760
    %2203 = vmatpush.msra.mxu0 %v2202
    %v2204 = vand.u32 %v1800, 4294901760
    %v2205 = vsub.f32 %v1800, %v2204
    %v2206 = vand.u32 %v2205, 4294901760
    %v2207 = vsub.f32 %v2205, %v2206
    %v2208 = vand.u32 %v2207, 4294901760
    %2209 = vmatpush.msra.mxu0 %v2208
    %v2210 = vand.u32 %v1799, 4294901760
    %v2211 = vsub.f32 %v1799, %v2210
    %v2212 = vand.u32 %v2211, 4294901760
    %v2213 = vsub.f32 %v2211, %v2212
    %v2214 = vand.u32 %v2213, 4294901760
    %2215 = vmatpush.msra.mxu0 %v2214
    %v2216 = vand.u32 %v1798, 4294901760
    %v2217 = vsub.f32 %v1798, %v2216
    %v2218 = vand.u32 %v2217, 4294901760
    %v2219 = vsub.f32 %v2217, %v2218
    %v2220 = vand.u32 %v2219, 4294901760
    %2221 = vmatpush.msra.mxu0 %v2220
    %v2222 = vand.u32 %v1797, 4294901760
    %v2223 = vsub.f32 %v1797, %v2222
    %v2224 = vand.u32 %v2223, 4294901760
    %v2225 = vsub.f32 %v2223, %v2224
    %v2226 = vand.u32 %v2225, 4294901760
    %2227 = vmatpush.msra.mxu0 %v2226
    %v2228 = vand.u32 %v1796, 4294901760
    %v2229 = vsub.f32 %v1796, %v2228
    %v2230 = vand.u32 %v2229, 4294901760
    %v2231 = vsub.f32 %v2229, %v2230
    %v2232 = vand.u32 %v2231, 4294901760
    %2233 = vmatpush.msra.mxu0 %v2232
    %v2234 = vand.u32 %v1795, 4294901760
    %v2235 = vsub.f32 %v1795, %v2234
    %v2236 = vand.u32 %v2235, 4294901760
    %v2237 = vsub.f32 %v2235, %v2236
    %v2238 = vand.u32 %v2237, 4294901760
    %2239 = vmatpush.msra.mxu0 %v2238
    %v2240 = vand.u32 %v1794, 4294901760
    %v2241 = vsub.f32 %v1794, %v2240
    %v2242 = vand.u32 %v2241, 4294901760
    %v2243 = vsub.f32 %v2241, %v2242
    %v2244 = vand.u32 %v2243, 4294901760
    %2245 = vmatpush.msra.mxu0 %v2244
    %v2246 = vand.u32 %v1793, 4294901760
    %v2247 = vsub.f32 %v1793, %v2246
    %v2248 = vand.u32 %v2247, 4294901760
    %v2249 = vsub.f32 %v2247, %v2248
    %v2250 = vand.u32 %v2249, 4294901760
    %2251 = vmatpush.msra.mxu0 %v2250
    %v2252 = vand.u32 %v1792, 4294901760
    %v2253 = vsub.f32 %v1792, %v2252
    %v2254 = vand.u32 %v2253, 4294901760
    %v2255 = vsub.f32 %v2253, %v2254
    %v2256 = vand.u32 %v2255, 4294901760
    %2257 = vmatpush.msra.mxu0 %v2256
    %v2258 = vand.u32 %v1791, 4294901760
    %v2259 = vsub.f32 %v1791, %v2258
    %v2260 = vand.u32 %v2259, 4294901760
    %v2261 = vsub.f32 %v2259, %v2260
    %v2262 = vand.u32 %v2261, 4294901760
    %2263 = vmatpush.msra.mxu0 %v2262
    %v2264 = vand.u32 %v1790, 4294901760
    %v2265 = vsub.f32 %v1790, %v2264
    %v2266 = vand.u32 %v2265, 4294901760
    %v2267 = vsub.f32 %v2265, %v2266
    %v2268 = vand.u32 %v2267, 4294901760
    %2269 = vmatpush.msra.mxu0 %v2268
    %v2270 = vand.u32 %v1789, 4294901760
    %v2271 = vsub.f32 %v1789, %v2270
    %v2272 = vand.u32 %v2271, 4294901760
    %v2273 = vsub.f32 %v2271, %v2272
    %v2274 = vand.u32 %v2273, 4294901760
    %2275 = vmatpush.msra.mxu0 %v2274
    %v2276 = vand.u32 %v1788, 4294901760
    %v2277 = vsub.f32 %v1788, %v2276
    %v2278 = vand.u32 %v2277, 4294901760
    %v2279 = vsub.f32 %v2277, %v2278
    %v2280 = vand.u32 %v2279, 4294901760
    %2281 = vmatpush.msra.mxu0 %v2280
    %v2282 = vand.u32 %v1771, 4294901760
    %2283 = vmatmul.f32.gmra.mxu0 %v2282
    %v2284 = vpop.f32.mrf.mxu0
    %v2285 = vadd.f32 %v2184, %v2284
    %2286 = vdwg.mxu0
    %v2287 = vand.u32 %v1803, 4294901760
    %v2288 = vsub.f32 %v1803, %v2287
    %2289 = vmatpush.msra.mxu0 %v2288
    %v2290 = vand.u32 %v1802, 4294901760
    %v2291 = vsub.f32 %v1802, %v2290
    %2292 = vmatpush.msra.mxu0 %v2291
    %v2293 = vand.u32 %v1801, 4294901760
    %v2294 = vsub.f32 %v1801, %v2293
    %2295 = vmatpush.msra.mxu0 %v2294
    %v2296 = vand.u32 %v1800, 4294901760
    %v2297 = vsub.f32 %v1800, %v2296
    %2298 = vmatpush.msra.mxu0 %v2297
    %v2299 = vand.u32 %v1799, 4294901760
    %v2300 = vsub.f32 %v1799, %v2299
    %2301 = vmatpush.msra.mxu0 %v2300
    %v2302 = vand.u32 %v1798, 4294901760
    %v2303 = vsub.f32 %v1798, %v2302
    %2304 = vmatpush.msra.mxu0 %v2303
    %v2305 = vand.u32 %v1797, 4294901760
    %v2306 = vsub.f32 %v1797, %v2305
    %2307 = vmatpush.msra.mxu0 %v2306
    %v2308 = vand.u32 %v1796, 4294901760
    %v2309 = vsub.f32 %v1796, %v2308
    %2310 = vmatpush.msra.mxu0 %v2309
    %v2311 = vand.u32 %v1795, 4294901760
    %v2312 = vsub.f32 %v1795, %v2311
    %2313 = vmatpush.msra.mxu0 %v2312
    %v2314 = vand.u32 %v1794, 4294901760
    %v2315 = vsub.f32 %v1794, %v2314
    %2316 = vmatpush.msra.mxu0 %v2315
    %v2317 = vand.u32 %v1793, 4294901760
    %v2318 = vsub.f32 %v1793, %v2317
    %2319 = vmatpush.msra.mxu0 %v2318
    %v2320 = vand.u32 %v1792, 4294901760
    %v2321 = vsub.f32 %v1792, %v2320
    %2322 = vmatpush.msra.mxu0 %v2321
    %v2323 = vand.u32 %v1791, 4294901760
    %v2324 = vsub.f32 %v1791, %v2323
    %2325 = vmatpush.msra.mxu0 %v2324
    %v2326 = vand.u32 %v1790, 4294901760
    %v2327 = vsub.f32 %v1790, %v2326
    %2328 = vmatpush.msra.mxu0 %v2327
    %v2329 = vand.u32 %v1789, 4294901760
    %v2330 = vsub.f32 %v1789, %v2329
    %2331 = vmatpush.msra.mxu0 %v2330
    %v2332 = vand.u32 %v1788, 4294901760
    %v2333 = vsub.f32 %v1788, %v2332
    %2334 = vmatpush.msra.mxu0 %v2333
    %v2335 = vand.u32 %v1771, 4294901760
    %v2336 = vsub.f32 %v1771, %v2335
    %2337 = vmatmul.f32.gmra.mxu0 %v2336
    %v2338 = vpop.f32.mrf.mxu0
    %v2339 = vadd.f32 %v2285, %v2338
    %2340 = vdwg.mxu0
    %v2341 = vand.u32 %v1803, 4294901760
    %2342 = vmatpush.msra.mxu0 %v2341
    %v2343 = vand.u32 %v1802, 4294901760
    %2344 = vmatpush.msra.mxu0 %v2343
    %v2345 = vand.u32 %v1801, 4294901760
    %2346 = vmatpush.msra.mxu0 %v2345
    %v2347 = vand.u32 %v1800, 4294901760
    %2348 = vmatpush.msra.mxu0 %v2347
    %v2349 = vand.u32 %v1799, 4294901760
    %2350 = vmatpush.msra.mxu0 %v2349
    %v2351 = vand.u32 %v1798, 4294901760
    %2352 = vmatpush.msra.mxu0 %v2351
    %v2353 = vand.u32 %v1797, 4294901760
    %2354 = vmatpush.msra.mxu0 %v2353
    %v2355 = vand.u32 %v1796, 4294901760
    %2356 = vmatpush.msra.mxu0 %v2355
    %v2357 = vand.u32 %v1795, 4294901760
    %2358 = vmatpush.msra.mxu0 %v2357
    %v2359 = vand.u32 %v1794, 4294901760
    %2360 = vmatpush.msra.mxu0 %v2359
    %v2361 = vand.u32 %v1793, 4294901760
    %2362 = vmatpush.msra.mxu0 %v2361
    %v2363 = vand.u32 %v1792, 4294901760
    %2364 = vmatpush.msra.mxu0 %v2363
    %v2365 = vand.u32 %v1791, 4294901760
    %2366 = vmatpush.msra.mxu0 %v2365
    %v2367 = vand.u32 %v1790, 4294901760
    %2368 = vmatpush.msra.mxu0 %v2367
    %v2369 = vand.u32 %v1789, 4294901760
    %2370 = vmatpush.msra.mxu0 %v2369
    %v2371 = vand.u32 %v1788, 4294901760
    %2372 = vmatpush.msra.mxu0 %v2371
    %v2373 = vand.u32 %v1771, 4294901760
    %v2374 = vsub.f32 %v1771, %v2373
    %v2375 = vand.u32 %v2374, 4294901760
    %2376 = vmatmul.f32.gmra.mxu0 %v2375
    %v2377 = vpop.f32.mrf.mxu0
    %v2378 = vadd.f32 %v2339, %v2377
    %2379 = vdwg.mxu0
    %v2380 = vand.u32 %v1803, 4294901760
    %v2381 = vsub.f32 %v1803, %v2380
    %v2382 = vand.u32 %v2381, 4294901760
    %2383 = vmatpush.msra.mxu0 %v2382
    %v2384 = vand.u32 %v1802, 4294901760
    %v2385 = vsub.f32 %v1802, %v2384
    %v2386 = vand.u32 %v2385, 4294901760
    %2387 = vmatpush.msra.mxu0 %v2386
    %v2388 = vand.u32 %v1801, 4294901760
    %v2389 = vsub.f32 %v1801, %v2388
    %v2390 = vand.u32 %v2389, 4294901760
    %2391 = vmatpush.msra.mxu0 %v2390
    %v2392 = vand.u32 %v1800, 4294901760
    %v2393 = vsub.f32 %v1800, %v2392
    %v2394 = vand.u32 %v2393, 4294901760
    %2395 = vmatpush.msra.mxu0 %v2394
    %v2396 = vand.u32 %v1799, 4294901760
    %v2397 = vsub.f32 %v1799, %v2396
    %v2398 = vand.u32 %v2397, 4294901760
    %2399 = vmatpush.msra.mxu0 %v2398
    %v2400 = vand.u32 %v1798, 4294901760
    %v2401 = vsub.f32 %v1798, %v2400
    %v2402 = vand.u32 %v2401, 4294901760
    %2403 = vmatpush.msra.mxu0 %v2402
    %v2404 = vand.u32 %v1797, 4294901760
    %v2405 = vsub.f32 %v1797, %v2404
    %v2406 = vand.u32 %v2405, 4294901760
    %2407 = vmatpush.msra.mxu0 %v2406
    %v2408 = vand.u32 %v1796, 4294901760
    %v2409 = vsub.f32 %v1796, %v2408
    %v2410 = vand.u32 %v2409, 4294901760
    %2411 = vmatpush.msra.mxu0 %v2410
    %v2412 = vand.u32 %v1795, 4294901760
    %v2413 = vsub.f32 %v1795, %v2412
    %v2414 = vand.u32 %v2413, 4294901760
    %2415 = vmatpush.msra.mxu0 %v2414
    %v2416 = vand.u32 %v1794, 4294901760
    %v2417 = vsub.f32 %v1794, %v2416
    %v2418 = vand.u32 %v2417, 4294901760
    %2419 = vmatpush.msra.mxu0 %v2418
    %v2420 = vand.u32 %v1793, 4294901760
    %v2421 = vsub.f32 %v1793, %v2420
    %v2422 = vand.u32 %v2421, 4294901760
    %2423 = vmatpush.msra.mxu0 %v2422
    %v2424 = vand.u32 %v1792, 4294901760
    %v2425 = vsub.f32 %v1792, %v2424
    %v2426 = vand.u32 %v2425, 4294901760
    %2427 = vmatpush.msra.mxu0 %v2426
    %v2428 = vand.u32 %v1791, 4294901760
    %v2429 = vsub.f32 %v1791, %v2428
    %v2430 = vand.u32 %v2429, 4294901760
    %2431 = vmatpush.msra.mxu0 %v2430
    %v2432 = vand.u32 %v1790, 4294901760
    %v2433 = vsub.f32 %v1790, %v2432
    %v2434 = vand.u32 %v2433, 4294901760
    %2435 = vmatpush.msra.mxu0 %v2434
    %v2436 = vand.u32 %v1789, 4294901760
    %v2437 = vsub.f32 %v1789, %v2436
    %v2438 = vand.u32 %v2437, 4294901760
    %2439 = vmatpush.msra.mxu0 %v2438
    %v2440 = vand.u32 %v1788, 4294901760
    %v2441 = vsub.f32 %v1788, %v2440
    %v2442 = vand.u32 %v2441, 4294901760
    %2443 = vmatpush.msra.mxu0 %v2442
    %v2444 = vand.u32 %v1771, 4294901760
    %2445 = vmatmul.f32.gmra.mxu0 %v2444
    %v2446 = vpop.f32.mrf.mxu0
    %v2447 = vadd.f32 %v2378, %v2446
    %2448 = vdwg.mxu0
    %v2449 = vand.u32 %v1803, 4294901760
    %2450 = vmatpush.msra.mxu0 %v2449
    %v2451 = vand.u32 %v1802, 4294901760
    %2452 = vmatpush.msra.mxu0 %v2451
    %v2453 = vand.u32 %v1801, 4294901760
    %2454 = vmatpush.msra.mxu0 %v2453
    %v2455 = vand.u32 %v1800, 4294901760
    %2456 = vmatpush.msra.mxu0 %v2455
    %v2457 = vand.u32 %v1799, 4294901760
    %2458 = vmatpush.msra.mxu0 %v2457
    %v2459 = vand.u32 %v1798, 4294901760
    %2460 = vmatpush.msra.mxu0 %v2459
    %v2461 = vand.u32 %v1797, 4294901760
    %2462 = vmatpush.msra.mxu0 %v2461
    %v2463 = vand.u32 %v1796, 4294901760
    %2464 = vmatpush.msra.mxu0 %v2463
    %v2465 = vand.u32 %v1795, 4294901760
    %2466 = vmatpush.msra.mxu0 %v2465
    %v2467 = vand.u32 %v1794, 4294901760
    %2468 = vmatpush.msra.mxu0 %v2467
    %v2469 = vand.u32 %v1793, 4294901760
    %2470 = vmatpush.msra.mxu0 %v2469
    %v2471 = vand.u32 %v1792, 4294901760
    %2472 = vmatpush.msra.mxu0 %v2471
    %v2473 = vand.u32 %v1791, 4294901760
    %2474 = vmatpush.msra.mxu0 %v2473
    %v2475 = vand.u32 %v1790, 4294901760
    %2476 = vmatpush.msra.mxu0 %v2475
    %v2477 = vand.u32 %v1789, 4294901760
    %2478 = vmatpush.msra.mxu0 %v2477
    %v2479 = vand.u32 %v1788, 4294901760
    %2480 = vmatpush.msra.mxu0 %v2479
    %v2481 = vand.u32 %v1771, 4294901760
    %2482 = vmatmul.f32.gmra.mxu0 %v2481
    %v2483 = vpop.f32.mrf.mxu0
    %v2484 = vadd.f32 %v2447, %v2483
    %2485 = vdwg.mxu0
    %v2486 = vld [vmem:[%s8] sm:$0xff]
    %v2487 = vld [vmem:[%s8 + $0x8] sm:$0xff]
    %vm2488 = vcmask 64512
    %v2490 = vsel %vm2488, %v2484, 0
    %2492 = vmatpush.msra.mxu0 0.0
    %2493 = vmatpush.msra.mxu0 0.0
    %2494 = vmatpush.msra.mxu0 0.0
    %2495 = vmatpush.msra.mxu0 0.0
    %2496 = vmatpush.msra.mxu0 0.0
    %2497 = vmatpush.msra.mxu0 0.0
    %2498 = vmatpush.msra.mxu0 0.0
    %2499 = vmatpush.msra.mxu0 0.0
    %2500 = vmatpush.msra.mxu0 0.0
    %2501 = vmatpush.msra.mxu0 0.0
    %2502 = vmatpush.msra.mxu0 0.0
    %2503 = vmatpush.msra.mxu0 0.0
    %2504 = vmatpush.msra.mxu0 0.0
    %2505 = vmatpush.msra.mxu0 0.0
    %2506 = vmatpush.msra.mxu0 0.0
    %v2507 = vand.u32 %v2486, 4294901760
    %2508 = vmatpush.msra.mxu0 %v2507
    %v2509 = vand.u32 %v2490, 4294901760
    %v2510 = vsub.f32 %v2490, %v2509
    %v2511 = vand.u32 %v2510, 4294901760
    %v2512 = vsub.f32 %v2510, %v2511
    %v2513 = vand.u32 %v2512, 4294901760
    %2514 = vmatmul.f32.gmra.mxu0 %v2513
    %v2515 = vpop.f32.mrf.mxu0
    %v2516 = vadd.f32 0.0, %v2515
    %2517 = vdwg.mxu0
    %2518 = vmatpush.msra.mxu0 0.0
    %2519 = vmatpush.msra.mxu0 0.0
    %2520 = vmatpush.msra.mxu0 0.0
    %2521 = vmatpush.msra.mxu0 0.0
    %2522 = vmatpush.msra.mxu0 0.0
    %2523 = vmatpush.msra.mxu0 0.0
    %2524 = vmatpush.msra.mxu0 0.0
    %2525 = vmatpush.msra.mxu0 0.0
    %2526 = vmatpush.msra.mxu0 0.0
    %2527 = vmatpush.msra.mxu0 0.0
    %2528 = vmatpush.msra.mxu0 0.0
    %2529 = vmatpush.msra.mxu0 0.0
    %2530 = vmatpush.msra.mxu0 0.0
    %2531 = vmatpush.msra.mxu0 0.0
    %2532 = vmatpush.msra.mxu0 0.0
    %v2533 = vand.u32 %v2486, 4294901760
    %v2534 = vsub.f32 %v2486, %v2533
    %v2535 = vand.u32 %v2534, 4294901760
    %v2536 = vsub.f32 %v2534, %v2535
    %v2537 = vand.u32 %v2536, 4294901760
    %2538 = vmatpush.msra.mxu0 %v2537
    %v2539 = vand.u32 %v2490, 4294901760
    %2540 = vmatmul.f32.gmra.mxu0 %v2539
    %v2541 = vpop.f32.mrf.mxu0
    %v2542 = vadd.f32 %v2516, %v2541
    %2543 = vdwg.mxu0
    %2544 = vmatpush.msra.mxu0 0.0
    %2545 = vmatpush.msra.mxu0 0.0
    %2546 = vmatpush.msra.mxu0 0.0
    %2547 = vmatpush.msra.mxu0 0.0
    %2548 = vmatpush.msra.mxu0 0.0
    %2549 = vmatpush.msra.mxu0 0.0
    %2550 = vmatpush.msra.mxu0 0.0
    %2551 = vmatpush.msra.mxu0 0.0
    %2552 = vmatpush.msra.mxu0 0.0
    %2553 = vmatpush.msra.mxu0 0.0
    %2554 = vmatpush.msra.mxu0 0.0
    %2555 = vmatpush.msra.mxu0 0.0
    %2556 = vmatpush.msra.mxu0 0.0
    %2557 = vmatpush.msra.mxu0 0.0
    %2558 = vmatpush.msra.mxu0 0.0
    %v2559 = vand.u32 %v2486, 4294901760
    %v2560 = vsub.f32 %v2486, %v2559
    %2561 = vmatpush.msra.mxu0 %v2560
    %v2562 = vand.u32 %v2490, 4294901760
    %v2563 = vsub.f32 %v2490, %v2562
    %2564 = vmatmul.f32.gmra.mxu0 %v2563
    %v2565 = vpop.f32.mrf.mxu0
    %v2566 = vadd.f32 %v2542, %v2565
    %2567 = vdwg.mxu0
    %2568 = vmatpush.msra.mxu0 0.0
    %2569 = vmatpush.msra.mxu0 0.0
    %2570 = vmatpush.msra.mxu0 0.0
    %2571 = vmatpush.msra.mxu0 0.0
    %2572 = vmatpush.msra.mxu0 0.0
    %2573 = vmatpush.msra.mxu0 0.0
    %2574 = vmatpush.msra.mxu0 0.0
    %2575 = vmatpush.msra.mxu0 0.0
    %2576 = vmatpush.msra.mxu0 0.0
    %2577 = vmatpush.msra.mxu0 0.0
    %2578 = vmatpush.msra.mxu0 0.0
    %2579 = vmatpush.msra.mxu0 0.0
    %2580 = vmatpush.msra.mxu0 0.0
    %2581 = vmatpush.msra.mxu0 0.0
    %2582 = vmatpush.msra.mxu0 0.0
    %v2583 = vand.u32 %v2486, 4294901760
    %2584 = vmatpush.msra.mxu0 %v2583
    %v2585 = vand.u32 %v2490, 4294901760
    %v2586 = vsub.f32 %v2490, %v2585
    %v2587 = vand.u32 %v2586, 4294901760
    %2588 = vmatmul.f32.gmra.mxu0 %v2587
    %v2589 = vpop.f32.mrf.mxu0
    %v2590 = vadd.f32 %v2566, %v2589
    %2591 = vdwg.mxu0
    %2592 = vmatpush.msra.mxu0 0.0
    %2593 = vmatpush.msra.mxu0 0.0
    %2594 = vmatpush.msra.mxu0 0.0
    %2595 = vmatpush.msra.mxu0 0.0
    %2596 = vmatpush.msra.mxu0 0.0
    %2597 = vmatpush.msra.mxu0 0.0
    %2598 = vmatpush.msra.mxu0 0.0
    %2599 = vmatpush.msra.mxu0 0.0
    %2600 = vmatpush.msra.mxu0 0.0
    %2601 = vmatpush.msra.mxu0 0.0
    %2602 = vmatpush.msra.mxu0 0.0
    %2603 = vmatpush.msra.mxu0 0.0
    %2604 = vmatpush.msra.mxu0 0.0
    %2605 = vmatpush.msra.mxu0 0.0
    %2606 = vmatpush.msra.mxu0 0.0
    %v2607 = vand.u32 %v2486, 4294901760
    %v2608 = vsub.f32 %v2486, %v2607
    %v2609 = vand.u32 %v2608, 4294901760
    %2610 = vmatpush.msra.mxu0 %v2609
    %v2611 = vand.u32 %v2490, 4294901760
    %2612 = vmatmul.f32.gmra.mxu0 %v2611
    %v2613 = vpop.f32.mrf.mxu0
    %v2614 = vadd.f32 %v2590, %v2613
    %2615 = vdwg.mxu0
    %2616 = vmatpush.msra.mxu0 0.0
    %2617 = vmatpush.msra.mxu0 0.0
    %2618 = vmatpush.msra.mxu0 0.0
    %2619 = vmatpush.msra.mxu0 0.0
    %2620 = vmatpush.msra.mxu0 0.0
    %2621 = vmatpush.msra.mxu0 0.0
    %2622 = vmatpush.msra.mxu0 0.0
    %2623 = vmatpush.msra.mxu0 0.0
    %2624 = vmatpush.msra.mxu0 0.0
    %2625 = vmatpush.msra.mxu0 0.0
    %2626 = vmatpush.msra.mxu0 0.0
    %2627 = vmatpush.msra.mxu0 0.0
    %2628 = vmatpush.msra.mxu0 0.0
    %2629 = vmatpush.msra.mxu0 0.0
    %2630 = vmatpush.msra.mxu0 0.0
    %v2631 = vand.u32 %v2486, 4294901760
    %2632 = vmatpush.msra.mxu0 %v2631
    %v2633 = vand.u32 %v2490, 4294901760
    %2634 = vmatmul.f32.gmra.mxu0 %v2633
    %v2635 = vpop.f32.mrf.mxu0
    %v2636 = vadd.f32 %v2614, %v2635
    %2637 = vdwg.mxu0
    %2638 = vmatpush.msra.mxu0 0.0
    %2639 = vmatpush.msra.mxu0 0.0
    %2640 = vmatpush.msra.mxu0 0.0
    %2641 = vmatpush.msra.mxu0 0.0
    %2642 = vmatpush.msra.mxu0 0.0
    %2643 = vmatpush.msra.mxu0 0.0
    %2644 = vmatpush.msra.mxu0 0.0
    %2645 = vmatpush.msra.mxu0 0.0
    %2646 = vmatpush.msra.mxu0 0.0
    %2647 = vmatpush.msra.mxu0 0.0
    %2648 = vmatpush.msra.mxu0 0.0
    %2649 = vmatpush.msra.mxu0 0.0
    %2650 = vmatpush.msra.mxu0 0.0
    %2651 = vmatpush.msra.mxu0 0.0
    %2652 = vmatpush.msra.mxu0 0.0
    %v2653 = vand.u32 %v2487, 4294901760
    %2654 = vmatpush.msra.mxu0 %v2653
    %v2655 = vand.u32 %v2490, 4294901760
    %v2656 = vsub.f32 %v2490, %v2655
    %v2657 = vand.u32 %v2656, 4294901760
    %v2658 = vsub.f32 %v2656, %v2657
    %v2659 = vand.u32 %v2658, 4294901760
    %2660 = vmatmul.f32.gmra.mxu0 %v2659
    %v2661 = vpop.f32.mrf.mxu0
    %v2662 = vadd.f32 0.0, %v2661
    %2663 = vdwg.mxu0
    %2664 = vmatpush.msra.mxu0 0.0
    %2665 = vmatpush.msra.mxu0 0.0
    %2666 = vmatpush.msra.mxu0 0.0
    %2667 = vmatpush.msra.mxu0 0.0
    %2668 = vmatpush.msra.mxu0 0.0
    %2669 = vmatpush.msra.mxu0 0.0
    %2670 = vmatpush.msra.mxu0 0.0
    %2671 = vmatpush.msra.mxu0 0.0
    %2672 = vmatpush.msra.mxu0 0.0
    %2673 = vmatpush.msra.mxu0 0.0
    %2674 = vmatpush.msra.mxu0 0.0
    %2675 = vmatpush.msra.mxu0 0.0
    %2676 = vmatpush.msra.mxu0 0.0
    %2677 = vmatpush.msra.mxu0 0.0
    %2678 = vmatpush.msra.mxu0 0.0
    %v2679 = vand.u32 %v2487, 4294901760
    %v2680 = vsub.f32 %v2487, %v2679
    %v2681 = vand.u32 %v2680, 4294901760
    %v2682 = vsub.f32 %v2680, %v2681
    %v2683 = vand.u32 %v2682, 4294901760
    %2684 = vmatpush.msra.mxu0 %v2683
    %v2685 = vand.u32 %v2490, 4294901760
    %2686 = vmatmul.f32.gmra.mxu0 %v2685
    %v2687 = vpop.f32.mrf.mxu0
    %v2688 = vadd.f32 %v2662, %v2687
    %2689 = vdwg.mxu0
    %2690 = vmatpush.msra.mxu0 0.0
    %2691 = vmatpush.msra.mxu0 0.0
    %2692 = vmatpush.msra.mxu0 0.0
    %2693 = vmatpush.msra.mxu0 0.0
    %2694 = vmatpush.msra.mxu0 0.0
    %2695 = vmatpush.msra.mxu0 0.0
    %2696 = vmatpush.msra.mxu0 0.0
    %2697 = vmatpush.msra.mxu0 0.0
    %2698 = vmatpush.msra.mxu0 0.0
    %2699 = vmatpush.msra.mxu0 0.0
    %2700 = vmatpush.msra.mxu0 0.0
    %2701 = vmatpush.msra.mxu0 0.0
    %2702 = vmatpush.msra.mxu0 0.0
    %2703 = vmatpush.msra.mxu0 0.0
    %2704 = vmatpush.msra.mxu0 0.0
    %v2705 = vand.u32 %v2487, 4294901760
    %v2706 = vsub.f32 %v2487, %v2705
    %2707 = vmatpush.msra.mxu0 %v2706
    %v2708 = vand.u32 %v2490, 4294901760
    %v2709 = vsub.f32 %v2490, %v2708
    %2710 = vmatmul.f32.gmra.mxu0 %v2709
    %v2711 = vpop.f32.mrf.mxu0
    %v2712 = vadd.f32 %v2688, %v2711
    %2713 = vdwg.mxu0
    %2714 = vmatpush.msra.mxu0 0.0
    %2715 = vmatpush.msra.mxu0 0.0
    %2716 = vmatpush.msra.mxu0 0.0
    %2717 = vmatpush.msra.mxu0 0.0
    %2718 = vmatpush.msra.mxu0 0.0
    %2719 = vmatpush.msra.mxu0 0.0
    %2720 = vmatpush.msra.mxu0 0.0
    %2721 = vmatpush.msra.mxu0 0.0
    %2722 = vmatpush.msra.mxu0 0.0
    %2723 = vmatpush.msra.mxu0 0.0
    %2724 = vmatpush.msra.mxu0 0.0
    %2725 = vmatpush.msra.mxu0 0.0
    %2726 = vmatpush.msra.mxu0 0.0
    %2727 = vmatpush.msra.mxu0 0.0
    %2728 = vmatpush.msra.mxu0 0.0
    %v2729 = vand.u32 %v2487, 4294901760
    %2730 = vmatpush.msra.mxu0 %v2729
    %v2731 = vand.u32 %v2490, 4294901760
    %v2732 = vsub.f32 %v2490, %v2731
    %v2733 = vand.u32 %v2732, 4294901760
    %2734 = vmatmul.f32.gmra.mxu0 %v2733
    %v2735 = vpop.f32.mrf.mxu0
    %v2736 = vadd.f32 %v2712, %v2735
    %2737 = vdwg.mxu0
    %2738 = vmatpush.msra.mxu0 0.0
    %2739 = vmatpush.msra.mxu0 0.0
    %2740 = vmatpush.msra.mxu0 0.0
    %2741 = vmatpush.msra.mxu0 0.0
    %2742 = vmatpush.msra.mxu0 0.0
    %2743 = vmatpush.msra.mxu0 0.0
    %2744 = vmatpush.msra.mxu0 0.0
    %2745 = vmatpush.msra.mxu0 0.0
    %2746 = vmatpush.msra.mxu0 0.0
    %2747 = vmatpush.msra.mxu0 0.0
    %2748 = vmatpush.msra.mxu0 0.0
    %2749 = vmatpush.msra.mxu0 0.0
    %2750 = vmatpush.msra.mxu0 0.0
    %2751 = vmatpush.msra.mxu0 0.0
    %2752 = vmatpush.msra.mxu0 0.0
    %v2753 = vand.u32 %v2487, 4294901760
    %v2754 = vsub.f32 %v2487, %v2753
    %v2755 = vand.u32 %v2754, 4294901760
    %2756 = vmatpush.msra.mxu0 %v2755
    %v2757 = vand.u32 %v2490, 4294901760
    %2758 = vmatmul.f32.gmra.mxu0 %v2757
    %v2759 = vpop.f32.mrf.mxu0
    %v2760 = vadd.f32 %v2736, %v2759
    %2761 = vdwg.mxu0
    %2762 = vmatpush.msra.mxu0 0.0
    %2763 = vmatpush.msra.mxu0 0.0
    %2764 = vmatpush.msra.mxu0 0.0
    %2765 = vmatpush.msra.mxu0 0.0
    %2766 = vmatpush.msra.mxu0 0.0
    %2767 = vmatpush.msra.mxu0 0.0
    %2768 = vmatpush.msra.mxu0 0.0
    %2769 = vmatpush.msra.mxu0 0.0
    %2770 = vmatpush.msra.mxu0 0.0
    %2771 = vmatpush.msra.mxu0 0.0
    %2772 = vmatpush.msra.mxu0 0.0
    %2773 = vmatpush.msra.mxu0 0.0
    %2774 = vmatpush.msra.mxu0 0.0
    %2775 = vmatpush.msra.mxu0 0.0
    %2776 = vmatpush.msra.mxu0 0.0
    %v2777 = vand.u32 %v2487, 4294901760
    %2778 = vmatpush.msra.mxu0 %v2777
    %v2779 = vand.u32 %v2490, 4294901760
    %2780 = vmatmul.f32.gmra.mxu0 %v2779
    %v2781 = vpop.f32.mrf.mxu0
    %v2782 = vadd.f32 %v2760, %v2781
    %2783 = vdwg.mxu0
    %v2784 = vperm.slane %v2636, 0
    %v2785 = vperm.slane %v2782, 0
    %v2786 = vsub.f32 %v1727, %v2784
    %v2787 = vsub.f32 %v1728, %v2785
    %v2788 = vsub.f32 %v1729, %v2784
    %v2789 = vsub.f32 %v1730, %v2785
    %v2790 = vsub.f32 %v1731, %v2784
    %v2791 = vsub.f32 %v1732, %v2785
    %v2792 = vsub.f32 %v1733, %v2784
    %v2793 = vsub.f32 %v1734, %v2785
    %v2794 = vsub.f32 %v1735, %v2784
    %v2795 = vsub.f32 %v1736, %v2785
    %v2796 = vsub.f32 %v1737, %v2784
    %v2797 = vsub.f32 %v1738, %v2785
    %v2798 = vsub.f32 %v1739, %v2784
    %v2799 = vsub.f32 %v1740, %v2785
    %v2800 = vsub.f32 %v1741, %v2784
    %v2801 = vsub.f32 %v1742, %v2785
    %v2802 = vmul.f32 %v2786, %v2786
    %v2803 = vmul.f32 %v2787, %v2787
    %v2804 = vmul.f32 %v2788, %v2788
    %v2805 = vmul.f32 %v2789, %v2789
    %v2806 = vmul.f32 %v2790, %v2790
    %v2807 = vmul.f32 %v2791, %v2791
    %v2808 = vmul.f32 %v2792, %v2792
    %v2809 = vmul.f32 %v2793, %v2793
    %v2810 = vmul.f32 %v2794, %v2794
    %v2811 = vmul.f32 %v2795, %v2795
    %v2812 = vmul.f32 %v2796, %v2796
    %v2813 = vmul.f32 %v2797, %v2797
    %v2814 = vmul.f32 %v2798, %v2798
    %v2815 = vmul.f32 %v2799, %v2799
    %v2816 = vmul.f32 %v2800, %v2800
    %v2817 = vmul.f32 %v2801, %v2801
    %v2818 = vadd.f32 %v2802, %v2804
    %v2819 = vadd.f32 %v2818, %v2806
    %v2820 = vadd.f32 %v2819, %v2808
    %v2821 = vadd.f32 %v2820, %v2810
    %v2822 = vadd.f32 %v2821, %v2812
    %v2823 = vadd.f32 %v2822, %v2814
    %v2824 = vsel %vm1749, %v2816, 0.0
    %v2825 = vadd.f32 %v2823, %v2824
    %v2826 = vrot.slane %v2825, 4
    %v2827 = vadd.f32 %v2825, %v2826
    %v2828 = vrot.slane %v2827, 2
    %v2829 = vadd.f32 %v2827, %v2828
    %v2830 = vrot.slane %v2829, 1
    %v2831 = vadd.f32 %v2829, %v2830
    %v2832 = vadd.f32 %v2803, %v2805
    %v2833 = vadd.f32 %v2832, %v2807
    %v2834 = vadd.f32 %v2833, %v2809
    %v2835 = vadd.f32 %v2834, %v2811
    %v2836 = vadd.f32 %v2835, %v2813
    %v2837 = vadd.f32 %v2836, %v2815
    %v2838 = vsel %vm1749, %v2817, 0.0
    %v2839 = vadd.f32 %v2837, %v2838
    %v2840 = vrot.slane %v2839, 4
    %v2841 = vadd.f32 %v2839, %v2840
    %v2842 = vrot.slane %v2841, 2
    %v2843 = vadd.f32 %v2841, %v2842
    %v2844 = vrot.slane %v2843, 1
    %v2845 = vadd.f32 %v2843, %v2844
    %v2846 = vand.u32 %v1787, 4294901760
    %2847 = vmatpush.msra.mxu0 %v2846
    %v2848 = vand.u32 %v1786, 4294901760
    %2849 = vmatpush.msra.mxu0 %v2848
    %v2850 = vand.u32 %v1785, 4294901760
    %2851 = vmatpush.msra.mxu0 %v2850
    %v2852 = vand.u32 %v1784, 4294901760
    %2853 = vmatpush.msra.mxu0 %v2852
    %v2854 = vand.u32 %v1783, 4294901760
    %2855 = vmatpush.msra.mxu0 %v2854
    %v2856 = vand.u32 %v1782, 4294901760
    %2857 = vmatpush.msra.mxu0 %v2856
    %v2858 = vand.u32 %v1781, 4294901760
    %2859 = vmatpush.msra.mxu0 %v2858
    %v2860 = vand.u32 %v1780, 4294901760
    %2861 = vmatpush.msra.mxu0 %v2860
    %v2862 = vand.u32 %v1779, 4294901760
    %2863 = vmatpush.msra.mxu0 %v2862
    %v2864 = vand.u32 %v1778, 4294901760
    %2865 = vmatpush.msra.mxu0 %v2864
    %v2866 = vand.u32 %v1777, 4294901760
    %2867 = vmatpush.msra.mxu0 %v2866
    %v2868 = vand.u32 %v1776, 4294901760
    %2869 = vmatpush.msra.mxu0 %v2868
    %v2870 = vand.u32 %v1775, 4294901760
    %2871 = vmatpush.msra.mxu0 %v2870
    %v2872 = vand.u32 %v1774, 4294901760
    %2873 = vmatpush.msra.mxu0 %v2872
    %v2874 = vand.u32 %v1773, 4294901760
    %2875 = vmatpush.msra.mxu0 %v2874
    %v2876 = vand.u32 %v1772, 4294901760
    %2877 = vmatpush.msra.mxu0 %v2876
    %v2878 = vand.u32 %v2831, 4294901760
    %v2879 = vsub.f32 %v2831, %v2878
    %v2880 = vand.u32 %v2879, 4294901760
    %v2881 = vsub.f32 %v2879, %v2880
    %v2882 = vand.u32 %v2881, 4294901760
    %2883 = vmatmul.f32.gmra.mxu0 %v2882
    %v2884 = vpop.f32.mrf.mxu0
    %v2885 = vadd.f32 1e-05, %v2884
    %2886 = vdwg.mxu0
    %v2887 = vand.u32 %v1787, 4294901760
    %v2888 = vsub.f32 %v1787, %v2887
    %v2889 = vand.u32 %v2888, 4294901760
    %v2890 = vsub.f32 %v2888, %v2889
    %v2891 = vand.u32 %v2890, 4294901760
    %2892 = vmatpush.msra.mxu0 %v2891
    %v2893 = vand.u32 %v1786, 4294901760
    %v2894 = vsub.f32 %v1786, %v2893
    %v2895 = vand.u32 %v2894, 4294901760
    %v2896 = vsub.f32 %v2894, %v2895
    %v2897 = vand.u32 %v2896, 4294901760
    %2898 = vmatpush.msra.mxu0 %v2897
    %v2899 = vand.u32 %v1785, 4294901760
    %v2900 = vsub.f32 %v1785, %v2899
    %v2901 = vand.u32 %v2900, 4294901760
    %v2902 = vsub.f32 %v2900, %v2901
    %v2903 = vand.u32 %v2902, 4294901760
    %2904 = vmatpush.msra.mxu0 %v2903
    %v2905 = vand.u32 %v1784, 4294901760
    %v2906 = vsub.f32 %v1784, %v2905
    %v2907 = vand.u32 %v2906, 4294901760
    %v2908 = vsub.f32 %v2906, %v2907
    %v2909 = vand.u32 %v2908, 4294901760
    %2910 = vmatpush.msra.mxu0 %v2909
    %v2911 = vand.u32 %v1783, 4294901760
    %v2912 = vsub.f32 %v1783, %v2911
    %v2913 = vand.u32 %v2912, 4294901760
    %v2914 = vsub.f32 %v2912, %v2913
    %v2915 = vand.u32 %v2914, 4294901760
    %2916 = vmatpush.msra.mxu0 %v2915
    %v2917 = vand.u32 %v1782, 4294901760
    %v2918 = vsub.f32 %v1782, %v2917
    %v2919 = vand.u32 %v2918, 4294901760
    %v2920 = vsub.f32 %v2918, %v2919
    %v2921 = vand.u32 %v2920, 4294901760
    %2922 = vmatpush.msra.mxu0 %v2921
    %v2923 = vand.u32 %v1781, 4294901760
    %v2924 = vsub.f32 %v1781, %v2923
    %v2925 = vand.u32 %v2924, 4294901760
    %v2926 = vsub.f32 %v2924, %v2925
    %v2927 = vand.u32 %v2926, 4294901760
    %2928 = vmatpush.msra.mxu0 %v2927
    %v2929 = vand.u32 %v1780, 4294901760
    %v2930 = vsub.f32 %v1780, %v2929
    %v2931 = vand.u32 %v2930, 4294901760
    %v2932 = vsub.f32 %v2930, %v2931
    %v2933 = vand.u32 %v2932, 4294901760
    %2934 = vmatpush.msra.mxu0 %v2933
    %v2935 = vand.u32 %v1779, 4294901760
    %v2936 = vsub.f32 %v1779, %v2935
    %v2937 = vand.u32 %v2936, 4294901760
    %v2938 = vsub.f32 %v2936, %v2937
    %v2939 = vand.u32 %v2938, 4294901760
    %2940 = vmatpush.msra.mxu0 %v2939
    %v2941 = vand.u32 %v1778, 4294901760
    %v2942 = vsub.f32 %v1778, %v2941
    %v2943 = vand.u32 %v2942, 4294901760
    %v2944 = vsub.f32 %v2942, %v2943
    %v2945 = vand.u32 %v2944, 4294901760
    %2946 = vmatpush.msra.mxu0 %v2945
    %v2947 = vand.u32 %v1777, 4294901760
    %v2948 = vsub.f32 %v1777, %v2947
    %v2949 = vand.u32 %v2948, 4294901760
    %v2950 = vsub.f32 %v2948, %v2949
    %v2951 = vand.u32 %v2950, 4294901760
    %2952 = vmatpush.msra.mxu0 %v2951
    %v2953 = vand.u32 %v1776, 4294901760
    %v2954 = vsub.f32 %v1776, %v2953
    %v2955 = vand.u32 %v2954, 4294901760
    %v2956 = vsub.f32 %v2954, %v2955
    %v2957 = vand.u32 %v2956, 4294901760
    %2958 = vmatpush.msra.mxu0 %v2957
    %v2959 = vand.u32 %v1775, 4294901760
    %v2960 = vsub.f32 %v1775, %v2959
    %v2961 = vand.u32 %v2960, 4294901760
    %v2962 = vsub.f32 %v2960, %v2961
    %v2963 = vand.u32 %v2962, 4294901760
    %2964 = vmatpush.msra.mxu0 %v2963
    %v2965 = vand.u32 %v1774, 4294901760
    %v2966 = vsub.f32 %v1774, %v2965
    %v2967 = vand.u32 %v2966, 4294901760
    %v2968 = vsub.f32 %v2966, %v2967
    %v2969 = vand.u32 %v2968, 4294901760
    %2970 = vmatpush.msra.mxu0 %v2969
    %v2971 = vand.u32 %v1773, 4294901760
    %v2972 = vsub.f32 %v1773, %v2971
    %v2973 = vand.u32 %v2972, 4294901760
    %v2974 = vsub.f32 %v2972, %v2973
    %v2975 = vand.u32 %v2974, 4294901760
    %2976 = vmatpush.msra.mxu0 %v2975
    %v2977 = vand.u32 %v1772, 4294901760
    %v2978 = vsub.f32 %v1772, %v2977
    %v2979 = vand.u32 %v2978, 4294901760
    %v2980 = vsub.f32 %v2978, %v2979
    %v2981 = vand.u32 %v2980, 4294901760
    %2982 = vmatpush.msra.mxu0 %v2981
    %v2983 = vand.u32 %v2831, 4294901760
    %2984 = vmatmul.f32.gmra.mxu0 %v2983
    %v2985 = vpop.f32.mrf.mxu0
    %v2986 = vadd.f32 %v2885, %v2985
    %2987 = vdwg.mxu0
    %v2988 = vand.u32 %v1787, 4294901760
    %v2989 = vsub.f32 %v1787, %v2988
    %2990 = vmatpush.msra.mxu0 %v2989
    %v2991 = vand.u32 %v1786, 4294901760
    %v2992 = vsub.f32 %v1786, %v2991
    %2993 = vmatpush.msra.mxu0 %v2992
    %v2994 = vand.u32 %v1785, 4294901760
    %v2995 = vsub.f32 %v1785, %v2994
    %2996 = vmatpush.msra.mxu0 %v2995
    %v2997 = vand.u32 %v1784, 4294901760
    %v2998 = vsub.f32 %v1784, %v2997
    %2999 = vmatpush.msra.mxu0 %v2998
    %v3000 = vand.u32 %v1783, 4294901760
    %v3001 = vsub.f32 %v1783, %v3000
    %3002 = vmatpush.msra.mxu0 %v3001
    %v3003 = vand.u32 %v1782, 4294901760
    %v3004 = vsub.f32 %v1782, %v3003
    %3005 = vmatpush.msra.mxu0 %v3004
    %v3006 = vand.u32 %v1781, 4294901760
    %v3007 = vsub.f32 %v1781, %v3006
    %3008 = vmatpush.msra.mxu0 %v3007
    %v3009 = vand.u32 %v1780, 4294901760
    %v3010 = vsub.f32 %v1780, %v3009
    %3011 = vmatpush.msra.mxu0 %v3010
    %v3012 = vand.u32 %v1779, 4294901760
    %v3013 = vsub.f32 %v1779, %v3012
    %3014 = vmatpush.msra.mxu0 %v3013
    %v3015 = vand.u32 %v1778, 4294901760
    %v3016 = vsub.f32 %v1778, %v3015
    %3017 = vmatpush.msra.mxu0 %v3016
    %v3018 = vand.u32 %v1777, 4294901760
    %v3019 = vsub.f32 %v1777, %v3018
    %3020 = vmatpush.msra.mxu0 %v3019
    %v3021 = vand.u32 %v1776, 4294901760
    %v3022 = vsub.f32 %v1776, %v3021
    %3023 = vmatpush.msra.mxu0 %v3022
    %v3024 = vand.u32 %v1775, 4294901760
    %v3025 = vsub.f32 %v1775, %v3024
    %3026 = vmatpush.msra.mxu0 %v3025
    %v3027 = vand.u32 %v1774, 4294901760
    %v3028 = vsub.f32 %v1774, %v3027
    %3029 = vmatpush.msra.mxu0 %v3028
    %v3030 = vand.u32 %v1773, 4294901760
    %v3031 = vsub.f32 %v1773, %v3030
    %3032 = vmatpush.msra.mxu0 %v3031
    %v3033 = vand.u32 %v1772, 4294901760
    %v3034 = vsub.f32 %v1772, %v3033
    %3035 = vmatpush.msra.mxu0 %v3034
    %v3036 = vand.u32 %v2831, 4294901760
    %v3037 = vsub.f32 %v2831, %v3036
    %3038 = vmatmul.f32.gmra.mxu0 %v3037
    %v3039 = vpop.f32.mrf.mxu0
    %v3040 = vadd.f32 %v2986, %v3039
    %3041 = vdwg.mxu0
    %v3042 = vand.u32 %v1787, 4294901760
    %3043 = vmatpush.msra.mxu0 %v3042
    %v3044 = vand.u32 %v1786, 4294901760
    %3045 = vmatpush.msra.mxu0 %v3044
    %v3046 = vand.u32 %v1785, 4294901760
    %3047 = vmatpush.msra.mxu0 %v3046
    %v3048 = vand.u32 %v1784, 4294901760
    %3049 = vmatpush.msra.mxu0 %v3048
    %v3050 = vand.u32 %v1783, 4294901760
    %3051 = vmatpush.msra.mxu0 %v3050
    %v3052 = vand.u32 %v1782, 4294901760
    %3053 = vmatpush.msra.mxu0 %v3052
    %v3054 = vand.u32 %v1781, 4294901760
    %3055 = vmatpush.msra.mxu0 %v3054
    %v3056 = vand.u32 %v1780, 4294901760
    %3057 = vmatpush.msra.mxu0 %v3056
    %v3058 = vand.u32 %v1779, 4294901760
    %3059 = vmatpush.msra.mxu0 %v3058
    %v3060 = vand.u32 %v1778, 4294901760
    %3061 = vmatpush.msra.mxu0 %v3060
    %v3062 = vand.u32 %v1777, 4294901760
    %3063 = vmatpush.msra.mxu0 %v3062
    %v3064 = vand.u32 %v1776, 4294901760
    %3065 = vmatpush.msra.mxu0 %v3064
    %v3066 = vand.u32 %v1775, 4294901760
    %3067 = vmatpush.msra.mxu0 %v3066
    %v3068 = vand.u32 %v1774, 4294901760
    %3069 = vmatpush.msra.mxu0 %v3068
    %v3070 = vand.u32 %v1773, 4294901760
    %3071 = vmatpush.msra.mxu0 %v3070
    %v3072 = vand.u32 %v1772, 4294901760
    %3073 = vmatpush.msra.mxu0 %v3072
    %v3074 = vand.u32 %v2831, 4294901760
    %v3075 = vsub.f32 %v2831, %v3074
    %v3076 = vand.u32 %v3075, 4294901760
    %3077 = vmatmul.f32.gmra.mxu0 %v3076
    %v3078 = vpop.f32.mrf.mxu0
    %v3079 = vadd.f32 %v3040, %v3078
    %3080 = vdwg.mxu0
    %v3081 = vand.u32 %v1787, 4294901760
    %v3082 = vsub.f32 %v1787, %v3081
    %v3083 = vand.u32 %v3082, 4294901760
    %3084 = vmatpush.msra.mxu0 %v3083
    %v3085 = vand.u32 %v1786, 4294901760
    %v3086 = vsub.f32 %v1786, %v3085
    %v3087 = vand.u32 %v3086, 4294901760
    %3088 = vmatpush.msra.mxu0 %v3087
    %v3089 = vand.u32 %v1785, 4294901760
    %v3090 = vsub.f32 %v1785, %v3089
    %v3091 = vand.u32 %v3090, 4294901760
    %3092 = vmatpush.msra.mxu0 %v3091
    %v3093 = vand.u32 %v1784, 4294901760
    %v3094 = vsub.f32 %v1784, %v3093
    %v3095 = vand.u32 %v3094, 4294901760
    %3096 = vmatpush.msra.mxu0 %v3095
    %v3097 = vand.u32 %v1783, 4294901760
    %v3098 = vsub.f32 %v1783, %v3097
    %v3099 = vand.u32 %v3098, 4294901760
    %3100 = vmatpush.msra.mxu0 %v3099
    %v3101 = vand.u32 %v1782, 4294901760
    %v3102 = vsub.f32 %v1782, %v3101
    %v3103 = vand.u32 %v3102, 4294901760
    %3104 = vmatpush.msra.mxu0 %v3103
    %v3105 = vand.u32 %v1781, 4294901760
    %v3106 = vsub.f32 %v1781, %v3105
    %v3107 = vand.u32 %v3106, 4294901760
    %3108 = vmatpush.msra.mxu0 %v3107
    %v3109 = vand.u32 %v1780, 4294901760
    %v3110 = vsub.f32 %v1780, %v3109
    %v3111 = vand.u32 %v3110, 4294901760
    %3112 = vmatpush.msra.mxu0 %v3111
    %v3113 = vand.u32 %v1779, 4294901760
    %v3114 = vsub.f32 %v1779, %v3113
    %v3115 = vand.u32 %v3114, 4294901760
    %3116 = vmatpush.msra.mxu0 %v3115
    %v3117 = vand.u32 %v1778, 4294901760
    %v3118 = vsub.f32 %v1778, %v3117
    %v3119 = vand.u32 %v3118, 4294901760
    %3120 = vmatpush.msra.mxu0 %v3119
    %v3121 = vand.u32 %v1777, 4294901760
    %v3122 = vsub.f32 %v1777, %v3121
    %v3123 = vand.u32 %v3122, 4294901760
    %3124 = vmatpush.msra.mxu0 %v3123
    %v3125 = vand.u32 %v1776, 4294901760
    %v3126 = vsub.f32 %v1776, %v3125
    %v3127 = vand.u32 %v3126, 4294901760
    %3128 = vmatpush.msra.mxu0 %v3127
    %v3129 = vand.u32 %v1775, 4294901760
    %v3130 = vsub.f32 %v1775, %v3129
    %v3131 = vand.u32 %v3130, 4294901760
    %3132 = vmatpush.msra.mxu0 %v3131
    %v3133 = vand.u32 %v1774, 4294901760
    %v3134 = vsub.f32 %v1774, %v3133
    %v3135 = vand.u32 %v3134, 4294901760
    %3136 = vmatpush.msra.mxu0 %v3135
    %v3137 = vand.u32 %v1773, 4294901760
    %v3138 = vsub.f32 %v1773, %v3137
    %v3139 = vand.u32 %v3138, 4294901760
    %3140 = vmatpush.msra.mxu0 %v3139
    %v3141 = vand.u32 %v1772, 4294901760
    %v3142 = vsub.f32 %v1772, %v3141
    %v3143 = vand.u32 %v3142, 4294901760
    %3144 = vmatpush.msra.mxu0 %v3143
    %v3145 = vand.u32 %v2831, 4294901760
    %3146 = vmatmul.f32.gmra.mxu0 %v3145
    %v3147 = vpop.f32.mrf.mxu0
    %v3148 = vadd.f32 %v3079, %v3147
    %3149 = vdwg.mxu0
    %v3150 = vand.u32 %v1787, 4294901760
    %3151 = vmatpush.msra.mxu0 %v3150
    %v3152 = vand.u32 %v1786, 4294901760
    %3153 = vmatpush.msra.mxu0 %v3152
    %v3154 = vand.u32 %v1785, 4294901760
    %3155 = vmatpush.msra.mxu0 %v3154
    %v3156 = vand.u32 %v1784, 4294901760
    %3157 = vmatpush.msra.mxu0 %v3156
    %v3158 = vand.u32 %v1783, 4294901760
    %3159 = vmatpush.msra.mxu0 %v3158
    %v3160 = vand.u32 %v1782, 4294901760
    %3161 = vmatpush.msra.mxu0 %v3160
    %v3162 = vand.u32 %v1781, 4294901760
    %3163 = vmatpush.msra.mxu0 %v3162
    %v3164 = vand.u32 %v1780, 4294901760
    %3165 = vmatpush.msra.mxu0 %v3164
    %v3166 = vand.u32 %v1779, 4294901760
    %3167 = vmatpush.msra.mxu0 %v3166
    %v3168 = vand.u32 %v1778, 4294901760
    %3169 = vmatpush.msra.mxu0 %v3168
    %v3170 = vand.u32 %v1777, 4294901760
    %3171 = vmatpush.msra.mxu0 %v3170
    %v3172 = vand.u32 %v1776, 4294901760
    %3173 = vmatpush.msra.mxu0 %v3172
    %v3174 = vand.u32 %v1775, 4294901760
    %3175 = vmatpush.msra.mxu0 %v3174
    %v3176 = vand.u32 %v1774, 4294901760
    %3177 = vmatpush.msra.mxu0 %v3176
    %v3178 = vand.u32 %v1773, 4294901760
    %3179 = vmatpush.msra.mxu0 %v3178
    %v3180 = vand.u32 %v1772, 4294901760
    %3181 = vmatpush.msra.mxu0 %v3180
    %v3182 = vand.u32 %v2831, 4294901760
    %3183 = vmatmul.f32.gmra.mxu0 %v3182
    %v3184 = vpop.f32.mrf.mxu0
    %v3185 = vadd.f32 %v3148, %v3184
    %3186 = vdwg.mxu0
    %v3187 = vand.u32 %v1803, 4294901760
    %3188 = vmatpush.msra.mxu0 %v3187
    %v3189 = vand.u32 %v1802, 4294901760
    %3190 = vmatpush.msra.mxu0 %v3189
    %v3191 = vand.u32 %v1801, 4294901760
    %3192 = vmatpush.msra.mxu0 %v3191
    %v3193 = vand.u32 %v1800, 4294901760
    %3194 = vmatpush.msra.mxu0 %v3193
    %v3195 = vand.u32 %v1799, 4294901760
    %3196 = vmatpush.msra.mxu0 %v3195
    %v3197 = vand.u32 %v1798, 4294901760
    %3198 = vmatpush.msra.mxu0 %v3197
    %v3199 = vand.u32 %v1797, 4294901760
    %3200 = vmatpush.msra.mxu0 %v3199
    %v3201 = vand.u32 %v1796, 4294901760
    %3202 = vmatpush.msra.mxu0 %v3201
    %v3203 = vand.u32 %v1795, 4294901760
    %3204 = vmatpush.msra.mxu0 %v3203
    %v3205 = vand.u32 %v1794, 4294901760
    %3206 = vmatpush.msra.mxu0 %v3205
    %v3207 = vand.u32 %v1793, 4294901760
    %3208 = vmatpush.msra.mxu0 %v3207
    %v3209 = vand.u32 %v1792, 4294901760
    %3210 = vmatpush.msra.mxu0 %v3209
    %v3211 = vand.u32 %v1791, 4294901760
    %3212 = vmatpush.msra.mxu0 %v3211
    %v3213 = vand.u32 %v1790, 4294901760
    %3214 = vmatpush.msra.mxu0 %v3213
    %v3215 = vand.u32 %v1789, 4294901760
    %3216 = vmatpush.msra.mxu0 %v3215
    %v3217 = vand.u32 %v1788, 4294901760
    %3218 = vmatpush.msra.mxu0 %v3217
    %v3219 = vand.u32 %v2845, 4294901760
    %v3220 = vsub.f32 %v2845, %v3219
    %v3221 = vand.u32 %v3220, 4294901760
    %v3222 = vsub.f32 %v3220, %v3221
    %v3223 = vand.u32 %v3222, 4294901760
    %3224 = vmatmul.f32.gmra.mxu0 %v3223
    %v3225 = vpop.f32.mrf.mxu0
    %v3226 = vadd.f32 %v3185, %v3225
    %3227 = vdwg.mxu0
    %v3228 = vand.u32 %v1803, 4294901760
    %v3229 = vsub.f32 %v1803, %v3228
    %v3230 = vand.u32 %v3229, 4294901760
    %v3231 = vsub.f32 %v3229, %v3230
    %v3232 = vand.u32 %v3231, 4294901760
    %3233 = vmatpush.msra.mxu0 %v3232
    %v3234 = vand.u32 %v1802, 4294901760
    %v3235 = vsub.f32 %v1802, %v3234
    %v3236 = vand.u32 %v3235, 4294901760
    %v3237 = vsub.f32 %v3235, %v3236
    %v3238 = vand.u32 %v3237, 4294901760
    %3239 = vmatpush.msra.mxu0 %v3238
    %v3240 = vand.u32 %v1801, 4294901760
    %v3241 = vsub.f32 %v1801, %v3240
    %v3242 = vand.u32 %v3241, 4294901760
    %v3243 = vsub.f32 %v3241, %v3242
    %v3244 = vand.u32 %v3243, 4294901760
    %3245 = vmatpush.msra.mxu0 %v3244
    %v3246 = vand.u32 %v1800, 4294901760
    %v3247 = vsub.f32 %v1800, %v3246
    %v3248 = vand.u32 %v3247, 4294901760
    %v3249 = vsub.f32 %v3247, %v3248
    %v3250 = vand.u32 %v3249, 4294901760
    %3251 = vmatpush.msra.mxu0 %v3250
    %v3252 = vand.u32 %v1799, 4294901760
    %v3253 = vsub.f32 %v1799, %v3252
    %v3254 = vand.u32 %v3253, 4294901760
    %v3255 = vsub.f32 %v3253, %v3254
    %v3256 = vand.u32 %v3255, 4294901760
    %3257 = vmatpush.msra.mxu0 %v3256
    %v3258 = vand.u32 %v1798, 4294901760
    %v3259 = vsub.f32 %v1798, %v3258
    %v3260 = vand.u32 %v3259, 4294901760
    %v3261 = vsub.f32 %v3259, %v3260
    %v3262 = vand.u32 %v3261, 4294901760
    %3263 = vmatpush.msra.mxu0 %v3262
    %v3264 = vand.u32 %v1797, 4294901760
    %v3265 = vsub.f32 %v1797, %v3264
    %v3266 = vand.u32 %v3265, 4294901760
    %v3267 = vsub.f32 %v3265, %v3266
    %v3268 = vand.u32 %v3267, 4294901760
    %3269 = vmatpush.msra.mxu0 %v3268
    %v3270 = vand.u32 %v1796, 4294901760
    %v3271 = vsub.f32 %v1796, %v3270
    %v3272 = vand.u32 %v3271, 4294901760
    %v3273 = vsub.f32 %v3271, %v3272
    %v3274 = vand.u32 %v3273, 4294901760
    %3275 = vmatpush.msra.mxu0 %v3274
    %v3276 = vand.u32 %v1795, 4294901760
    %v3277 = vsub.f32 %v1795, %v3276
    %v3278 = vand.u32 %v3277, 4294901760
    %v3279 = vsub.f32 %v3277, %v3278
    %v3280 = vand.u32 %v3279, 4294901760
    %3281 = vmatpush.msra.mxu0 %v3280
    %v3282 = vand.u32 %v1794, 4294901760
    %v3283 = vsub.f32 %v1794, %v3282
    %v3284 = vand.u32 %v3283, 4294901760
    %v3285 = vsub.f32 %v3283, %v3284
    %v3286 = vand.u32 %v3285, 4294901760
    %3287 = vmatpush.msra.mxu0 %v3286
    %v3288 = vand.u32 %v1793, 4294901760
    %v3289 = vsub.f32 %v1793, %v3288
    %v3290 = vand.u32 %v3289, 4294901760
    %v3291 = vsub.f32 %v3289, %v3290
    %v3292 = vand.u32 %v3291, 4294901760
    %3293 = vmatpush.msra.mxu0 %v3292
    %v3294 = vand.u32 %v1792, 4294901760
    %v3295 = vsub.f32 %v1792, %v3294
    %v3296 = vand.u32 %v3295, 4294901760
    %v3297 = vsub.f32 %v3295, %v3296
    %v3298 = vand.u32 %v3297, 4294901760
    %3299 = vmatpush.msra.mxu0 %v3298
    %v3300 = vand.u32 %v1791, 4294901760
    %v3301 = vsub.f32 %v1791, %v3300
    %v3302 = vand.u32 %v3301, 4294901760
    %v3303 = vsub.f32 %v3301, %v3302
    %v3304 = vand.u32 %v3303, 4294901760
    %3305 = vmatpush.msra.mxu0 %v3304
    %v3306 = vand.u32 %v1790, 4294901760
    %v3307 = vsub.f32 %v1790, %v3306
    %v3308 = vand.u32 %v3307, 4294901760
    %v3309 = vsub.f32 %v3307, %v3308
    %v3310 = vand.u32 %v3309, 4294901760
    %3311 = vmatpush.msra.mxu0 %v3310
    %v3312 = vand.u32 %v1789, 4294901760
    %v3313 = vsub.f32 %v1789, %v3312
    %v3314 = vand.u32 %v3313, 4294901760
    %v3315 = vsub.f32 %v3313, %v3314
    %v3316 = vand.u32 %v3315, 4294901760
    %3317 = vmatpush.msra.mxu0 %v3316
    %v3318 = vand.u32 %v1788, 4294901760
    %v3319 = vsub.f32 %v1788, %v3318
    %v3320 = vand.u32 %v3319, 4294901760
    %v3321 = vsub.f32 %v3319, %v3320
    %v3322 = vand.u32 %v3321, 4294901760
    %3323 = vmatpush.msra.mxu0 %v3322
    %v3324 = vand.u32 %v2845, 4294901760
    %3325 = vmatmul.f32.gmra.mxu0 %v3324
    %v3326 = vpop.f32.mrf.mxu0
    %v3327 = vadd.f32 %v3226, %v3326
    %3328 = vdwg.mxu0
    %v3329 = vand.u32 %v1803, 4294901760
    %v3330 = vsub.f32 %v1803, %v3329
    %3331 = vmatpush.msra.mxu0 %v3330
    %v3332 = vand.u32 %v1802, 4294901760
    %v3333 = vsub.f32 %v1802, %v3332
    %3334 = vmatpush.msra.mxu0 %v3333
    %v3335 = vand.u32 %v1801, 4294901760
    %v3336 = vsub.f32 %v1801, %v3335
    %3337 = vmatpush.msra.mxu0 %v3336
    %v3338 = vand.u32 %v1800, 4294901760
    %v3339 = vsub.f32 %v1800, %v3338
    %3340 = vmatpush.msra.mxu0 %v3339
    %v3341 = vand.u32 %v1799, 4294901760
    %v3342 = vsub.f32 %v1799, %v3341
    %3343 = vmatpush.msra.mxu0 %v3342
    %v3344 = vand.u32 %v1798, 4294901760
    %v3345 = vsub.f32 %v1798, %v3344
    %3346 = vmatpush.msra.mxu0 %v3345
    %v3347 = vand.u32 %v1797, 4294901760
    %v3348 = vsub.f32 %v1797, %v3347
    %3349 = vmatpush.msra.mxu0 %v3348
    %v3350 = vand.u32 %v1796, 4294901760
    %v3351 = vsub.f32 %v1796, %v3350
    %3352 = vmatpush.msra.mxu0 %v3351
    %v3353 = vand.u32 %v1795, 4294901760
    %v3354 = vsub.f32 %v1795, %v3353
    %3355 = vmatpush.msra.mxu0 %v3354
    %v3356 = vand.u32 %v1794, 4294901760
    %v3357 = vsub.f32 %v1794, %v3356
    %3358 = vmatpush.msra.mxu0 %v3357
    %v3359 = vand.u32 %v1793, 4294901760
    %v3360 = vsub.f32 %v1793, %v3359
    %3361 = vmatpush.msra.mxu0 %v3360
    %v3362 = vand.u32 %v1792, 4294901760
    %v3363 = vsub.f32 %v1792, %v3362
    %3364 = vmatpush.msra.mxu0 %v3363
    %v3365 = vand.u32 %v1791, 4294901760
    %v3366 = vsub.f32 %v1791, %v3365
    %3367 = vmatpush.msra.mxu0 %v3366
    %v3368 = vand.u32 %v1790, 4294901760
    %v3369 = vsub.f32 %v1790, %v3368
    %3370 = vmatpush.msra.mxu0 %v3369
    %v3371 = vand.u32 %v1789, 4294901760
    %v3372 = vsub.f32 %v1789, %v3371
    %3373 = vmatpush.msra.mxu0 %v3372
    %v3374 = vand.u32 %v1788, 4294901760
    %v3375 = vsub.f32 %v1788, %v3374
    %3376 = vmatpush.msra.mxu0 %v3375
    %v3377 = vand.u32 %v2845, 4294901760
    %v3378 = vsub.f32 %v2845, %v3377
    %3379 = vmatmul.f32.gmra.mxu0 %v3378
    %v3380 = vpop.f32.mrf.mxu0
    %v3381 = vadd.f32 %v3327, %v3380
    %3382 = vdwg.mxu0
    %v3383 = vand.u32 %v1803, 4294901760
    %3384 = vmatpush.msra.mxu0 %v3383
    %v3385 = vand.u32 %v1802, 4294901760
    %3386 = vmatpush.msra.mxu0 %v3385
    %v3387 = vand.u32 %v1801, 4294901760
    %3388 = vmatpush.msra.mxu0 %v3387
    %v3389 = vand.u32 %v1800, 4294901760
    %3390 = vmatpush.msra.mxu0 %v3389
    %v3391 = vand.u32 %v1799, 4294901760
    %3392 = vmatpush.msra.mxu0 %v3391
    %v3393 = vand.u32 %v1798, 4294901760
    %3394 = vmatpush.msra.mxu0 %v3393
    %v3395 = vand.u32 %v1797, 4294901760
    %3396 = vmatpush.msra.mxu0 %v3395
    %v3397 = vand.u32 %v1796, 4294901760
    %3398 = vmatpush.msra.mxu0 %v3397
    %v3399 = vand.u32 %v1795, 4294901760
    %3400 = vmatpush.msra.mxu0 %v3399
    %v3401 = vand.u32 %v1794, 4294901760
    %3402 = vmatpush.msra.mxu0 %v3401
    %v3403 = vand.u32 %v1793, 4294901760
    %3404 = vmatpush.msra.mxu0 %v3403
    %v3405 = vand.u32 %v1792, 4294901760
    %3406 = vmatpush.msra.mxu0 %v3405
    %v3407 = vand.u32 %v1791, 4294901760
    %3408 = vmatpush.msra.mxu0 %v3407
    %v3409 = vand.u32 %v1790, 4294901760
    %3410 = vmatpush.msra.mxu0 %v3409
    %v3411 = vand.u32 %v1789, 4294901760
    %3412 = vmatpush.msra.mxu0 %v3411
    %v3413 = vand.u32 %v1788, 4294901760
    %3414 = vmatpush.msra.mxu0 %v3413
    %v3415 = vand.u32 %v2845, 4294901760
    %v3416 = vsub.f32 %v2845, %v3415
    %v3417 = vand.u32 %v3416, 4294901760
    %3418 = vmatmul.f32.gmra.mxu0 %v3417
    %v3419 = vpop.f32.mrf.mxu0
    %v3420 = vadd.f32 %v3381, %v3419
    %3421 = vdwg.mxu0
    %v3422 = vand.u32 %v1803, 4294901760
    %v3423 = vsub.f32 %v1803, %v3422
    %v3424 = vand.u32 %v3423, 4294901760
    %3425 = vmatpush.msra.mxu0 %v3424
    %v3426 = vand.u32 %v1802, 4294901760
    %v3427 = vsub.f32 %v1802, %v3426
    %v3428 = vand.u32 %v3427, 4294901760
    %3429 = vmatpush.msra.mxu0 %v3428
    %v3430 = vand.u32 %v1801, 4294901760
    %v3431 = vsub.f32 %v1801, %v3430
    %v3432 = vand.u32 %v3431, 4294901760
    %3433 = vmatpush.msra.mxu0 %v3432
    %v3434 = vand.u32 %v1800, 4294901760
    %v3435 = vsub.f32 %v1800, %v3434
    %v3436 = vand.u32 %v3435, 4294901760
    %3437 = vmatpush.msra.mxu0 %v3436
    %v3438 = vand.u32 %v1799, 4294901760
    %v3439 = vsub.f32 %v1799, %v3438
    %v3440 = vand.u32 %v3439, 4294901760
    %3441 = vmatpush.msra.mxu0 %v3440
    %v3442 = vand.u32 %v1798, 4294901760
    %v3443 = vsub.f32 %v1798, %v3442
    %v3444 = vand.u32 %v3443, 4294901760
    %3445 = vmatpush.msra.mxu0 %v3444
    %v3446 = vand.u32 %v1797, 4294901760
    %v3447 = vsub.f32 %v1797, %v3446
    %v3448 = vand.u32 %v3447, 4294901760
    %3449 = vmatpush.msra.mxu0 %v3448
    %v3450 = vand.u32 %v1796, 4294901760
    %v3451 = vsub.f32 %v1796, %v3450
    %v3452 = vand.u32 %v3451, 4294901760
    %3453 = vmatpush.msra.mxu0 %v3452
    %v3454 = vand.u32 %v1795, 4294901760
    %v3455 = vsub.f32 %v1795, %v3454
    %v3456 = vand.u32 %v3455, 4294901760
    %3457 = vmatpush.msra.mxu0 %v3456
    %v3458 = vand.u32 %v1794, 4294901760
    %v3459 = vsub.f32 %v1794, %v3458
    %v3460 = vand.u32 %v3459, 4294901760
    %3461 = vmatpush.msra.mxu0 %v3460
    %v3462 = vand.u32 %v1793, 4294901760
    %v3463 = vsub.f32 %v1793, %v3462
    %v3464 = vand.u32 %v3463, 4294901760
    %3465 = vmatpush.msra.mxu0 %v3464
    %v3466 = vand.u32 %v1792, 4294901760
    %v3467 = vsub.f32 %v1792, %v3466
    %v3468 = vand.u32 %v3467, 4294901760
    %3469 = vmatpush.msra.mxu0 %v3468
    %v3470 = vand.u32 %v1791, 4294901760
    %v3471 = vsub.f32 %v1791, %v3470
    %v3472 = vand.u32 %v3471, 4294901760
    %3473 = vmatpush.msra.mxu0 %v3472
    %v3474 = vand.u32 %v1790, 4294901760
    %v3475 = vsub.f32 %v1790, %v3474
    %v3476 = vand.u32 %v3475, 4294901760
    %3477 = vmatpush.msra.mxu0 %v3476
    %v3478 = vand.u32 %v1789, 4294901760
    %v3479 = vsub.f32 %v1789, %v3478
    %v3480 = vand.u32 %v3479, 4294901760
    %3481 = vmatpush.msra.mxu0 %v3480
    %v3482 = vand.u32 %v1788, 4294901760
    %v3483 = vsub.f32 %v1788, %v3482
    %v3484 = vand.u32 %v3483, 4294901760
    %3485 = vmatpush.msra.mxu0 %v3484
    %v3486 = vand.u32 %v2845, 4294901760
    %3487 = vmatmul.f32.gmra.mxu0 %v3486
    %v3488 = vpop.f32.mrf.mxu0
    %v3489 = vadd.f32 %v3420, %v3488
    %3490 = vdwg.mxu0
    %v3491 = vand.u32 %v1803, 4294901760
    %3492 = vmatpush.msra.mxu0 %v3491
    %v3493 = vand.u32 %v1802, 4294901760
    %3494 = vmatpush.msra.mxu0 %v3493
    %v3495 = vand.u32 %v1801, 4294901760
    %3496 = vmatpush.msra.mxu0 %v3495
    %v3497 = vand.u32 %v1800, 4294901760
    %3498 = vmatpush.msra.mxu0 %v3497
    %v3499 = vand.u32 %v1799, 4294901760
    %3500 = vmatpush.msra.mxu0 %v3499
    %v3501 = vand.u32 %v1798, 4294901760
    %3502 = vmatpush.msra.mxu0 %v3501
    %v3503 = vand.u32 %v1797, 4294901760
    %3504 = vmatpush.msra.mxu0 %v3503
    %v3505 = vand.u32 %v1796, 4294901760
    %3506 = vmatpush.msra.mxu0 %v3505
    %v3507 = vand.u32 %v1795, 4294901760
    %3508 = vmatpush.msra.mxu0 %v3507
    %v3509 = vand.u32 %v1794, 4294901760
    %3510 = vmatpush.msra.mxu0 %v3509
    %v3511 = vand.u32 %v1793, 4294901760
    %3512 = vmatpush.msra.mxu0 %v3511
    %v3513 = vand.u32 %v1792, 4294901760
    %3514 = vmatpush.msra.mxu0 %v3513
    %v3515 = vand.u32 %v1791, 4294901760
    %3516 = vmatpush.msra.mxu0 %v3515
    %v3517 = vand.u32 %v1790, 4294901760
    %3518 = vmatpush.msra.mxu0 %v3517
    %v3519 = vand.u32 %v1789, 4294901760
    %3520 = vmatpush.msra.mxu0 %v3519
    %v3521 = vand.u32 %v1788, 4294901760
    %3522 = vmatpush.msra.mxu0 %v3521
    %v3523 = vand.u32 %v2845, 4294901760
    %3524 = vmatmul.f32.gmra.mxu0 %v3523
    %v3525 = vpop.f32.mrf.mxu0
    %v3526 = vadd.f32 %v3489, %v3525
    %3527 = vdwg.mxu0
    %v3528 = vrsqrt.pop %v3526
    %v3529 = vmul.f32 %v3528, %v3526
    %v3530 = vmul.f32 %v3529, %v3528
    %v3531 = vmul.f32 0.5, %v3530
    %v3532 = vsub.f32 1.5, %v3531
    %v3533 = vmul.f32 %v3528, %v3532
    %vm3534 = vweird.f32 %v3526
    %vm3535 = vweird.f32 %v3528
    %vm3536 = vmor %vm3534, %vm3535
    %v3537 = vsel %vm3536, %v3528, %v3533
    %v3539 = vsel %vm2488, %v3537, 0
    %3541 = vmatpush.msra.mxu0 0.0
    %3542 = vmatpush.msra.mxu0 0.0
    %3543 = vmatpush.msra.mxu0 0.0
    %3544 = vmatpush.msra.mxu0 0.0
    %3545 = vmatpush.msra.mxu0 0.0
    %3546 = vmatpush.msra.mxu0 0.0
    %3547 = vmatpush.msra.mxu0 0.0
    %3548 = vmatpush.msra.mxu0 0.0
    %3549 = vmatpush.msra.mxu0 0.0
    %3550 = vmatpush.msra.mxu0 0.0
    %3551 = vmatpush.msra.mxu0 0.0
    %3552 = vmatpush.msra.mxu0 0.0
    %3553 = vmatpush.msra.mxu0 0.0
    %3554 = vmatpush.msra.mxu0 0.0
    %3555 = vmatpush.msra.mxu0 0.0
    %v3556 = vand.u32 %v2486, 4294901760
    %3557 = vmatpush.msra.mxu0 %v3556
    %v3558 = vand.u32 %v3539, 4294901760
    %v3559 = vsub.f32 %v3539, %v3558
    %v3560 = vand.u32 %v3559, 4294901760
    %v3561 = vsub.f32 %v3559, %v3560
    %v3562 = vand.u32 %v3561, 4294901760
    %3563 = vmatmul.f32.gmra.mxu0 %v3562
    %v3564 = vpop.f32.mrf.mxu0
    %v3565 = vadd.f32 0.0, %v3564
    %3566 = vdwg.mxu0
    %3567 = vmatpush.msra.mxu0 0.0
    %3568 = vmatpush.msra.mxu0 0.0
    %3569 = vmatpush.msra.mxu0 0.0
    %3570 = vmatpush.msra.mxu0 0.0
    %3571 = vmatpush.msra.mxu0 0.0
    %3572 = vmatpush.msra.mxu0 0.0
    %3573 = vmatpush.msra.mxu0 0.0
    %3574 = vmatpush.msra.mxu0 0.0
    %3575 = vmatpush.msra.mxu0 0.0
    %3576 = vmatpush.msra.mxu0 0.0
    %3577 = vmatpush.msra.mxu0 0.0
    %3578 = vmatpush.msra.mxu0 0.0
    %3579 = vmatpush.msra.mxu0 0.0
    %3580 = vmatpush.msra.mxu0 0.0
    %3581 = vmatpush.msra.mxu0 0.0
    %v3582 = vand.u32 %v2486, 4294901760
    %v3583 = vsub.f32 %v2486, %v3582
    %v3584 = vand.u32 %v3583, 4294901760
    %v3585 = vsub.f32 %v3583, %v3584
    %v3586 = vand.u32 %v3585, 4294901760
    %3587 = vmatpush.msra.mxu0 %v3586
    %v3588 = vand.u32 %v3539, 4294901760
    %3589 = vmatmul.f32.gmra.mxu0 %v3588
    %v3590 = vpop.f32.mrf.mxu0
    %v3591 = vadd.f32 %v3565, %v3590
    %3592 = vdwg.mxu0
    %3593 = vmatpush.msra.mxu0 0.0
    %3594 = vmatpush.msra.mxu0 0.0
    %3595 = vmatpush.msra.mxu0 0.0
    %3596 = vmatpush.msra.mxu0 0.0
    %3597 = vmatpush.msra.mxu0 0.0
    %3598 = vmatpush.msra.mxu0 0.0
    %3599 = vmatpush.msra.mxu0 0.0
    %3600 = vmatpush.msra.mxu0 0.0
    %3601 = vmatpush.msra.mxu0 0.0
    %3602 = vmatpush.msra.mxu0 0.0
    %3603 = vmatpush.msra.mxu0 0.0
    %3604 = vmatpush.msra.mxu0 0.0
    %3605 = vmatpush.msra.mxu0 0.0
    %3606 = vmatpush.msra.mxu0 0.0
    %3607 = vmatpush.msra.mxu0 0.0
    %v3608 = vand.u32 %v2486, 4294901760
    %v3609 = vsub.f32 %v2486, %v3608
    %3610 = vmatpush.msra.mxu0 %v3609
    %v3611 = vand.u32 %v3539, 4294901760
    %v3612 = vsub.f32 %v3539, %v3611
    %3613 = vmatmul.f32.gmra.mxu0 %v3612
    %v3614 = vpop.f32.mrf.mxu0
    %v3615 = vadd.f32 %v3591, %v3614
    %3616 = vdwg.mxu0
    %3617 = vmatpush.msra.mxu0 0.0
    %3618 = vmatpush.msra.mxu0 0.0
    %3619 = vmatpush.msra.mxu0 0.0
    %3620 = vmatpush.msra.mxu0 0.0
    %3621 = vmatpush.msra.mxu0 0.0
    %3622 = vmatpush.msra.mxu0 0.0
    %3623 = vmatpush.msra.mxu0 0.0
    %3624 = vmatpush.msra.mxu0 0.0
    %3625 = vmatpush.msra.mxu0 0.0
    %3626 = vmatpush.msra.mxu0 0.0
    %3627 = vmatpush.msra.mxu0 0.0
    %3628 = vmatpush.msra.mxu0 0.0
    %3629 = vmatpush.msra.mxu0 0.0
    %3630 = vmatpush.msra.mxu0 0.0
    %3631 = vmatpush.msra.mxu0 0.0
    %v3632 = vand.u32 %v2486, 4294901760
    %3633 = vmatpush.msra.mxu0 %v3632
    %v3634 = vand.u32 %v3539, 4294901760
    %v3635 = vsub.f32 %v3539, %v3634
    %v3636 = vand.u32 %v3635, 4294901760
    %3637 = vmatmul.f32.gmra.mxu0 %v3636
    %v3638 = vpop.f32.mrf.mxu0
    %v3639 = vadd.f32 %v3615, %v3638
    %3640 = vdwg.mxu0
    %3641 = vmatpush.msra.mxu0 0.0
    %3642 = vmatpush.msra.mxu0 0.0
    %3643 = vmatpush.msra.mxu0 0.0
    %3644 = vmatpush.msra.mxu0 0.0
    %3645 = vmatpush.msra.mxu0 0.0
    %3646 = vmatpush.msra.mxu0 0.0
    %3647 = vmatpush.msra.mxu0 0.0
    %3648 = vmatpush.msra.mxu0 0.0
    %3649 = vmatpush.msra.mxu0 0.0
    %3650 = vmatpush.msra.mxu0 0.0
    %3651 = vmatpush.msra.mxu0 0.0
    %3652 = vmatpush.msra.mxu0 0.0
    %3653 = vmatpush.msra.mxu0 0.0
    %3654 = vmatpush.msra.mxu0 0.0
    %3655 = vmatpush.msra.mxu0 0.0
    %v3656 = vand.u32 %v2486, 4294901760
    %v3657 = vsub.f32 %v2486, %v3656
    %v3658 = vand.u32 %v3657, 4294901760
    %3659 = vmatpush.msra.mxu0 %v3658
    %v3660 = vand.u32 %v3539, 4294901760
    %3661 = vmatmul.f32.gmra.mxu0 %v3660
    %v3662 = vpop.f32.mrf.mxu0
    %v3663 = vadd.f32 %v3639, %v3662
    %3664 = vdwg.mxu0
    %3665 = vmatpush.msra.mxu0 0.0
    %3666 = vmatpush.msra.mxu0 0.0
    %3667 = vmatpush.msra.mxu0 0.0
    %3668 = vmatpush.msra.mxu0 0.0
    %3669 = vmatpush.msra.mxu0 0.0
    %3670 = vmatpush.msra.mxu0 0.0
    %3671 = vmatpush.msra.mxu0 0.0
    %3672 = vmatpush.msra.mxu0 0.0
    %3673 = vmatpush.msra.mxu0 0.0
    %3674 = vmatpush.msra.mxu0 0.0
    %3675 = vmatpush.msra.mxu0 0.0
    %3676 = vmatpush.msra.mxu0 0.0
    %3677 = vmatpush.msra.mxu0 0.0
    %3678 = vmatpush.msra.mxu0 0.0
    %3679 = vmatpush.msra.mxu0 0.0
    %v3680 = vand.u32 %v2486, 4294901760
    %3681 = vmatpush.msra.mxu0 %v3680
    %v3682 = vand.u32 %v3539, 4294901760
    %3683 = vmatmul.f32.gmra.mxu0 %v3682
    %v3684 = vpop.f32.mrf.mxu0
    %v3685 = vadd.f32 %v3663, %v3684
    %3686 = vdwg.mxu0
    %3687 = vmatpush.msra.mxu0 0.0
    %3688 = vmatpush.msra.mxu0 0.0
    %3689 = vmatpush.msra.mxu0 0.0
    %3690 = vmatpush.msra.mxu0 0.0
    %3691 = vmatpush.msra.mxu0 0.0
    %3692 = vmatpush.msra.mxu0 0.0
    %3693 = vmatpush.msra.mxu0 0.0
    %3694 = vmatpush.msra.mxu0 0.0
    %3695 = vmatpush.msra.mxu0 0.0
    %3696 = vmatpush.msra.mxu0 0.0
    %3697 = vmatpush.msra.mxu0 0.0
    %3698 = vmatpush.msra.mxu0 0.0
    %3699 = vmatpush.msra.mxu0 0.0
    %3700 = vmatpush.msra.mxu0 0.0
    %3701 = vmatpush.msra.mxu0 0.0
    %v3702 = vand.u32 %v2487, 4294901760
    %3703 = vmatpush.msra.mxu0 %v3702
    %v3704 = vand.u32 %v3539, 4294901760
    %v3705 = vsub.f32 %v3539, %v3704
    %v3706 = vand.u32 %v3705, 4294901760
    %v3707 = vsub.f32 %v3705, %v3706
    %v3708 = vand.u32 %v3707, 4294901760
    %3709 = vmatmul.f32.gmra.mxu0 %v3708
    %v3710 = vpop.f32.mrf.mxu0
    %v3711 = vadd.f32 0.0, %v3710
    %3712 = vdwg.mxu0
    %3713 = vmatpush.msra.mxu0 0.0
    %3714 = vmatpush.msra.mxu0 0.0
    %3715 = vmatpush.msra.mxu0 0.0
    %3716 = vmatpush.msra.mxu0 0.0
    %3717 = vmatpush.msra.mxu0 0.0
    %3718 = vmatpush.msra.mxu0 0.0
    %3719 = vmatpush.msra.mxu0 0.0
    %3720 = vmatpush.msra.mxu0 0.0
    %3721 = vmatpush.msra.mxu0 0.0
    %3722 = vmatpush.msra.mxu0 0.0
    %3723 = vmatpush.msra.mxu0 0.0
    %3724 = vmatpush.msra.mxu0 0.0
    %3725 = vmatpush.msra.mxu0 0.0
    %3726 = vmatpush.msra.mxu0 0.0
    %3727 = vmatpush.msra.mxu0 0.0
    %v3728 = vand.u32 %v2487, 4294901760
    %v3729 = vsub.f32 %v2487, %v3728
    %v3730 = vand.u32 %v3729, 4294901760
    %v3731 = vsub.f32 %v3729, %v3730
    %v3732 = vand.u32 %v3731, 4294901760
    %3733 = vmatpush.msra.mxu0 %v3732
    %v3734 = vand.u32 %v3539, 4294901760
    %3735 = vmatmul.f32.gmra.mxu0 %v3734
    %v3736 = vpop.f32.mrf.mxu0
    %v3737 = vadd.f32 %v3711, %v3736
    %3738 = vdwg.mxu0
    %3739 = vmatpush.msra.mxu0 0.0
    %3740 = vmatpush.msra.mxu0 0.0
    %3741 = vmatpush.msra.mxu0 0.0
    %3742 = vmatpush.msra.mxu0 0.0
    %3743 = vmatpush.msra.mxu0 0.0
    %3744 = vmatpush.msra.mxu0 0.0
    %3745 = vmatpush.msra.mxu0 0.0
    %3746 = vmatpush.msra.mxu0 0.0
    %3747 = vmatpush.msra.mxu0 0.0
    %3748 = vmatpush.msra.mxu0 0.0
    %3749 = vmatpush.msra.mxu0 0.0
    %3750 = vmatpush.msra.mxu0 0.0
    %3751 = vmatpush.msra.mxu0 0.0
    %3752 = vmatpush.msra.mxu0 0.0
    %3753 = vmatpush.msra.mxu0 0.0
    %v3754 = vand.u32 %v2487, 4294901760
    %v3755 = vsub.f32 %v2487, %v3754
    %3756 = vmatpush.msra.mxu0 %v3755
    %v3757 = vand.u32 %v3539, 4294901760
    %v3758 = vsub.f32 %v3539, %v3757
    %3759 = vmatmul.f32.gmra.mxu0 %v3758
    %v3760 = vpop.f32.mrf.mxu0
    %v3761 = vadd.f32 %v3737, %v3760
    %3762 = vdwg.mxu0
    %3763 = vmatpush.msra.mxu0 0.0
    %3764 = vmatpush.msra.mxu0 0.0
    %3765 = vmatpush.msra.mxu0 0.0
    %3766 = vmatpush.msra.mxu0 0.0
    %3767 = vmatpush.msra.mxu0 0.0
    %3768 = vmatpush.msra.mxu0 0.0
    %3769 = vmatpush.msra.mxu0 0.0
    %3770 = vmatpush.msra.mxu0 0.0
    %3771 = vmatpush.msra.mxu0 0.0
    %3772 = vmatpush.msra.mxu0 0.0
    %3773 = vmatpush.msra.mxu0 0.0
    %3774 = vmatpush.msra.mxu0 0.0
    %3775 = vmatpush.msra.mxu0 0.0
    %3776 = vmatpush.msra.mxu0 0.0
    %3777 = vmatpush.msra.mxu0 0.0
    %v3778 = vand.u32 %v2487, 4294901760
    %3779 = vmatpush.msra.mxu0 %v3778
    %v3780 = vand.u32 %v3539, 4294901760
    %v3781 = vsub.f32 %v3539, %v3780
    %v3782 = vand.u32 %v3781, 4294901760
    %3783 = vmatmul.f32.gmra.mxu0 %v3782
    %v3784 = vpop.f32.mrf.mxu0
    %v3785 = vadd.f32 %v3761, %v3784
    %3786 = vdwg.mxu0
    %3787 = vmatpush.msra.mxu0 0.0
    %3788 = vmatpush.msra.mxu0 0.0
    %3789 = vmatpush.msra.mxu0 0.0
    %3790 = vmatpush.msra.mxu0 0.0
    %3791 = vmatpush.msra.mxu0 0.0
    %3792 = vmatpush.msra.mxu0 0.0
    %3793 = vmatpush.msra.mxu0 0.0
    %3794 = vmatpush.msra.mxu0 0.0
    %3795 = vmatpush.msra.mxu0 0.0
    %3796 = vmatpush.msra.mxu0 0.0
    %3797 = vmatpush.msra.mxu0 0.0
    %3798 = vmatpush.msra.mxu0 0.0
    %3799 = vmatpush.msra.mxu0 0.0
    %3800 = vmatpush.msra.mxu0 0.0
    %3801 = vmatpush.msra.mxu0 0.0
    %v3802 = vand.u32 %v2487, 4294901760
    %v3803 = vsub.f32 %v2487, %v3802
    %v3804 = vand.u32 %v3803, 4294901760
    %3805 = vmatpush.msra.mxu0 %v3804
    %v3806 = vand.u32 %v3539, 4294901760
    %3807 = vmatmul.f32.gmra.mxu0 %v3806
    %v3808 = vpop.f32.mrf.mxu0
    %v3809 = vadd.f32 %v3785, %v3808
    %3810 = vdwg.mxu0
    %3811 = vmatpush.msra.mxu0 0.0
    %3812 = vmatpush.msra.mxu0 0.0
    %3813 = vmatpush.msra.mxu0 0.0
    %3814 = vmatpush.msra.mxu0 0.0
    %3815 = vmatpush.msra.mxu0 0.0
    %3816 = vmatpush.msra.mxu0 0.0
    %3817 = vmatpush.msra.mxu0 0.0
    %3818 = vmatpush.msra.mxu0 0.0
    %3819 = vmatpush.msra.mxu0 0.0
    %3820 = vmatpush.msra.mxu0 0.0
    %3821 = vmatpush.msra.mxu0 0.0
    %3822 = vmatpush.msra.mxu0 0.0
    %3823 = vmatpush.msra.mxu0 0.0
    %3824 = vmatpush.msra.mxu0 0.0
    %3825 = vmatpush.msra.mxu0 0.0
    %v3826 = vand.u32 %v2487, 4294901760
    %3827 = vmatpush.msra.mxu0 %v3826
    %v3828 = vand.u32 %v3539, 4294901760
    %3829 = vmatmul.f32.gmra.mxu0 %v3828
    %v3830 = vpop.f32.mrf.mxu0
    %v3831 = vadd.f32 %v3809, %v3830
    %3832 = vdwg.mxu0
    %v3834 = vperm.slane %v55, 0
    %v3835 = vperm.slane %v55, 1
    %v3838 = vmul.f32 %v3685, %v3834
    %v3839 = vmul.f32 %v3831, %v3835
    %v3840 = vperm.slane %v3838, 0
    %v3841 = vperm.slane %v3839, 0
    %v3842 = vmul.f32 %v2786, %v3840
    %v3843 = vmul.f32 %v2787, %v3841
    %v3844 = vmul.f32 %v2788, %v3840
    %v3845 = vmul.f32 %v2789, %v3841
    %v3846 = vmul.f32 %v2790, %v3840
    %v3847 = vmul.f32 %v2791, %v3841
    %v3848 = vmul.f32 %v2792, %v3840
    %v3849 = vmul.f32 %v2793, %v3841
    %v3850 = vmul.f32 %v2794, %v3840
    %v3851 = vmul.f32 %v2795, %v3841
    %v3852 = vmul.f32 %v2796, %v3840
    %v3853 = vmul.f32 %v2797, %v3841
    %v3854 = vmul.f32 %v2798, %v3840
    %v3855 = vmul.f32 %v2799, %v3841
    %v3856 = vmul.f32 %v2800, %v3840
    %v3857 = vmul.f32 %v2801, %v3841
    %v3859 = vperm.slane %v57, 0
    %v3860 = vperm.slane %v57, 1
    %v3863 = vadd.f32 %v3842, %v3859
    %v3864 = vadd.f32 %v3843, %v3860
    %v3865 = vadd.f32 %v3844, %v3859
    %v3866 = vadd.f32 %v3845, %v3860
    %v3867 = vadd.f32 %v3846, %v3859
    %v3868 = vadd.f32 %v3847, %v3860
    %v3869 = vadd.f32 %v3848, %v3859
    %v3870 = vadd.f32 %v3849, %v3860
    %v3871 = vadd.f32 %v3850, %v3859
    %v3872 = vadd.f32 %v3851, %v3860
    %v3873 = vadd.f32 %v3852, %v3859
    %v3874 = vadd.f32 %v3853, %v3860
    %v3875 = vadd.f32 %v3854, %v3859
    %v3876 = vadd.f32 %v3855, %v3860
    %v3877 = vadd.f32 %v3856, %v3859
    %v3878 = vadd.f32 %v3857, %v3860
    %3879 = vst [vmem:[%s9] sm:$0xff] %v3863
    %3880 = vst [vmem:[%s9 + $0x8] sm:$0xff] %v3864
    %3881 = vst [vmem:[%s9 + $0x10] sm:$0xff] %v3865
    %3882 = vst [vmem:[%s9 + $0x18] sm:$0xff] %v3866
    %3883 = vst [vmem:[%s9 + $0x20] sm:$0xff] %v3867
    %3884 = vst [vmem:[%s9 + $0x28] sm:$0xff] %v3868
    %3885 = vst [vmem:[%s9 + $0x30] sm:$0xff] %v3869
    %3886 = vst [vmem:[%s9 + $0x38] sm:$0xff] %v3870
    %3887 = vst [vmem:[%s9 + $0x40] sm:$0xff] %v3871
    %3888 = vst [vmem:[%s9 + $0x48] sm:$0xff] %v3872
    %3889 = vst [vmem:[%s9 + $0x50] sm:$0xff] %v3873
    %3890 = vst [vmem:[%s9 + $0x58] sm:$0xff] %v3874
    %3891 = vst [vmem:[%s9 + $0x60] sm:$0xff] %v3875
    %3892 = vst [vmem:[%s9 + $0x68] sm:$0xff] %v3876
    %3893 = vst [vmem:[%s9 + $0x70] sm:$0xf] %v3877
    %3894 = vst [vmem:[%s9 + $0x78] sm:$0xf] %v3878
    // Predicated region
    $region42: #{stgcn_block_forward.1} parent=1 // pred_check
      _
    $region43: #{stgcn_block_forward.1} parent=1 // pred_check_branch
      %3896 = sbr.rel (0) target = $region45
    $region44: #{stgcn_block_forward.1} parent=1 // pred_region
      _
    $region45: #{stgcn_block_forward.1} parent=1 // pred_fallthru
      _
    // Predicated region
    $region46: #{stgcn_block_forward.1} parent=1 // pred_check
      _
    $region47: #{stgcn_block_forward.1} parent=1 // pred_check_branch
      %3898 = sbr.rel (0) target = $region49
    $region48: #{stgcn_block_forward.1} parent=1 // pred_region
      _
    $region49: #{stgcn_block_forward.1} parent=1 // pred_fallthru
      _
    %3899 = vsyncpa [#allocation3], 1

</llo_original>
